<compile_context>
chip_gen: v7x
topology: tpu7x:2x2x1
jax: 0.10.0
libtpu: 0.0.40
codegen_flags: <defaults>
</compile_context>

<pallas_src>
import functools
import math

import jax
import jax.numpy as jnp
from jax.experimental import pallas as pl
from jax.experimental.pallas import tpu as pltpu

LN_EPS = 1e-5  # PyTorch LayerNorm default

# Row indices into the packed (15, E) bias / LayerNorm-parameter array.
(SA_BQ, SA_BK, SA_BV, SA_BO,
 CA_BQ, CA_BK, CA_BV, CA_BO,
 FF_B2,
 N1_G, N1_B, N2_G, N2_B, N3_G, N3_B) = range(15)


def _decoder_kernel(
    tgt_ref, mem_ref,
    sa_wqkv, sa_wo, ca_wq, ca_wkv, ca_wo,
    ff_w1, ff_b1, ff_w2, vecs_ref,
    out_ref,
    *, nhead, batch_block, tgt_len, mem_len,
):
  MLp, E = tgt_ref.shape            # MLp = Nb * Lp (rows, padded to mult of 8)
  MSp = mem_ref.shape[0]            # MSp = Nb * Sp
  Nb = batch_block
  Lp, Sp = MLp // Nb, MSp // Nb
  H = nhead
  hd = E // H
  cd = sa_wqkv.dtype                # MXU operand dtype (f32 or bf16)

  vecs = vecs_ref[...]              # (15, E) packed biases / LN params (f32)

  def b_row(i):                     # (1, E), broadcasts over rows
    return vecs[i:i + 1, :]

  def matmul(a, w_ref, bias):       # 2-D MXU matmul, f32 accumulation
    return jnp.dot(a.astype(cd), w_ref[...],
                   preferred_element_type=jnp.float32) + bias

  def layernorm(y, gi, bi):
    mu = jnp.mean(y, axis=-1, keepdims=True)
    var = jnp.mean((y - mu) ** 2, axis=-1, keepdims=True)
    return (y - mu) * jax.lax.rsqrt(var + LN_EPS) * b_row(gi) + b_row(bi)

  def to_heads(y, T):
    # (Nb*T, H*hd) -> (H*Nb, T, hd); one lane slice + aligned (free) reshape
    # per head, combined batch axis ordered (head, batch).
    return jnp.concatenate(
        [y[:, h * hd:(h + 1) * hd].reshape(Nb, T, hd) for h in range(H)],
        axis=0)

  def from_heads(o, T):
    # (H*Nb, T, hd) -> (Nb*T, E): leading-axis slices + lane concat + free merge.
    return jnp.concatenate(
        [o[h * Nb:(h + 1) * Nb] for h in range(H)], axis=-1
    ).reshape(Nb * T, E)

  def attention(q, k, v, Tq, Tk, Tk_valid):
    # Single batched contraction over the combined (head, batch) axis.
    qh = to_heads(q, Tq).astype(cd)          # (H*Nb, Tq, hd)
    kh = to_heads(k, Tk).astype(cd)          # (H*Nb, Tk, hd)
    vh = to_heads(v, Tk).astype(cd)
    s = jnp.einsum('bld,btd->blt', qh, kh,
                   preferred_element_type=jnp.float32)      # (H*Nb, Tq, Tk)
    if Tk_valid != Tk:                       # static zero-padding -> static mask
      t_idx = jax.lax.broadcasted_iota(jnp.int32, s.shape, 2)
      s = jnp.where(t_idx < Tk_valid, s, -1e30)
    s = s - jnp.max(s, axis=-1, keepdims=True)
    p = jnp.exp(s)
    p = p * pl.reciprocal(jnp.sum(p, axis=-1, keepdims=True), approx=True)
    o = jnp.einsum('blt,btd->bld', p.astype(cd), vh,
                   preferred_element_type=jnp.float32)      # (H*Nb, Tq, hd)
    return from_heads(o, Tq)

  x = tgt_ref[...]                  # (Nb*Lp, E), dense (8,128)-tiled rows
  mem = mem_ref[...]                # (Nb*Sp, E)

  # TODO(synk): dropout1/2/3 are identity (eval-mode semantics); optional
  # attn_mask / key_padding_mask arguments are not implemented.

  # --- block 1: fused-QKV self-attention + residual + norm1 ----------------
  qkv = jnp.dot(x.astype(cd), sa_wqkv[...],
                preferred_element_type=jnp.float32)          # (Nb*Lp, 3E)
  sa = attention(qkv[:, :E] + b_row(SA_BQ),
                 qkv[:, E:2 * E] + b_row(SA_BK),
                 qkv[:, 2 * E:] + b_row(SA_BV),
                 Lp, Lp, tgt_len)
  sa = matmul(sa, sa_wo, b_row(SA_BO))
  x = layernorm(x + sa, N1_G, N1_B)

  # --- block 2: cross-attention over memory (fused KV) + residual + norm2 --
  q = matmul(x, ca_wq, b_row(CA_BQ))
  kv = jnp.dot(mem.astype(cd), ca_wkv[...],
               preferred_element_type=jnp.float32)           # (Nb*Sp, 2E)
  ca = attention(q,
                 kv[:, :E] + b_row(CA_BK),
                 kv[:, E:] + b_row(CA_BV),
                 Lp, Sp, mem_len)
  ca = matmul(ca, ca_wo, b_row(CA_BO))
  x = layernorm(x + ca, N2_G, N2_B)

  # --- block 3: position-wise feed-forward (relu) + residual + norm3 -------
  h1 = jnp.maximum(matmul(x, ff_w1, ff_b1[...]), 0.0)
  ff = matmul(h1, ff_w2, b_row(FF_B2))
  x = layernorm(x + ff, N3_G, N3_B)

  out_ref[...] = x.astype(out_ref.dtype)


def prepare_params(params, nhead, compute_dtype=jnp.float32):
  """One-time weight re-layout: transposes, QKV/KV fusion, 1/sqrt(hd) folding,
  bias/LN packing. compute_dtype only affects MXU operands (weights); all
  elementwise / LayerNorm / softmax math stays in f32 (v5e-friendly)."""
  E = params["sa_out_w"].shape[0]
  F = params["l1_w"].shape[0]
  hd = E // nhead
  scale = 1.0 / math.sqrt(hd)
  cd = compute_dtype

  def split3(w, b):
    return (w[:E], w[E:2 * E], w[2 * E:]), (b[:E], b[E:2 * E], b[2 * E:])

  (swq, swk, swv), (sbq, sbk, sbv) = split3(params["sa_in_w"], params["sa_in_b"])
  sa_wqkv = jnp.concatenate([swq * scale, swk, swv], axis=0).T.astype(cd)  # (E,3E)
  sa_wo = params["sa_out_w"].T.astype(cd)

  (cwq, cwk, cwv), (cbq, cbk, cbv) = split3(params["ca_in_w"], params["ca_in_b"])
  ca_wq = (cwq * scale).T.astype(cd)                                       # (E,E)
  ca_wkv = jnp.concatenate([cwk, cwv], axis=0).T.astype(cd)                # (E,2E)
  ca_wo = params["ca_out_w"].T.astype(cd)

  ff_w1 = params["l1_w"].T.astype(cd)                                      # (E,F)
  ff_b1 = params["l1_b"].reshape(1, F).astype(jnp.float32)
  ff_w2 = params["l2_w"].T.astype(cd)                                      # (F,E)

  # All E-wide bias / LayerNorm vectors packed into a single (15, E) input.
  vecs = jnp.stack([
      sbq * scale, sbk, sbv, params["sa_out_b"],
      cbq * scale, cbk, cbv, params["ca_out_b"],
      params["l2_b"],
      params["n1_g"], params["n1_b"],
      params["n2_g"], params["n2_b"],
      params["n3_g"], params["n3_b"],
  ], axis=0).astype(jnp.float32)                                           # (15,E)

  return (sa_wqkv, sa_wo, ca_wq, ca_wkv, ca_wo, ff_w1, ff_b1, ff_w2, vecs)


def _round_up(x, m):
  return (x + m - 1) // m * m


def _pick_batch_block(N, Lp, Sp, E, itemsize=4, vmem_budget=8 << 20):
  """Largest batch block Nb (divisor of N) whose double-buffered activation
  slabs fit a per-step VMEM budget; prefer >=2 grid steps (v7x megacore) as
  long as each step still batches >=2 elements (keeps matmul M large)."""
  divisors = [d for d in range(1, N + 1) if N % d == 0]
  fits = [d for d in divisors
          if d * (2 * Lp + Sp) * E * itemsize * 2 <= vmem_budget]
  pool = fits or divisors[:1]
  best = max(pool)
  multi = [d for d in pool if N // d >= 2 and d >= 2]
  return max(multi) if multi else best


@functools.partial(jax.jit, static_argnums=(3,))
def aiayn_decoder_layer_pallas(tgt, memory, prepared, nhead):
  """tgt: (L, N, E), memory: (S, N, E) — PyTorch MultiheadAttention layout."""
  L, N, E = tgt.shape
  S = memory.shape[0]
  Lp, Sp = _round_up(L, 8), _round_up(S, 8)
  Nb = _pick_batch_block(N, Lp, Sp, E)
  grid = N // Nb

  # One host-side (XLA) transpose + pad; the trailing reshape is free metadata.
  # Result: rows are the tiled second-minor dim -> dense (8,128) tiles, no
  # in-kernel relayout of the activation blocks.
  tgt_r = jnp.transpose(tgt, (1, 0, 2))                    # (N, L, E)
  mem_r = jnp.transpose(memory, (1, 0, 2))                 # (N, S, E)
  if Lp != L:
    tgt_r = jnp.pad(tgt_r, ((0, 0), (0, Lp - L), (0, 0)))
  if Sp != S:
    mem_r = jnp.pad(mem_r, ((0, 0), (0, Sp - S), (0, 0)))
  tgt2 = tgt_r.reshape(N * Lp, E)
  mem2 = mem_r.reshape(N * Sp, E)

  act_specs = [pl.BlockSpec((Nb * Lp, E), lambda n: (n, 0)),
               pl.BlockSpec((Nb * Sp, E), lambda n: (n, 0))]
  w_specs = [pl.BlockSpec(w.shape, lambda n: (0, 0)) for w in prepared]
  # TODO(synk): at v7x production sizes add pipeline_mode=pl.Buffered(1) on the
  # constant-index weight specs (single-buffered residency) and tile the FFN
  # over F; unnecessary at these shapes, so kept simple/portable here.

  out2 = pl.pallas_call(
      functools.partial(_decoder_kernel, nhead=nhead, batch_block=Nb,
                        tgt_len=L, mem_len=S),
      grid=(grid,),
      in_specs=act_specs + w_specs,
      out_specs=pl.BlockSpec((Nb * Lp, E), lambda n: (n, 0)),
      out_shape=jax.ShapeDtypeStruct((N * Lp, E), jnp.float32),
      compiler_params=pltpu.CompilerParams(
          dimension_semantics=("parallel",),   # shard batch steps across TCs
          vmem_limit_bytes=32 * 1024 * 1024),
  )(tgt2, mem2, *prepared)

  out = out2.reshape(N, Lp, E)[:, :L, :]
  return jnp.transpose(out, (1, 0, 2))                     # back to (L, N, E)


def init_params(key, d_model, nhead, dim_ff):
  keys = jax.random.split(key, 18)

  def w(k, shape, scale=0.05):
    return (scale * jax.random.normal(k, shape)).astype(jnp.float32)

  return {
      "sa_in_w": w(keys[0], (3 * d_model, d_model)),
      "sa_in_b": w(keys[1], (3 * d_model,)),
      "sa_out_w": w(keys[2], (d_model, d_model)),
      "sa_out_b": w(keys[3], (d_model,)),
      "ca_in_w": w(keys[4], (3 * d_model, d_model)),
      "ca_in_b": w(keys[5], (3 * d_model,)),
      "ca_out_w": w(keys[6], (d_model, d_model)),
      "ca_out_b": w(keys[7], (d_model,)),
      "l1_w": w(keys[8], (dim_ff, d_model)),
      "l1_b": w(keys[9], (dim_ff,)),
      "l2_w": w(keys[10], (d_model, dim_ff)),
      "l2_b": w(keys[11], (d_model,)),
      "n1_g": 1.0 + w(keys[12], (d_model,)),
      "n1_b": w(keys[13], (d_model,)),
      "n2_g": 1.0 + w(keys[14], (d_model,)),
      "n2_b": w(keys[15], (d_model,)),
      "n3_g": 1.0 + w(keys[16], (d_model,)),
      "n3_b": w(keys[17], (d_model,)),
  }


def reference(tgt, memory, params, nhead):
  """Pure-JAX reference mirroring torch.nn eval-mode semantics."""
  def ln(x, g, b):
    mu = jnp.mean(x, -1, keepdims=True)
    var = jnp.mean((x - mu) ** 2, -1, keepdims=True)
    return (x - mu) * jax.lax.rsqrt(var + LN_EPS) * g + b

  def mha(xq, xkv, in_w, in_b, out_w, out_b):
    L, N, E = xq.shape
    S = xkv.shape[0]
    hd = E // nhead
    wq, wk, wv = in_w[:E], in_w[E:2 * E], in_w[2 * E:]
    bq, bk, bv = in_b[:E], in_b[E:2 * E], in_b[2 * E:]
    q = (xq @ wq.T + bq) * (1.0 / math.sqrt(hd))
    k = xkv @ wk.T + bk
    v = xkv @ wv.T + bv
    q = q.reshape(L, N * nhead, hd).transpose(1, 0, 2)
    k = k.reshape(S, N * nhead, hd).transpose(1, 0, 2)
    v = v.reshape(S, N * nhead, hd).transpose(1, 0, 2)
    p = jax.nn.softmax(jnp.einsum("bld,bsd->bls", q, k), axis=-1)
    o = jnp.einsum("bls,bsd->bld", p, v).transpose(1, 0, 2).reshape(L, N, E)
    return o @ out_w.T + out_b

  x = tgt
  x = ln(x + mha(x, x, params["sa_in_w"], params["sa_in_b"],
                 params["sa_out_w"], params["sa_out_b"]),
         params["n1_g"], params["n1_b"])
  x = ln(x + mha(x, memory, params["ca_in_w"], params["ca_in_b"],
                 params["ca_out_w"], params["ca_out_b"]),
         params["n2_g"], params["n2_b"])
  ff = (jnp.maximum(x @ params["l1_w"].T + params["l1_b"], 0.0)
        @ params["l2_w"].T + params["l2_b"])
  x = ln(x + ff, params["n3_g"], params["n3_b"])
  return x


if __name__ == "__main__":
  d_model, nhead, dim_ff = 32, 4, 64
  L, S, N = 8, 12, 2   # tgt seq, memory seq, batch

  key = jax.random.PRNGKey(0)
  k_tgt, k_mem, k_par = jax.random.split(key, 3)
  params = init_params(k_par, d_model, nhead, dim_ff)
  tgt = jax.random.normal(k_tgt, (L, N, d_model), dtype=jnp.float32)
  memory = jax.random.normal(k_mem, (S, N, d_model), dtype=jnp.float32)

  # f32 MXU-operand path (validated against the reference).
  prepared = prepare_params(params, nhead)
  out = aiayn_decoder_layer_pallas(tgt, memory, prepared, nhead)
  out = jax.block_until_ready(out)

  ref = reference(tgt, memory, params, nhead)
  assert out.shape == (L, N, d_model)
  max_err = float(jnp.max(jnp.abs(out - ref)))
  assert jnp.allclose(out, ref, atol=3e-3, rtol=3e-3), max_err

  # bf16 MXU-operand path (v6e/v7x peak; f32 accumulation and f32 VPU math).
  prepared_bf16 = prepare_params(params, nhead, compute_dtype=jnp.bfloat16)
  out_bf16 = jax.block_until_ready(
      aiayn_decoder_layer_pallas(tgt, memory, prepared_bf16, nhead))
  assert out_bf16.shape == (L, N, d_model)
  assert bool(jnp.all(jnp.isfinite(out_bf16)))

  print("KERNEL_OK")
</pallas_src>

<mosaic_0001>
module attributes {stable_mosaic.version = 11 : i64} {
  func.func @_decoder_kernel(%arg0: i32, %arg1: memref<16x32xf32, #tpu.memory_space<vmem>>, %arg2: memref<32x32xf32, #tpu.memory_space<vmem>>, %arg3: memref<32x96xf32, #tpu.memory_space<vmem>>, %arg4: memref<32x32xf32, #tpu.memory_space<vmem>>, %arg5: memref<32x32xf32, #tpu.memory_space<vmem>>, %arg6: memref<32x64xf32, #tpu.memory_space<vmem>>, %arg7: memref<32x32xf32, #tpu.memory_space<vmem>>, %arg8: memref<32x64xf32, #tpu.memory_space<vmem>>, %arg9: memref<1x64xf32, #tpu.memory_space<vmem>>, %arg10: memref<64x32xf32, #tpu.memory_space<vmem>>, %arg11: memref<15x32xf32, #tpu.memory_space<vmem>>, %arg12: memref<16x32xf32, #tpu.memory_space<vmem>>) attributes {dimension_semantics = [#tpu.dimension_semantics<parallel>], iteration_bounds = array<i64: 1>, scalar_prefetch = 0 : i64, scratch_operands = 0 : i64, tpu.core_type = #tpu.core_type<tc>, window_params = [{transform_indices = @transform_0, window_bounds = array<i64: 16, 32>}, {transform_indices = @transform_1, window_bounds = array<i64: 32, 32>}, {pipeline_mode = #tpu.pipeline_mode<synchronous>, transform_indices = @transform_2, window_bounds = array<i64: 32, 96>}, {pipeline_mode = #tpu.pipeline_mode<synchronous>, transform_indices = @transform_3, window_bounds = array<i64: 32, 32>}, {pipeline_mode = #tpu.pipeline_mode<synchronous>, transform_indices = @transform_4, window_bounds = array<i64: 32, 32>}, {pipeline_mode = #tpu.pipeline_mode<synchronous>, transform_indices = @transform_5, window_bounds = array<i64: 32, 64>}, {pipeline_mode = #tpu.pipeline_mode<synchronous>, transform_indices = @transform_6, window_bounds = array<i64: 32, 32>}, {pipeline_mode = #tpu.pipeline_mode<synchronous>, transform_indices = @transform_7, window_bounds = array<i64: 32, 64>}, {pipeline_mode = #tpu.pipeline_mode<synchronous>, transform_indices = @transform_8, window_bounds = array<i64: 1, 64>}, {pipeline_mode = #tpu.pipeline_mode<synchronous>, transform_indices = @transform_9, window_bounds = array<i64: 64, 32>}, {pipeline_mode = #tpu.pipeline_mode<synchronous>, transform_indices = @transform_10, window_bounds = array<i64: 15, 32>}, {transform_indices = @transform_11, window_bounds = array<i64: 16, 32>}]} {
    %c0 = arith.constant 0 : index
    %c0_0 = arith.constant 0 : index
    %0 = vector.load %arg11[%c0, %c0_0] : memref<15x32xf32, #tpu.memory_space<vmem>>, vector<15x32xf32>
    %c0_1 = arith.constant 0 : index
    %c0_2 = arith.constant 0 : index
    %1 = vector.load %arg1[%c0_1, %c0_2] : memref<16x32xf32, #tpu.memory_space<vmem>>, vector<16x32xf32>
    %c0_3 = arith.constant 0 : index
    %c0_4 = arith.constant 0 : index
    %2 = vector.load %arg2[%c0_3, %c0_4] : memref<32x32xf32, #tpu.memory_space<vmem>>, vector<32x32xf32>
    %c0_5 = arith.constant 0 : index
    %c0_6 = arith.constant 0 : index
    %3 = vector.load %arg3[%c0_5, %c0_6] : memref<32x96xf32, #tpu.memory_space<vmem>>, vector<32x96xf32>
    %cst = arith.constant dense<0.000000e+00> : vector<16x96xf32>
    %4 = tpu.matmul %1, %3, %cst {dimension_numbers = #tpu.dot_dimension_numbers<[1], [0], [0], [1], [0, 0, 1, 1], [], []>} : vector<16x32xf32>, vector<32x96xf32>, vector<16x96xf32> -> vector<16x96xf32>
    %5 = vector.extract_strided_slice %4 {offsets = [0, 0], sizes = [16, 32], strides = [1, 1]} : vector<16x96xf32> to vector<16x32xf32>
    %6 = vector.extract_strided_slice %0 {offsets = [0, 0], sizes = [1, 32], strides = [1, 1]} : vector<15x32xf32> to vector<1x32xf32>
    %7 = vector.broadcast %6 : vector<1x32xf32> to vector<16x32xf32>
    %8 = arith.addf %5, %7 : vector<16x32xf32>
    %9 = vector.extract_strided_slice %4 {offsets = [0, 32], sizes = [16, 32], strides = [1, 1]} : vector<16x96xf32> to vector<16x32xf32>
    %10 = vector.extract_strided_slice %0 {offsets = [1, 0], sizes = [1, 32], strides = [1, 1]} : vector<15x32xf32> to vector<1x32xf32>
    %11 = vector.broadcast %10 : vector<1x32xf32> to vector<16x32xf32>
    %12 = arith.addf %9, %11 : vector<16x32xf32>
    %13 = vector.extract_strided_slice %4 {offsets = [0, 64], sizes = [16, 32], strides = [1, 1]} : vector<16x96xf32> to vector<16x32xf32>
    %14 = vector.extract_strided_slice %0 {offsets = [2, 0], sizes = [1, 32], strides = [1, 1]} : vector<15x32xf32> to vector<1x32xf32>
    %15 = vector.broadcast %14 : vector<1x32xf32> to vector<16x32xf32>
    %16 = arith.addf %13, %15 : vector<16x32xf32>
    %17 = vector.extract_strided_slice %8 {offsets = [0, 0], sizes = [16, 8], strides = [1, 1]} : vector<16x32xf32> to vector<16x8xf32>
    %18 = vector.shape_cast %17 : vector<16x8xf32> to vector<2x8x8xf32>
    %19 = vector.extract_strided_slice %8 {offsets = [0, 8], sizes = [16, 8], strides = [1, 1]} : vector<16x32xf32> to vector<16x8xf32>
    %20 = vector.shape_cast %19 : vector<16x8xf32> to vector<2x8x8xf32>
    %21 = vector.extract_strided_slice %8 {offsets = [0, 16], sizes = [16, 8], strides = [1, 1]} : vector<16x32xf32> to vector<16x8xf32>
    %22 = vector.shape_cast %21 : vector<16x8xf32> to vector<2x8x8xf32>
    %23 = vector.extract_strided_slice %8 {offsets = [0, 24], sizes = [16, 8], strides = [1, 1]} : vector<16x32xf32> to vector<16x8xf32>
    %24 = vector.shape_cast %23 : vector<16x8xf32> to vector<2x8x8xf32>
    %25 = tpu.concatenate %18, %20, %22, %24 in 0 : vector<2x8x8xf32>, vector<2x8x8xf32>, vector<2x8x8xf32>, vector<2x8x8xf32> -> vector<8x8x8xf32>
    %26 = vector.extract_strided_slice %12 {offsets = [0, 0], sizes = [16, 8], strides = [1, 1]} : vector<16x32xf32> to vector<16x8xf32>
    %27 = vector.shape_cast %26 : vector<16x8xf32> to vector<2x8x8xf32>
    %28 = vector.extract_strided_slice %12 {offsets = [0, 8], sizes = [16, 8], strides = [1, 1]} : vector<16x32xf32> to vector<16x8xf32>
    %29 = vector.shape_cast %28 : vector<16x8xf32> to vector<2x8x8xf32>
    %30 = vector.extract_strided_slice %12 {offsets = [0, 16], sizes = [16, 8], strides = [1, 1]} : vector<16x32xf32> to vector<16x8xf32>
    %31 = vector.shape_cast %30 : vector<16x8xf32> to vector<2x8x8xf32>
    %32 = vector.extract_strided_slice %12 {offsets = [0, 24], sizes = [16, 8], strides = [1, 1]} : vector<16x32xf32> to vector<16x8xf32>
    %33 = vector.shape_cast %32 : vector<16x8xf32> to vector<2x8x8xf32>
    %34 = tpu.concatenate %27, %29, %31, %33 in 0 : vector<2x8x8xf32>, vector<2x8x8xf32>, vector<2x8x8xf32>, vector<2x8x8xf32> -> vector<8x8x8xf32>
    %35 = vector.extract_strided_slice %16 {offsets = [0, 0], sizes = [16, 8], strides = [1, 1]} : vector<16x32xf32> to vector<16x8xf32>
    %36 = vector.shape_cast %35 : vector<16x8xf32> to vector<2x8x8xf32>
    %37 = vector.extract_strided_slice %16 {offsets = [0, 8], sizes = [16, 8], strides = [1, 1]} : vector<16x32xf32> to vector<16x8xf32>
    %38 = vector.shape_cast %37 : vector<16x8xf32> to vector<2x8x8xf32>
    %39 = vector.extract_strided_slice %16 {offsets = [0, 16], sizes = [16, 8], strides = [1, 1]} : vector<16x32xf32> to vector<16x8xf32>
    %40 = vector.shape_cast %39 : vector<16x8xf32> to vector<2x8x8xf32>
    %41 = vector.extract_strided_slice %16 {offsets = [0, 24], sizes = [16, 8], strides = [1, 1]} : vector<16x32xf32> to vector<16x8xf32>
    %42 = vector.shape_cast %41 : vector<16x8xf32> to vector<2x8x8xf32>
    %43 = tpu.concatenate %36, %38, %40, %42 in 0 : vector<2x8x8xf32>, vector<2x8x8xf32>, vector<2x8x8xf32>, vector<2x8x8xf32> -> vector<8x8x8xf32>
    "tpu.trace_start"() <{level = 10 : i32, message = "bld,btd->blt"}> : () -> ()
    %cst_7 = arith.constant dense<0.000000e+00> : vector<8x8x8xf32>
    %44 = tpu.matmul %25, %34, %cst_7 {dimension_numbers = #tpu.dot_dimension_numbers<[2], [2], [1], [1], [0, 0, 0, 1, 1, 1], [0], [0]>} : vector<8x8x8xf32>, vector<8x8x8xf32>, vector<8x8x8xf32> -> vector<8x8x8xf32>
    "tpu.trace_stop"() : () -> ()
    %cst_8 = arith.constant dense<0xFF800000> : vector<8x8xf32>
    %45 = vector.multi_reduction <maximumf>, %44, %cst_8 [2] : vector<8x8x8xf32> to vector<8x8xf32>
    %46 = vector.shape_cast %45 : vector<8x8xf32> to vector<8x8x1xf32>
    %47 = vector.broadcast %46 : vector<8x8x1xf32> to vector<8x8x8xf32>
    %48 = arith.subf %44, %47 : vector<8x8x8xf32>
    %49 = math.exp %48 : vector<8x8x8xf32>
    %cst_9 = arith.constant dense<0.000000e+00> : vector<8x8xf32>
    %50 = vector.multi_reduction <add>, %49, %cst_9 [2] : vector<8x8x8xf32> to vector<8x8xf32>
    %51 = vector.shape_cast %50 : vector<8x8xf32> to vector<8x8x1xf32>
    %52 = tpu.reciprocal %51 {approx = true} : vector<8x8x1xf32> -> vector<8x8x1xf32>
    %53 = vector.broadcast %52 : vector<8x8x1xf32> to vector<8x8x8xf32>
    %54 = arith.mulf %49, %53 : vector<8x8x8xf32>
    "tpu.trace_start"() <{level = 10 : i32, message = "blt,btd->bld"}> : () -> ()
    %cst_10 = arith.constant dense<0.000000e+00> : vector<8x8x8xf32>
    %55 = tpu.matmul %54, %43, %cst_10 {dimension_numbers = #tpu.dot_dimension_numbers<[2], [1], [1], [2], [0, 0, 0, 1, 1, 2], [0], [0]>} : vector<8x8x8xf32>, vector<8x8x8xf32>, vector<8x8x8xf32> -> vector<8x8x8xf32>
    "tpu.trace_stop"() : () -> ()
    %56 = vector.extract_strided_slice %55 {offsets = [0, 0, 0], sizes = [2, 8, 8], strides = [1, 1, 1]} : vector<8x8x8xf32> to vector<2x8x8xf32>
    %57 = vector.extract_strided_slice %55 {offsets = [2, 0, 0], sizes = [2, 8, 8], strides = [1, 1, 1]} : vector<8x8x8xf32> to vector<2x8x8xf32>
    %58 = vector.extract_strided_slice %55 {offsets = [4, 0, 0], sizes = [2, 8, 8], strides = [1, 1, 1]} : vector<8x8x8xf32> to vector<2x8x8xf32>
    %59 = vector.extract_strided_slice %55 {offsets = [6, 0, 0], sizes = [2, 8, 8], strides = [1, 1, 1]} : vector<8x8x8xf32> to vector<2x8x8xf32>
    %60 = tpu.concatenate %56, %57, %58, %59 in 2 : vector<2x8x8xf32>, vector<2x8x8xf32>, vector<2x8x8xf32>, vector<2x8x8xf32> -> vector<2x8x32xf32>
    %61 = vector.shape_cast %60 : vector<2x8x32xf32> to vector<16x32xf32>
    %62 = vector.extract_strided_slice %0 {offsets = [3, 0], sizes = [1, 32], strides = [1, 1]} : vector<15x32xf32> to vector<1x32xf32>
    %c0_11 = arith.constant 0 : index
    %c0_12 = arith.constant 0 : index
    %63 = vector.load %arg4[%c0_11, %c0_12] : memref<32x32xf32, #tpu.memory_space<vmem>>, vector<32x32xf32>
    %cst_13 = arith.constant dense<0.000000e+00> : vector<16x32xf32>
    %64 = tpu.matmul %61, %63, %cst_13 {dimension_numbers = #tpu.dot_dimension_numbers<[1], [0], [0], [1], [0, 0, 1, 1], [], []>} : vector<16x32xf32>, vector<32x32xf32>, vector<16x32xf32> -> vector<16x32xf32>
    %65 = vector.broadcast %62 : vector<1x32xf32> to vector<16x32xf32>
    %66 = arith.addf %64, %65 : vector<16x32xf32>
    %67 = arith.addf %1, %66 : vector<16x32xf32>
    %cst_14 = arith.constant dense<0.000000e+00> : vector<16xf32>
    %68 = vector.multi_reduction <add>, %67, %cst_14 [1] : vector<16x32xf32> to vector<16xf32>
    %69 = vector.shape_cast %68 : vector<16xf32> to vector<16x1xf32>
    %cst_15 = arith.constant 3.200000e+01 : f32
    %70 = vector.broadcast %cst_15 : f32 to vector<16x1xf32>
    %71 = arith.divf %69, %70 : vector<16x1xf32>
    %72 = vector.broadcast %71 : vector<16x1xf32> to vector<16x32xf32>
    %73 = arith.subf %67, %72 : vector<16x32xf32>
    %74 = arith.mulf %73, %73 : vector<16x32xf32>
    %cst_16 = arith.constant dense<0.000000e+00> : vector<16xf32>
    %75 = vector.multi_reduction <add>, %74, %cst_16 [1] : vector<16x32xf32> to vector<16xf32>
    %76 = vector.shape_cast %75 : vector<16xf32> to vector<16x1xf32>
    %cst_17 = arith.constant 3.200000e+01 : f32
    %77 = vector.broadcast %cst_17 : f32 to vector<16x1xf32>
    %78 = arith.divf %76, %77 : vector<16x1xf32>
    %79 = vector.broadcast %71 : vector<16x1xf32> to vector<16x32xf32>
    %80 = arith.subf %67, %79 : vector<16x32xf32>
    %cst_18 = arith.constant 9.99999974E-6 : f32
    %81 = vector.broadcast %cst_18 : f32 to vector<16x1xf32>
    %82 = arith.addf %78, %81 : vector<16x1xf32>
    %83 = math.rsqrt %82 : vector<16x1xf32>
    %84 = vector.broadcast %83 : vector<16x1xf32> to vector<16x32xf32>
    %85 = arith.mulf %80, %84 : vector<16x32xf32>
    %86 = vector.extract_strided_slice %0 {offsets = [9, 0], sizes = [1, 32], strides = [1, 1]} : vector<15x32xf32> to vector<1x32xf32>
    %87 = vector.broadcast %86 : vector<1x32xf32> to vector<16x32xf32>
    %88 = arith.mulf %85, %87 : vector<16x32xf32>
    %89 = vector.extract_strided_slice %0 {offsets = [10, 0], sizes = [1, 32], strides = [1, 1]} : vector<15x32xf32> to vector<1x32xf32>
    %90 = vector.broadcast %89 : vector<1x32xf32> to vector<16x32xf32>
    %91 = arith.addf %88, %90 : vector<16x32xf32>
    %92 = vector.extract_strided_slice %0 {offsets = [4, 0], sizes = [1, 32], strides = [1, 1]} : vector<15x32xf32> to vector<1x32xf32>
    %c0_19 = arith.constant 0 : index
    %c0_20 = arith.constant 0 : index
    %93 = vector.load %arg5[%c0_19, %c0_20] : memref<32x32xf32, #tpu.memory_space<vmem>>, vector<32x32xf32>
    %cst_21 = arith.constant dense<0.000000e+00> : vector<16x32xf32>
    %94 = tpu.matmul %91, %93, %cst_21 {dimension_numbers = #tpu.dot_dimension_numbers<[1], [0], [0], [1], [0, 0, 1, 1], [], []>} : vector<16x32xf32>, vector<32x32xf32>, vector<16x32xf32> -> vector<16x32xf32>
    %95 = vector.broadcast %92 : vector<1x32xf32> to vector<16x32xf32>
    %96 = arith.addf %94, %95 : vector<16x32xf32>
    %c0_22 = arith.constant 0 : index
    %c0_23 = arith.constant 0 : index
    %97 = vector.load %arg6[%c0_22, %c0_23] : memref<32x64xf32, #tpu.memory_space<vmem>>, vector<32x64xf32>
    %cst_24 = arith.constant dense<0.000000e+00> : vector<32x64xf32>
    %98 = tpu.matmul %2, %97, %cst_24 {dimension_numbers = #tpu.dot_dimension_numbers<[1], [0], [0], [1], [0, 0, 1, 1], [], []>} : vector<32x32xf32>, vector<32x64xf32>, vector<32x64xf32> -> vector<32x64xf32>
    %99 = vector.extract_strided_slice %98 {offsets = [0, 0], sizes = [32, 32], strides = [1, 1]} : vector<32x64xf32> to vector<32x32xf32>
    %100 = vector.extract_strided_slice %0 {offsets = [5, 0], sizes = [1, 32], strides = [1, 1]} : vector<15x32xf32> to vector<1x32xf32>
    %101 = vector.broadcast %100 : vector<1x32xf32> to vector<32x32xf32>
    %102 = arith.addf %99, %101 : vector<32x32xf32>
    %103 = vector.extract_strided_slice %98 {offsets = [0, 32], sizes = [32, 32], strides = [1, 1]} : vector<32x64xf32> to vector<32x32xf32>
    %104 = vector.extract_strided_slice %0 {offsets = [6, 0], sizes = [1, 32], strides = [1, 1]} : vector<15x32xf32> to vector<1x32xf32>
    %105 = vector.broadcast %104 : vector<1x32xf32> to vector<32x32xf32>
    %106 = arith.addf %103, %105 : vector<32x32xf32>
    %107 = vector.extract_strided_slice %96 {offsets = [0, 0], sizes = [16, 8], strides = [1, 1]} : vector<16x32xf32> to vector<16x8xf32>
    %108 = vector.shape_cast %107 : vector<16x8xf32> to vector<2x8x8xf32>
    %109 = vector.extract_strided_slice %96 {offsets = [0, 8], sizes = [16, 8], strides = [1, 1]} : vector<16x32xf32> to vector<16x8xf32>
    %110 = vector.shape_cast %109 : vector<16x8xf32> to vector<2x8x8xf32>
    %111 = vector.extract_strided_slice %96 {offsets = [0, 16], sizes = [16, 8], strides = [1, 1]} : vector<16x32xf32> to vector<16x8xf32>
    %112 = vector.shape_cast %111 : vector<16x8xf32> to vector<2x8x8xf32>
    %113 = vector.extract_strided_slice %96 {offsets = [0, 24], sizes = [16, 8], strides = [1, 1]} : vector<16x32xf32> to vector<16x8xf32>
    %114 = vector.shape_cast %113 : vector<16x8xf32> to vector<2x8x8xf32>
    %115 = tpu.concatenate %108, %110, %112, %114 in 0 : vector<2x8x8xf32>, vector<2x8x8xf32>, vector<2x8x8xf32>, vector<2x8x8xf32> -> vector<8x8x8xf32>
    %116 = vector.extract_strided_slice %102 {offsets = [0, 0], sizes = [32, 8], strides = [1, 1]} : vector<32x32xf32> to vector<32x8xf32>
    %117 = vector.shape_cast %116 : vector<32x8xf32> to vector<2x16x8xf32>
    %118 = vector.extract_strided_slice %102 {offsets = [0, 8], sizes = [32, 8], strides = [1, 1]} : vector<32x32xf32> to vector<32x8xf32>
    %119 = vector.shape_cast %118 : vector<32x8xf32> to vector<2x16x8xf32>
    %120 = vector.extract_strided_slice %102 {offsets = [0, 16], sizes = [32, 8], strides = [1, 1]} : vector<32x32xf32> to vector<32x8xf32>
    %121 = vector.shape_cast %120 : vector<32x8xf32> to vector<2x16x8xf32>
    %122 = vector.extract_strided_slice %102 {offsets = [0, 24], sizes = [32, 8], strides = [1, 1]} : vector<32x32xf32> to vector<32x8xf32>
    %123 = vector.shape_cast %122 : vector<32x8xf32> to vector<2x16x8xf32>
    %124 = tpu.concatenate %117, %119, %121, %123 in 0 : vector<2x16x8xf32>, vector<2x16x8xf32>, vector<2x16x8xf32>, vector<2x16x8xf32> -> vector<8x16x8xf32>
    %125 = vector.extract_strided_slice %106 {offsets = [0, 0], sizes = [32, 8], strides = [1, 1]} : vector<32x32xf32> to vector<32x8xf32>
    %126 = vector.shape_cast %125 : vector<32x8xf32> to vector<2x16x8xf32>
    %127 = vector.extract_strided_slice %106 {offsets = [0, 8], sizes = [32, 8], strides = [1, 1]} : vector<32x32xf32> to vector<32x8xf32>
    %128 = vector.shape_cast %127 : vector<32x8xf32> to vector<2x16x8xf32>
    %129 = vector.extract_strided_slice %106 {offsets = [0, 16], sizes = [32, 8], strides = [1, 1]} : vector<32x32xf32> to vector<32x8xf32>
    %130 = vector.shape_cast %129 : vector<32x8xf32> to vector<2x16x8xf32>
    %131 = vector.extract_strided_slice %106 {offsets = [0, 24], sizes = [32, 8], strides = [1, 1]} : vector<32x32xf32> to vector<32x8xf32>
    %132 = vector.shape_cast %131 : vector<32x8xf32> to vector<2x16x8xf32>
    %133 = tpu.concatenate %126, %128, %130, %132 in 0 : vector<2x16x8xf32>, vector<2x16x8xf32>, vector<2x16x8xf32>, vector<2x16x8xf32> -> vector<8x16x8xf32>
    "tpu.trace_start"() <{level = 10 : i32, message = "bld,btd->blt"}> : () -> ()
    %cst_25 = arith.constant dense<0.000000e+00> : vector<8x8x16xf32>
    %134 = tpu.matmul %115, %124, %cst_25 {dimension_numbers = #tpu.dot_dimension_numbers<[2], [2], [1], [1], [0, 0, 0, 1, 1, 1], [0], [0]>} : vector<8x8x8xf32>, vector<8x16x8xf32>, vector<8x8x16xf32> -> vector<8x8x16xf32>
    "tpu.trace_stop"() : () -> ()
    %135 = tpu.iota {dimensions = array<i32: 2>} : vector<8x8x16xi32>
    %c12_i32 = arith.constant 12 : i32
    %136 = vector.broadcast %c12_i32 : i32 to vector<8x8x16xi32>
    %137 = arith.cmpi slt, %135, %136 : vector<8x8x16xi32>
    %cst_26 = arith.constant -1.000000e+30 : f32
    %138 = vector.broadcast %cst_26 : f32 to vector<8x8x16xf32>
    %139 = arith.select %137, %134, %138 : vector<8x8x16xi1>, vector<8x8x16xf32>
    %cst_27 = arith.constant dense<0xFF800000> : vector<8x8xf32>
    %140 = vector.multi_reduction <maximumf>, %139, %cst_27 [2] : vector<8x8x16xf32> to vector<8x8xf32>
    %141 = vector.shape_cast %140 : vector<8x8xf32> to vector<8x8x1xf32>
    %142 = vector.broadcast %141 : vector<8x8x1xf32> to vector<8x8x16xf32>
    %143 = arith.subf %139, %142 : vector<8x8x16xf32>
    %144 = math.exp %143 : vector<8x8x16xf32>
    %cst_28 = arith.constant dense<0.000000e+00> : vector<8x8xf32>
    %145 = vector.multi_reduction <add>, %144, %cst_28 [2] : vector<8x8x16xf32> to vector<8x8xf32>
    %146 = vector.shape_cast %145 : vector<8x8xf32> to vector<8x8x1xf32>
    %147 = tpu.reciprocal %146 {approx = true} : vector<8x8x1xf32> -> vector<8x8x1xf32>
    %148 = vector.broadcast %147 : vector<8x8x1xf32> to vector<8x8x16xf32>
    %149 = arith.mulf %144, %148 : vector<8x8x16xf32>
    "tpu.trace_start"() <{level = 10 : i32, message = "blt,btd->bld"}> : () -> ()
    %cst_29 = arith.constant dense<0.000000e+00> : vector<8x8x8xf32>
    %150 = tpu.matmul %149, %133, %cst_29 {dimension_numbers = #tpu.dot_dimension_numbers<[2], [1], [1], [2], [0, 0, 0, 1, 1, 2], [0], [0]>} : vector<8x8x16xf32>, vector<8x16x8xf32>, vector<8x8x8xf32> -> vector<8x8x8xf32>
    "tpu.trace_stop"() : () -> ()
    %151 = vector.extract_strided_slice %150 {offsets = [0, 0, 0], sizes = [2, 8, 8], strides = [1, 1, 1]} : vector<8x8x8xf32> to vector<2x8x8xf32>
    %152 = vector.extract_strided_slice %150 {offsets = [2, 0, 0], sizes = [2, 8, 8], strides = [1, 1, 1]} : vector<8x8x8xf32> to vector<2x8x8xf32>
    %153 = vector.extract_strided_slice %150 {offsets = [4, 0, 0], sizes = [2, 8, 8], strides = [1, 1, 1]} : vector<8x8x8xf32> to vector<2x8x8xf32>
    %154 = vector.extract_strided_slice %150 {offsets = [6, 0, 0], sizes = [2, 8, 8], strides = [1, 1, 1]} : vector<8x8x8xf32> to vector<2x8x8xf32>
    %155 = tpu.concatenate %151, %152, %153, %154 in 2 : vector<2x8x8xf32>, vector<2x8x8xf32>, vector<2x8x8xf32>, vector<2x8x8xf32> -> vector<2x8x32xf32>
    %156 = vector.shape_cast %155 : vector<2x8x32xf32> to vector<16x32xf32>
    %157 = vector.extract_strided_slice %0 {offsets = [7, 0], sizes = [1, 32], strides = [1, 1]} : vector<15x32xf32> to vector<1x32xf32>
    %c0_30 = arith.constant 0 : index
    %c0_31 = arith.constant 0 : index
    %158 = vector.load %arg7[%c0_30, %c0_31] : memref<32x32xf32, #tpu.memory_space<vmem>>, vector<32x32xf32>
    %cst_32 = arith.constant dense<0.000000e+00> : vector<16x32xf32>
    %159 = tpu.matmul %156, %158, %cst_32 {dimension_numbers = #tpu.dot_dimension_numbers<[1], [0], [0], [1], [0, 0, 1, 1], [], []>} : vector<16x32xf32>, vector<32x32xf32>, vector<16x32xf32> -> vector<16x32xf32>
    %160 = vector.broadcast %157 : vector<1x32xf32> to vector<16x32xf32>
    %161 = arith.addf %159, %160 : vector<16x32xf32>
    %162 = arith.addf %91, %161 : vector<16x32xf32>
    %cst_33 = arith.constant dense<0.000000e+00> : vector<16xf32>
    %163 = vector.multi_reduction <add>, %162, %cst_33 [1] : vector<16x32xf32> to vector<16xf32>
    %164 = vector.shape_cast %163 : vector<16xf32> to vector<16x1xf32>
    %cst_34 = arith.constant 3.200000e+01 : f32
    %165 = vector.broadcast %cst_34 : f32 to vector<16x1xf32>
    %166 = arith.divf %164, %165 : vector<16x1xf32>
    %167 = vector.broadcast %166 : vector<16x1xf32> to vector<16x32xf32>
    %168 = arith.subf %162, %167 : vector<16x32xf32>
    %169 = arith.mulf %168, %168 : vector<16x32xf32>
    %cst_35 = arith.constant dense<0.000000e+00> : vector<16xf32>
    %170 = vector.multi_reduction <add>, %169, %cst_35 [1] : vector<16x32xf32> to vector<16xf32>
    %171 = vector.shape_cast %170 : vector<16xf32> to vector<16x1xf32>
    %cst_36 = arith.constant 3.200000e+01 : f32
    %172 = vector.broadcast %cst_36 : f32 to vector<16x1xf32>
    %173 = arith.divf %171, %172 : vector<16x1xf32>
    %174 = vector.broadcast %166 : vector<16x1xf32> to vector<16x32xf32>
    %175 = arith.subf %162, %174 : vector<16x32xf32>
    %cst_37 = arith.constant 9.99999974E-6 : f32
    %176 = vector.broadcast %cst_37 : f32 to vector<16x1xf32>
    %177 = arith.addf %173, %176 : vector<16x1xf32>
    %178 = math.rsqrt %177 : vector<16x1xf32>
    %179 = vector.broadcast %178 : vector<16x1xf32> to vector<16x32xf32>
    %180 = arith.mulf %175, %179 : vector<16x32xf32>
    %181 = vector.extract_strided_slice %0 {offsets = [11, 0], sizes = [1, 32], strides = [1, 1]} : vector<15x32xf32> to vector<1x32xf32>
    %182 = vector.broadcast %181 : vector<1x32xf32> to vector<16x32xf32>
    %183 = arith.mulf %180, %182 : vector<16x32xf32>
    %184 = vector.extract_strided_slice %0 {offsets = [12, 0], sizes = [1, 32], strides = [1, 1]} : vector<15x32xf32> to vector<1x32xf32>
    %185 = vector.broadcast %184 : vector<1x32xf32> to vector<16x32xf32>
    %186 = arith.addf %183, %185 : vector<16x32xf32>
    %c0_38 = arith.constant 0 : index
    %c0_39 = arith.constant 0 : index
    %187 = vector.load %arg9[%c0_38, %c0_39] : memref<1x64xf32, #tpu.memory_space<vmem>>, vector<1x64xf32>
    %c0_40 = arith.constant 0 : index
    %c0_41 = arith.constant 0 : index
    %188 = vector.load %arg8[%c0_40, %c0_41] : memref<32x64xf32, #tpu.memory_space<vmem>>, vector<32x64xf32>
    %cst_42 = arith.constant dense<0.000000e+00> : vector<16x64xf32>
    %189 = tpu.matmul %186, %188, %cst_42 {dimension_numbers = #tpu.dot_dimension_numbers<[1], [0], [0], [1], [0, 0, 1, 1], [], []>} : vector<16x32xf32>, vector<32x64xf32>, vector<16x64xf32> -> vector<16x64xf32>
    %190 = vector.broadcast %187 : vector<1x64xf32> to vector<16x64xf32>
    %191 = arith.addf %189, %190 : vector<16x64xf32>
    %cst_43 = arith.constant 0.000000e+00 : f32
    %192 = vector.broadcast %cst_43 : f32 to vector<16x64xf32>
    %193 = arith.maximumf %191, %192 : vector<16x64xf32>
    %194 = vector.extract_strided_slice %0 {offsets = [8, 0], sizes = [1, 32], strides = [1, 1]} : vector<15x32xf32> to vector<1x32xf32>
    %c0_44 = arith.constant 0 : index
    %c0_45 = arith.constant 0 : index
    %195 = vector.load %arg10[%c0_44, %c0_45] : memref<64x32xf32, #tpu.memory_space<vmem>>, vector<64x32xf32>
    %cst_46 = arith.constant dense<0.000000e+00> : vector<16x32xf32>
    %196 = tpu.matmul %193, %195, %cst_46 {dimension_numbers = #tpu.dot_dimension_numbers<[1], [0], [0], [1], [0, 0, 1, 1], [], []>} : vector<16x64xf32>, vector<64x32xf32>, vector<16x32xf32> -> vector<16x32xf32>
    %197 = vector.broadcast %194 : vector<1x32xf32> to vector<16x32xf32>
    %198 = arith.addf %196, %197 : vector<16x32xf32>
    %199 = arith.addf %186, %198 : vector<16x32xf32>
    %cst_47 = arith.constant dense<0.000000e+00> : vector<16xf32>
    %200 = vector.multi_reduction <add>, %199, %cst_47 [1] : vector<16x32xf32> to vector<16xf32>
    %201 = vector.shape_cast %200 : vector<16xf32> to vector<16x1xf32>
    %cst_48 = arith.constant 3.200000e+01 : f32
    %202 = vector.broadcast %cst_48 : f32 to vector<16x1xf32>
    %203 = arith.divf %201, %202 : vector<16x1xf32>
    %204 = vector.broadcast %203 : vector<16x1xf32> to vector<16x32xf32>
    %205 = arith.subf %199, %204 : vector<16x32xf32>
    %206 = arith.mulf %205, %205 : vector<16x32xf32>
    %cst_49 = arith.constant dense<0.000000e+00> : vector<16xf32>
    %207 = vector.multi_reduction <add>, %206, %cst_49 [1] : vector<16x32xf32> to vector<16xf32>
    %208 = vector.shape_cast %207 : vector<16xf32> to vector<16x1xf32>
    %cst_50 = arith.constant 3.200000e+01 : f32
    %209 = vector.broadcast %cst_50 : f32 to vector<16x1xf32>
    %210 = arith.divf %208, %209 : vector<16x1xf32>
    %211 = vector.broadcast %203 : vector<16x1xf32> to vector<16x32xf32>
    %212 = arith.subf %199, %211 : vector<16x32xf32>
    %cst_51 = arith.constant 9.99999974E-6 : f32
    %213 = vector.broadcast %cst_51 : f32 to vector<16x1xf32>
    %214 = arith.addf %210, %213 : vector<16x1xf32>
    %215 = math.rsqrt %214 : vector<16x1xf32>
    %216 = vector.broadcast %215 : vector<16x1xf32> to vector<16x32xf32>
    %217 = arith.mulf %212, %216 : vector<16x32xf32>
    %218 = vector.extract_strided_slice %0 {offsets = [13, 0], sizes = [1, 32], strides = [1, 1]} : vector<15x32xf32> to vector<1x32xf32>
    %219 = vector.broadcast %218 : vector<1x32xf32> to vector<16x32xf32>
    %220 = arith.mulf %217, %219 : vector<16x32xf32>
    %221 = vector.extract_strided_slice %0 {offsets = [14, 0], sizes = [1, 32], strides = [1, 1]} : vector<15x32xf32> to vector<1x32xf32>
    %222 = vector.broadcast %221 : vector<1x32xf32> to vector<16x32xf32>
    %223 = arith.addf %220, %222 : vector<16x32xf32>
    %c0_52 = arith.constant 0 : index
    %c0_53 = arith.constant 0 : index
    %224 = vector.load %arg12[%c0_52, %c0_53] : memref<16x32xf32, #tpu.memory_space<vmem>>, vector<16x32xf32>
    tpu.vector_store %arg12[%c0_52, %c0_53], %223 {strides = array<i32>} : memref<16x32xf32, #tpu.memory_space<vmem>>, vector<16x32xf32>,
    return
  }
  func.func @transform_0(%arg0: i32) -> (i32, i32) {
    %c0_i32 = arith.constant 0 : i32
    %c0_i32_0 = arith.constant 0 : i32
    return %arg0, %c0_i32 : i32, i32
  }
  func.func @transform_1(%arg0: i32) -> (i32, i32) {
    %c0_i32 = arith.constant 0 : i32
    %c0_i32_0 = arith.constant 0 : i32
    return %arg0, %c0_i32 : i32, i32
  }
  func.func @transform_2(%arg0: i32) -> (i32, i32) {
    %c0_i32 = arith.constant 0 : i32
    %c0_i32_0 = arith.constant 0 : i32
    %c0_i32_1 = arith.constant 0 : i32
    return %c0_i32, %c0_i32_0 : i32, i32
  }
  func.func @transform_3(%arg0: i32) -> (i32, i32) {
    %c0_i32 = arith.constant 0 : i32
    %c0_i32_0 = arith.constant 0 : i32
    %c0_i32_1 = arith.constant 0 : i32
    return %c0_i32, %c0_i32_0 : i32, i32
  }
  func.func @transform_4(%arg0: i32) -> (i32, i32) {
    %c0_i32 = arith.constant 0 : i32
    %c0_i32_0 = arith.constant 0 : i32
    %c0_i32_1 = arith.constant 0 : i32
    return %c0_i32, %c0_i32_0 : i32, i32
  }
  func.func @transform_5(%arg0: i32) -> (i32, i32) {
    %c0_i32 = arith.constant 0 : i32
    %c0_i32_0 = arith.constant 0 : i32
    %c0_i32_1 = arith.constant 0 : i32
    return %c0_i32, %c0_i32_0 : i32, i32
  }
  func.func @transform_6(%arg0: i32) -> (i32, i32) {
    %c0_i32 = arith.constant 0 : i32
    %c0_i32_0 = arith.constant 0 : i32
    %c0_i32_1 = arith.constant 0 : i32
    return %c0_i32, %c0_i32_0 : i32, i32
  }
  func.func @transform_7(%arg0: i32) -> (i32, i32) {
    %c0_i32 = arith.constant 0 : i32
    %c0_i32_0 = arith.constant 0 : i32
    %c0_i32_1 = arith.constant 0 : i32
    return %c0_i32, %c0_i32_0 : i32, i32
  }
  func.func @transform_8(%arg0: i32) -> (i32, i32) {
    %c0_i32 = arith.constant 0 : i32
    %c0_i32_0 = arith.constant 0 : i32
    %c0_i32_1 = arith.constant 0 : i32
    return %c0_i32, %c0_i32_0 : i32, i32
  }
  func.func @transform_9(%arg0: i32) -> (i32, i32) {
    %c0_i32 = arith.constant 0 : i32
    %c0_i32_0 = arith.constant 0 : i32
    %c0_i32_1 = arith.constant 0 : i32
    return %c0_i32, %c0_i32_0 : i32, i32
  }
  func.func @transform_10(%arg0: i32) -> (i32, i32) {
    %c0_i32 = arith.constant 0 : i32
    %c0_i32_0 = arith.constant 0 : i32
    %c0_i32_1 = arith.constant 0 : i32
    return %c0_i32, %c0_i32_0 : i32, i32
  }
  func.func @transform_11(%arg0: i32) -> (i32, i32) {
    %c0_i32 = arith.constant 0 : i32
    %c0_i32_0 = arith.constant 0 : i32
    return %arg0, %c0_i32 : i32, i32
  }
}

</mosaic_0001>

<llo_original>
// kernel: aiayn_decoder_layer_pallas.1
$region0: #{aiayn_decoder_layer_pallas.1}
  #allocation0 [shape = 'u32[]', space=smem, size = 0x4, offset = 0x4, fixed_abs, tag = 'smem constant byte address 0x4 - core index']
  #allocation1 [shape = 'u32[144,128]{1,0:T(1,128)}', space=vmem, size = 0x12000, scoped, tag = 'internal scratch']
  %s0 = inlined_call_operand.vmem [shape: f32[16,32], index: 0, kind: input, shape index: {}]
  %s1 = inlined_call_operand.vmem [shape: f32[32,32], index: 1, kind: input, shape index: {}]
  %s2 = inlined_call_operand.vmem [shape: f32[32,96], index: 2, kind: input, shape index: {}]
  %s3 = inlined_call_operand.vmem [shape: f32[32,32], index: 3, kind: input, shape index: {}]
  %s4 = inlined_call_operand.vmem [shape: f32[32,32], index: 4, kind: input, shape index: {}]
  %s5 = inlined_call_operand.vmem [shape: f32[32,64], index: 5, kind: input, shape index: {}]
  %s6 = inlined_call_operand.vmem [shape: f32[32,32], index: 6, kind: input, shape index: {}]
  %s7 = inlined_call_operand.vmem [shape: f32[32,64], index: 7, kind: input, shape index: {}]
  %s8 = inlined_call_operand.vmem [shape: f32[1,64], index: 8, kind: input, shape index: {}]
  %s9 = inlined_call_operand.vmem [shape: f32[64,32], index: 9, kind: input, shape index: {}]
  %s10 = inlined_call_operand.vmem [shape: f32[15,32], index: 10, kind: input, shape index: {}]
  %s11 = inlined_call_operand.vmem [shape: f32[16,32], index: 11, kind: output, shape index: {}]
  %s12 = sld [smem:[#allocation0]]
  $region54: #{aiayn_decoder_layer_pallas.1} parent=0
    _
  %s14 = ssub.s32 1, %s12
  %s15 = scalar_select 0, %s14, %s12
  // Predicated region
  $region2: #{aiayn_decoder_layer_pallas.1} parent=0 // pred_check
    _
  $region3: #{aiayn_decoder_layer_pallas.1} parent=0 // pred_check_branch
    %17 = sbr.rel (0) target = $region5
  $region4: #{aiayn_decoder_layer_pallas.1} parent=0 // pred_region
    _
  $region5: #{aiayn_decoder_layer_pallas.1} parent=0 // pred_fallthru
    _
  // Predicated region
  $region6: #{aiayn_decoder_layer_pallas.1} parent=0 // pred_check
    _
  $region7: #{aiayn_decoder_layer_pallas.1} parent=0 // pred_check_branch
    %19 = sbr.rel (0) target = $region9
  $region8: #{aiayn_decoder_layer_pallas.1} parent=0 // pred_region
    _
  $region9: #{aiayn_decoder_layer_pallas.1} parent=0 // pred_fallthru
    _
  // Predicated region
  $region10: #{aiayn_decoder_layer_pallas.1} parent=0 // pred_check
    _
  $region11: #{aiayn_decoder_layer_pallas.1} parent=0 // pred_check_branch
    %21 = sbr.rel (0) target = $region13
  $region12: #{aiayn_decoder_layer_pallas.1} parent=0 // pred_region
    _
  $region13: #{aiayn_decoder_layer_pallas.1} parent=0 // pred_fallthru
    _
  // Predicated region
  $region14: #{aiayn_decoder_layer_pallas.1} parent=0 // pred_check
    _
  $region15: #{aiayn_decoder_layer_pallas.1} parent=0 // pred_check_branch
    %23 = sbr.rel (0) target = $region17
  $region16: #{aiayn_decoder_layer_pallas.1} parent=0 // pred_region
    _
  $region17: #{aiayn_decoder_layer_pallas.1} parent=0 // pred_fallthru
    _
  // Predicated region
  $region18: #{aiayn_decoder_layer_pallas.1} parent=0 // pred_check
    _
  $region19: #{aiayn_decoder_layer_pallas.1} parent=0 // pred_check_branch
    %25 = sbr.rel (0) target = $region21
  $region20: #{aiayn_decoder_layer_pallas.1} parent=0 // pred_region
    _
  $region21: #{aiayn_decoder_layer_pallas.1} parent=0 // pred_fallthru
    _
  // Predicated region
  $region22: #{aiayn_decoder_layer_pallas.1} parent=0 // pred_check
    _
  $region23: #{aiayn_decoder_layer_pallas.1} parent=0 // pred_check_branch
    %27 = sbr.rel (0) target = $region25
  $region24: #{aiayn_decoder_layer_pallas.1} parent=0 // pred_region
    _
  $region25: #{aiayn_decoder_layer_pallas.1} parent=0 // pred_fallthru
    _
  // Predicated region
  $region26: #{aiayn_decoder_layer_pallas.1} parent=0 // pred_check
    _
  $region27: #{aiayn_decoder_layer_pallas.1} parent=0 // pred_check_branch
    %29 = sbr.rel (0) target = $region29
  $region28: #{aiayn_decoder_layer_pallas.1} parent=0 // pred_region
    _
  $region29: #{aiayn_decoder_layer_pallas.1} parent=0 // pred_fallthru
    _
  // Predicated region
  $region30: #{aiayn_decoder_layer_pallas.1} parent=0 // pred_check
    _
  $region31: #{aiayn_decoder_layer_pallas.1} parent=0 // pred_check_branch
    %31 = sbr.rel (0) target = $region33
  $region32: #{aiayn_decoder_layer_pallas.1} parent=0 // pred_region
    _
  $region33: #{aiayn_decoder_layer_pallas.1} parent=0 // pred_fallthru
    _
  // Predicated region
  $region34: #{aiayn_decoder_layer_pallas.1} parent=0 // pred_check
    _
  $region35: #{aiayn_decoder_layer_pallas.1} parent=0 // pred_check_branch
    %33 = sbr.rel (0) target = $region37
  $region36: #{aiayn_decoder_layer_pallas.1} parent=0 // pred_region
    _
  $region37: #{aiayn_decoder_layer_pallas.1} parent=0 // pred_fallthru
    _
  // Predicated region
  $region38: #{aiayn_decoder_layer_pallas.1} parent=0 // pred_check
    _
  $region39: #{aiayn_decoder_layer_pallas.1} parent=0 // pred_check_branch
    %35 = sbr.rel (0) target = $region41
  $region40: #{aiayn_decoder_layer_pallas.1} parent=0 // pred_region
    _
  $region41: #{aiayn_decoder_layer_pallas.1} parent=0 // pred_fallthru
    _
  // Predicated region
  $region42: #{aiayn_decoder_layer_pallas.1} parent=0 // pred_check
    _
  $region43: #{aiayn_decoder_layer_pallas.1} parent=0 // pred_check_branch
    %37 = sbr.rel (0) target = $region45
  $region44: #{aiayn_decoder_layer_pallas.1} parent=0 // pred_region
    _
  $region45: #{aiayn_decoder_layer_pallas.1} parent=0 // pred_fallthru
    _
  %v38 = vld [vmem:[%s10] sm:$0xff]
  %v39 = vld [vmem:[%s10 + $0x8] sm:$0x7f]
  %v40 = vld [vmem:[%s0] sm:$0xff]
  %v41 = vld [vmem:[%s0 + $0x8] sm:$0xff]
  %v42 = vld [vmem:[%s1] sm:$0xff]
  %v43 = vld [vmem:[%s1 + $0x8] sm:$0xff]
  %v44 = vld [vmem:[%s1 + $0x10] sm:$0xff]
  %v45 = vld [vmem:[%s1 + $0x18] sm:$0xff]
  %v46 = vld [vmem:[%s2] sm:$0xff]
  %v47 = vld [vmem:[%s2 + $0x8] sm:$0xff]
  %v48 = vld [vmem:[%s2 + $0x10] sm:$0xff]
  %v49 = vld [vmem:[%s2 + $0x18] sm:$0xff]
  %vm50 = vcmask 261120
  %v52 = vsel %vm50, %v40, 0
  %v55 = vsel %vm50, %v41, 0
  %57 = vmatprep.subr.mxu0 0.0
  %58 = vmatpush1.msra.mxu0 %v46
  %59 = vmatprep.subr.mxu0 0.0
  %60 = vmatpush1.msra.mxu0 %v47
  %61 = vmatprep.subr.mxu0 0.0
  %62 = vmatpush1.msra.mxu0 %v48
  %63 = vmatprep.subr.mxu0 0.0
  %64 = vmatpush1.msra.mxu0 %v49
  %65 = vmatprep.subr.mxu0 0.0
  %66 = vmatpush1.msra.mxu0 0.0
  %67 = vmatprep.subr.mxu0 0.0
  %68 = vmatpush1.msra.mxu0 0.0
  %69 = vmatprep.subr.mxu0 0.0
  %70 = vmatpush1.msra.mxu0 0.0
  %71 = vmatprep.subr.mxu0 0.0
  %72 = vmatpush1.msra.mxu0 0.0
  %73 = vmatprep.subr.mxu0 0.0
  %74 = vmatpush1.msra.mxu0 0.0
  %75 = vmatprep.subr.mxu0 0.0
  %76 = vmatpush1.msra.mxu0 0.0
  %77 = vmatprep.subr.mxu0 0.0
  %78 = vmatpush1.msra.mxu0 0.0
  %79 = vmatprep.subr.mxu0 0.0
  %80 = vmatpush1.msra.mxu0 0.0
  %81 = vmatprep.subr.mxu0 0.0
  %82 = vmatpush1.msra.mxu0 0.0
  %83 = vmatprep.subr.mxu0 0.0
  %84 = vmatpush1.msra.mxu0 0.0
  %85 = vmatprep.subr.mxu0 0.0
  %86 = vmatpush1.msra.mxu0 0.0
  %87 = vmatprep.subr.mxu0 0.0
  %88 = vmatpush1.msra.mxu0 0.0
  %89 = vmatprep.subr.mxu0 0.0
  %90 = vmatpush1.msra.mxu0 0.0
  %91 = vmatprep.subr.mxu0 0.0
  %92 = vmatpush1.msra.mxu0 0.0
  %93 = vmatprep.subr.mxu0 0.0
  %94 = vmatpush1.msra.mxu0 0.0
  %95 = vmatprep.subr.mxu0 0.0
  %96 = vmatpush1.msra.mxu0 0.0
  %97 = vmatprep.subr.mxu0 0.0
  %98 = vmatpush1.msra.mxu0 0.0
  %99 = vmatprep.subr.mxu0 0.0
  %100 = vmatpush1.msra.mxu0 0.0
  %101 = vmatprep.subr.mxu0 0.0
  %102 = vmatpush1.msra.mxu0 0.0
  %103 = vmatprep.subr.mxu0 0.0
  %104 = vmatpush1.msra.mxu0 0.0
  %105 = vmatprep.subr.mxu0 0.0
  %106 = vmatpush1.msra.mxu0 0.0
  %107 = vmatprep.subr.mxu0 0.0
  %108 = vmatpush1.msra.mxu0 0.0
  %109 = vmatprep.subr.mxu0 0.0
  %110 = vmatpush1.msra.mxu0 0.0
  %111 = vmatprep.subr.mxu0 0.0
  %112 = vmatpush1.msra.mxu0 0.0
  %113 = vmatprep.subr.mxu0 0.0
  %114 = vmatpush1.msra.mxu0 0.0
  %115 = vmatprep.subr.mxu0 0.0
  %116 = vmatpush1.msra.mxu0 0.0
  %117 = vmatprep.subr.mxu0 0.0
  %118 = vmatpush1.msra.mxu0 0.0
  %119 = vmatprep.subr.mxu0 0.0
  %120 = vmatpush1.msra.mxu0 0.0
  %121 = vmatprep.mubr.f32.mxu0 0.0
  %122 = vmatmul.mubr.f32.gmra.mrb[0].mxu0 %v52
  %v123 = vpop.f32.mrb[0].mxu0
  %v124 = vadd.f32 0.0, %v123
  %v125 = vpop.f32.mrb[0].mxu0
  %126 = vmatprep.mubr.f32.mxu0 0.0
  %127 = vmatmul.mubr.f32.gmra.mrb[0].mxu0 %v55
  %v128 = vpop.f32.mrb[0].mxu0
  %v129 = vadd.f32 0.0, %v128
  %v130 = vpop.f32.mrb[0].mxu0
  %131 = vdwg.mxu0
  %v132 = vlaneseq
  %v133 = vshrl.u32 %v132, 7
  %v134 = vsub.s32 0, %v133
  %v135 = vrot.slane %v38, %v134
  %v136 = vadd.f32 %v124, %v135
  %v137 = vadd.f32 %v129, %v135
  %v138 = vlaneseq
  %v139 = vshrl.u32 %v138, 7
  %v140 = vsub.s32 1, %v139
  %v141 = vrot.slane %v38, %v140
  %143 = vrot.lane.b32.xlu0 %v141, 32
  %v144 = vpop.permute.xlu0 %143
  %v146 = vadd.f32 %v124, %v144
  %v147 = vadd.f32 %v129, %v144
  %v148 = vlaneseq
  %v149 = vshrl.u32 %v148, 7
  %v150 = vsub.s32 2, %v149
  %v151 = vrot.slane %v38, %v150
  %153 = vrot.lane.b32.xlu0 %v151, 64
  %v154 = vpop.permute.xlu0 %153
  %v156 = vadd.f32 %v124, %v154
  %v157 = vadd.f32 %v129, %v154
  %160 = vrot.lane.b32.xlu0 %v136, 120
  %v161 = vpop.permute.xlu0 %160
  %162 = vrot.lane.b32.xlu0 %v137, 120
  %v163 = vpop.permute.xlu0 %162
  %164 = vrot.lane.b32.xlu0 %v136, 112
  %v165 = vpop.permute.xlu0 %164
  %166 = vrot.lane.b32.xlu0 %v137, 112
  %v167 = vpop.permute.xlu0 %166
  %168 = vrot.lane.b32.xlu0 %v136, 104
  %v169 = vpop.permute.xlu0 %168
  %170 = vrot.lane.b32.xlu0 %v137, 104
  %v171 = vpop.permute.xlu0 %170
  %174 = vrot.lane.b32.xlu0 %v146, 120
  %v175 = vpop.permute.xlu0 %174
  %176 = vrot.lane.b32.xlu0 %v147, 120
  %v177 = vpop.permute.xlu0 %176
  %178 = vrot.lane.b32.xlu0 %v146, 112
  %v179 = vpop.permute.xlu0 %178
  %180 = vrot.lane.b32.xlu0 %v147, 112
  %v181 = vpop.permute.xlu0 %180
  %182 = vrot.lane.b32.xlu0 %v146, 104
  %v183 = vpop.permute.xlu0 %182
  %184 = vrot.lane.b32.xlu0 %v147, 104
  %v185 = vpop.permute.xlu0 %184
  %188 = vrot.lane.b32.xlu0 %v156, 120
  %v189 = vpop.permute.xlu0 %188
  %190 = vrot.lane.b32.xlu0 %v157, 120
  %v191 = vpop.permute.xlu0 %190
  %192 = vrot.lane.b32.xlu0 %v156, 112
  %v193 = vpop.permute.xlu0 %192
  %194 = vrot.lane.b32.xlu0 %v157, 112
  %v195 = vpop.permute.xlu0 %194
  %196 = vrot.lane.b32.xlu0 %v156, 104
  %v197 = vpop.permute.xlu0 %196
  %198 = vrot.lane.b32.xlu0 %v157, 104
  %v199 = vpop.permute.xlu0 %198
  %200 = vrot.lane.b32.xlu0 %v146, 96
  %v201 = vpop.permute.xlu0 %200
  %vm202 = vcmask 64512
  %v203 = vsel %vm202, %v136, 0
  %v205 = vsel %vm202, %v201, 0
  %207 = vmatprep.subr.mxu0 0.0
  %208 = vmatpush1.xpose.msra.mxu0 %v205
  %209 = vmatprep.subr.mxu0 0.0
  %210 = vmatpush1.xpose.msra.mxu0 0.0
  %211 = vmatprep.subr.mxu0 0.0
  %212 = vmatpush1.xpose.msra.mxu0 0.0
  %213 = vmatprep.subr.mxu0 0.0
  %214 = vmatpush1.xpose.msra.mxu0 0.0
  %215 = vmatprep.subr.mxu0 0.0
  %216 = vmatpush1.xpose.msra.mxu0 0.0
  %217 = vmatprep.subr.mxu0 0.0
  %218 = vmatpush1.xpose.msra.mxu0 0.0
  %219 = vmatprep.subr.mxu0 0.0
  %220 = vmatpush1.xpose.msra.mxu0 0.0
  %221 = vmatprep.subr.mxu0 0.0
  %222 = vmatpush1.xpose.msra.mxu0 0.0
  %223 = vmatprep.subr.mxu0 0.0
  %224 = vmatpush1.xpose.msra.mxu0 0.0
  %225 = vmatprep.subr.mxu0 0.0
  %226 = vmatpush1.xpose.msra.mxu0 0.0
  %227 = vmatprep.subr.mxu0 0.0
  %228 = vmatpush1.xpose.msra.mxu0 0.0
  %229 = vmatprep.subr.mxu0 0.0
  %230 = vmatpush1.xpose.msra.mxu0 0.0
  %231 = vmatprep.subr.mxu0 0.0
  %232 = vmatpush1.xpose.msra.mxu0 0.0
  %233 = vmatprep.subr.mxu0 0.0
  %234 = vmatpush1.xpose.msra.mxu0 0.0
  %235 = vmatprep.subr.mxu0 0.0
  %236 = vmatpush1.xpose.msra.mxu0 0.0
  %237 = vmatprep.subr.mxu0 0.0
  %238 = vmatpush1.xpose.msra.mxu0 0.0
  %239 = vmatprep.subr.mxu0 0.0
  %240 = vmatpush1.xpose.msra.mxu0 0.0
  %241 = vmatprep.subr.mxu0 0.0
  %242 = vmatpush1.xpose.msra.mxu0 0.0
  %243 = vmatprep.subr.mxu0 0.0
  %244 = vmatpush1.xpose.msra.mxu0 0.0
  %245 = vmatprep.subr.mxu0 0.0
  %246 = vmatpush1.xpose.msra.mxu0 0.0
  %247 = vmatprep.subr.mxu0 0.0
  %248 = vmatpush1.xpose.msra.mxu0 0.0
  %249 = vmatprep.subr.mxu0 0.0
  %250 = vmatpush1.xpose.msra.mxu0 0.0
  %251 = vmatprep.subr.mxu0 0.0
  %252 = vmatpush1.xpose.msra.mxu0 0.0
  %253 = vmatprep.subr.mxu0 0.0
  %254 = vmatpush1.xpose.msra.mxu0 0.0
  %255 = vmatprep.subr.mxu0 0.0
  %256 = vmatpush1.xpose.msra.mxu0 0.0
  %257 = vmatprep.subr.mxu0 0.0
  %258 = vmatpush1.xpose.msra.mxu0 0.0
  %259 = vmatprep.subr.mxu0 0.0
  %260 = vmatpush1.xpose.msra.mxu0 0.0
  %261 = vmatprep.subr.mxu0 0.0
  %262 = vmatpush1.xpose.msra.mxu0 0.0
  %263 = vmatprep.subr.mxu0 0.0
  %264 = vmatpush1.xpose.msra.mxu0 0.0
  %265 = vmatprep.subr.mxu0 0.0
  %266 = vmatpush1.xpose.msra.mxu0 0.0
  %267 = vmatprep.subr.mxu0 0.0
  %268 = vmatpush1.xpose.msra.mxu0 0.0
  %269 = vmatprep.subr.mxu0 0.0
  %270 = vmatpush1.xpose.msra.mxu0 0.0
  %271 = vmatprep.mubr.f32.mxu0 0.0
  %272 = vmatmul.mubr.f32.gmra.mrb[0].mxu0 %v203
  %v273 = vpop.f32.mrb[0].mxu0
  %v274 = vadd.f32 0.0, %v273
  %v275 = vpop.f32.mrb[0].mxu0
  %276 = vdwg.mxu0
  %277 = vrot.lane.b32.xlu0 %v147, 96
  %v278 = vpop.permute.xlu0 %277
  %v279 = vsel %vm202, %v137, 0
  %v281 = vsel %vm202, %v278, 0
  %283 = vmatprep.subr.mxu0 0.0
  %284 = vmatpush1.xpose.msra.mxu0 %v281
  %285 = vmatprep.subr.mxu0 0.0
  %286 = vmatpush1.xpose.msra.mxu0 0.0
  %287 = vmatprep.subr.mxu0 0.0
  %288 = vmatpush1.xpose.msra.mxu0 0.0
  %289 = vmatprep.subr.mxu0 0.0
  %290 = vmatpush1.xpose.msra.mxu0 0.0
  %291 = vmatprep.subr.mxu0 0.0
  %292 = vmatpush1.xpose.msra.mxu0 0.0
  %293 = vmatprep.subr.mxu0 0.0
  %294 = vmatpush1.xpose.msra.mxu0 0.0
  %295 = vmatprep.subr.mxu0 0.0
  %296 = vmatpush1.xpose.msra.mxu0 0.0
  %297 = vmatprep.subr.mxu0 0.0
  %298 = vmatpush1.xpose.msra.mxu0 0.0
  %299 = vmatprep.subr.mxu0 0.0
  %300 = vmatpush1.xpose.msra.mxu0 0.0
  %301 = vmatprep.subr.mxu0 0.0
  %302 = vmatpush1.xpose.msra.mxu0 0.0
  %303 = vmatprep.subr.mxu0 0.0
  %304 = vmatpush1.xpose.msra.mxu0 0.0
  %305 = vmatprep.subr.mxu0 0.0
  %306 = vmatpush1.xpose.msra.mxu0 0.0
  %307 = vmatprep.subr.mxu0 0.0
  %308 = vmatpush1.xpose.msra.mxu0 0.0
  %309 = vmatprep.subr.mxu0 0.0
  %310 = vmatpush1.xpose.msra.mxu0 0.0
  %311 = vmatprep.subr.mxu0 0.0
  %312 = vmatpush1.xpose.msra.mxu0 0.0
  %313 = vmatprep.subr.mxu0 0.0
  %314 = vmatpush1.xpose.msra.mxu0 0.0
  %315 = vmatprep.subr.mxu0 0.0
  %316 = vmatpush1.xpose.msra.mxu0 0.0
  %317 = vmatprep.subr.mxu0 0.0
  %318 = vmatpush1.xpose.msra.mxu0 0.0
  %319 = vmatprep.subr.mxu0 0.0
  %320 = vmatpush1.xpose.msra.mxu0 0.0
  %321 = vmatprep.subr.mxu0 0.0
  %322 = vmatpush1.xpose.msra.mxu0 0.0
  %323 = vmatprep.subr.mxu0 0.0
  %324 = vmatpush1.xpose.msra.mxu0 0.0
  %325 = vmatprep.subr.mxu0 0.0
  %326 = vmatpush1.xpose.msra.mxu0 0.0
  %327 = vmatprep.subr.mxu0 0.0
  %328 = vmatpush1.xpose.msra.mxu0 0.0
  %329 = vmatprep.subr.mxu0 0.0
  %330 = vmatpush1.xpose.msra.mxu0 0.0
  %331 = vmatprep.subr.mxu0 0.0
  %332 = vmatpush1.xpose.msra.mxu0 0.0
  %333 = vmatprep.subr.mxu0 0.0
  %334 = vmatpush1.xpose.msra.mxu0 0.0
  %335 = vmatprep.subr.mxu0 0.0
  %336 = vmatpush1.xpose.msra.mxu0 0.0
  %337 = vmatprep.subr.mxu0 0.0
  %338 = vmatpush1.xpose.msra.mxu0 0.0
  %339 = vmatprep.subr.mxu0 0.0
  %340 = vmatpush1.xpose.msra.mxu0 0.0
  %341 = vmatprep.subr.mxu0 0.0
  %342 = vmatpush1.xpose.msra.mxu0 0.0
  %343 = vmatprep.subr.mxu0 0.0
  %344 = vmatpush1.xpose.msra.mxu0 0.0
  %345 = vmatprep.subr.mxu0 0.0
  %346 = vmatpush1.xpose.msra.mxu0 0.0
  %347 = vmatprep.mubr.f32.mxu0 0.0
  %348 = vmatmul.mubr.f32.gmra.mrb[0].mxu0 %v279
  %v349 = vpop.f32.mrb[0].mxu0
  %v350 = vadd.f32 0.0, %v349
  %v351 = vpop.f32.mrb[0].mxu0
  %352 = vdwg.mxu0
  %353 = vrot.lane.b32.xlu0 %v175, 96
  %v354 = vpop.permute.xlu0 %353
  %v355 = vsel %vm202, %v161, 0
  %v357 = vsel %vm202, %v354, 0
  %359 = vmatprep.subr.mxu0 0.0
  %360 = vmatpush1.xpose.msra.mxu0 %v357
  %361 = vmatprep.subr.mxu0 0.0
  %362 = vmatpush1.xpose.msra.mxu0 0.0
  %363 = vmatprep.subr.mxu0 0.0
  %364 = vmatpush1.xpose.msra.mxu0 0.0
  %365 = vmatprep.subr.mxu0 0.0
  %366 = vmatpush1.xpose.msra.mxu0 0.0
  %367 = vmatprep.subr.mxu0 0.0
  %368 = vmatpush1.xpose.msra.mxu0 0.0
  %369 = vmatprep.subr.mxu0 0.0
  %370 = vmatpush1.xpose.msra.mxu0 0.0
  %371 = vmatprep.subr.mxu0 0.0
  %372 = vmatpush1.xpose.msra.mxu0 0.0
  %373 = vmatprep.subr.mxu0 0.0
  %374 = vmatpush1.xpose.msra.mxu0 0.0
  %375 = vmatprep.subr.mxu0 0.0
  %376 = vmatpush1.xpose.msra.mxu0 0.0
  %377 = vmatprep.subr.mxu0 0.0
  %378 = vmatpush1.xpose.msra.mxu0 0.0
  %379 = vmatprep.subr.mxu0 0.0
  %380 = vmatpush1.xpose.msra.mxu0 0.0
  %381 = vmatprep.subr.mxu0 0.0
  %382 = vmatpush1.xpose.msra.mxu0 0.0
  %383 = vmatprep.subr.mxu0 0.0
  %384 = vmatpush1.xpose.msra.mxu0 0.0
  %385 = vmatprep.subr.mxu0 0.0
  %386 = vmatpush1.xpose.msra.mxu0 0.0
  %387 = vmatprep.subr.mxu0 0.0
  %388 = vmatpush1.xpose.msra.mxu0 0.0
  %389 = vmatprep.subr.mxu0 0.0
  %390 = vmatpush1.xpose.msra.mxu0 0.0
  %391 = vmatprep.subr.mxu0 0.0
  %392 = vmatpush1.xpose.msra.mxu0 0.0
  %393 = vmatprep.subr.mxu0 0.0
  %394 = vmatpush1.xpose.msra.mxu0 0.0
  %395 = vmatprep.subr.mxu0 0.0
  %396 = vmatpush1.xpose.msra.mxu0 0.0
  %397 = vmatprep.subr.mxu0 0.0
  %398 = vmatpush1.xpose.msra.mxu0 0.0
  %399 = vmatprep.subr.mxu0 0.0
  %400 = vmatpush1.xpose.msra.mxu0 0.0
  %401 = vmatprep.subr.mxu0 0.0
  %402 = vmatpush1.xpose.msra.mxu0 0.0
  %403 = vmatprep.subr.mxu0 0.0
  %404 = vmatpush1.xpose.msra.mxu0 0.0
  %405 = vmatprep.subr.mxu0 0.0
  %406 = vmatpush1.xpose.msra.mxu0 0.0
  %407 = vmatprep.subr.mxu0 0.0
  %408 = vmatpush1.xpose.msra.mxu0 0.0
  %409 = vmatprep.subr.mxu0 0.0
  %410 = vmatpush1.xpose.msra.mxu0 0.0
  %411 = vmatprep.subr.mxu0 0.0
  %412 = vmatpush1.xpose.msra.mxu0 0.0
  %413 = vmatprep.subr.mxu0 0.0
  %414 = vmatpush1.xpose.msra.mxu0 0.0
  %415 = vmatprep.subr.mxu0 0.0
  %416 = vmatpush1.xpose.msra.mxu0 0.0
  %417 = vmatprep.subr.mxu0 0.0
  %418 = vmatpush1.xpose.msra.mxu0 0.0
  %419 = vmatprep.subr.mxu0 0.0
  %420 = vmatpush1.xpose.msra.mxu0 0.0
  %421 = vmatprep.subr.mxu0 0.0
  %422 = vmatpush1.xpose.msra.mxu0 0.0
  %423 = vmatprep.mubr.f32.mxu0 0.0
  %424 = vmatmul.mubr.f32.gmra.mrb[0].mxu0 %v355
  %v425 = vpop.f32.mrb[0].mxu0
  %v426 = vadd.f32 0.0, %v425
  %v427 = vpop.f32.mrb[0].mxu0
  %428 = vdwg.mxu0
  %429 = vrot.lane.b32.xlu0 %v177, 96
  %v430 = vpop.permute.xlu0 %429
  %v431 = vsel %vm202, %v163, 0
  %v433 = vsel %vm202, %v430, 0
  %435 = vmatprep.subr.mxu0 0.0
  %436 = vmatpush1.xpose.msra.mxu0 %v433
  %437 = vmatprep.subr.mxu0 0.0
  %438 = vmatpush1.xpose.msra.mxu0 0.0
  %439 = vmatprep.subr.mxu0 0.0
  %440 = vmatpush1.xpose.msra.mxu0 0.0
  %441 = vmatprep.subr.mxu0 0.0
  %442 = vmatpush1.xpose.msra.mxu0 0.0
  %443 = vmatprep.subr.mxu0 0.0
  %444 = vmatpush1.xpose.msra.mxu0 0.0
  %445 = vmatprep.subr.mxu0 0.0
  %446 = vmatpush1.xpose.msra.mxu0 0.0
  %447 = vmatprep.subr.mxu0 0.0
  %448 = vmatpush1.xpose.msra.mxu0 0.0
  %449 = vmatprep.subr.mxu0 0.0
  %450 = vmatpush1.xpose.msra.mxu0 0.0
  %451 = vmatprep.subr.mxu0 0.0
  %452 = vmatpush1.xpose.msra.mxu0 0.0
  %453 = vmatprep.subr.mxu0 0.0
  %454 = vmatpush1.xpose.msra.mxu0 0.0
  %455 = vmatprep.subr.mxu0 0.0
  %456 = vmatpush1.xpose.msra.mxu0 0.0
  %457 = vmatprep.subr.mxu0 0.0
  %458 = vmatpush1.xpose.msra.mxu0 0.0
  %459 = vmatprep.subr.mxu0 0.0
  %460 = vmatpush1.xpose.msra.mxu0 0.0
  %461 = vmatprep.subr.mxu0 0.0
  %462 = vmatpush1.xpose.msra.mxu0 0.0
  %463 = vmatprep.subr.mxu0 0.0
  %464 = vmatpush1.xpose.msra.mxu0 0.0
  %465 = vmatprep.subr.mxu0 0.0
  %466 = vmatpush1.xpose.msra.mxu0 0.0
  %467 = vmatprep.subr.mxu0 0.0
  %468 = vmatpush1.xpose.msra.mxu0 0.0
  %469 = vmatprep.subr.mxu0 0.0
  %470 = vmatpush1.xpose.msra.mxu0 0.0
  %471 = vmatprep.subr.mxu0 0.0
  %472 = vmatpush1.xpose.msra.mxu0 0.0
  %473 = vmatprep.subr.mxu0 0.0
  %474 = vmatpush1.xpose.msra.mxu0 0.0
  %475 = vmatprep.subr.mxu0 0.0
  %476 = vmatpush1.xpose.msra.mxu0 0.0
  %477 = vmatprep.subr.mxu0 0.0
  %478 = vmatpush1.xpose.msra.mxu0 0.0
  %479 = vmatprep.subr.mxu0 0.0
  %480 = vmatpush1.xpose.msra.mxu0 0.0
  %481 = vmatprep.subr.mxu0 0.0
  %482 = vmatpush1.xpose.msra.mxu0 0.0
  %483 = vmatprep.subr.mxu0 0.0
  %484 = vmatpush1.xpose.msra.mxu0 0.0
  %485 = vmatprep.subr.mxu0 0.0
  %486 = vmatpush1.xpose.msra.mxu0 0.0
  %487 = vmatprep.subr.mxu0 0.0
  %488 = vmatpush1.xpose.msra.mxu0 0.0
  %489 = vmatprep.subr.mxu0 0.0
  %490 = vmatpush1.xpose.msra.mxu0 0.0
  %491 = vmatprep.subr.mxu0 0.0
  %492 = vmatpush1.xpose.msra.mxu0 0.0
  %493 = vmatprep.subr.mxu0 0.0
  %494 = vmatpush1.xpose.msra.mxu0 0.0
  %495 = vmatprep.subr.mxu0 0.0
  %496 = vmatpush1.xpose.msra.mxu0 0.0
  %497 = vmatprep.subr.mxu0 0.0
  %498 = vmatpush1.xpose.msra.mxu0 0.0
  %499 = vmatprep.mubr.f32.mxu0 0.0
  %500 = vmatmul.mubr.f32.gmra.mrb[0].mxu0 %v431
  %v501 = vpop.f32.mrb[0].mxu0
  %v502 = vadd.f32 0.0, %v501
  %v503 = vpop.f32.mrb[0].mxu0
  %504 = vdwg.mxu0
  %505 = vrot.lane.b32.xlu0 %v179, 96
  %v506 = vpop.permute.xlu0 %505
  %v507 = vsel %vm202, %v165, 0
  %v509 = vsel %vm202, %v506, 0
  %511 = vmatprep.subr.mxu0 0.0
  %512 = vmatpush1.xpose.msra.mxu0 %v509
  %513 = vmatprep.subr.mxu0 0.0
  %514 = vmatpush1.xpose.msra.mxu0 0.0
  %515 = vmatprep.subr.mxu0 0.0
  %516 = vmatpush1.xpose.msra.mxu0 0.0
  %517 = vmatprep.subr.mxu0 0.0
  %518 = vmatpush1.xpose.msra.mxu0 0.0
  %519 = vmatprep.subr.mxu0 0.0
  %520 = vmatpush1.xpose.msra.mxu0 0.0
  %521 = vmatprep.subr.mxu0 0.0
  %522 = vmatpush1.xpose.msra.mxu0 0.0
  %523 = vmatprep.subr.mxu0 0.0
  %524 = vmatpush1.xpose.msra.mxu0 0.0
  %525 = vmatprep.subr.mxu0 0.0
  %526 = vmatpush1.xpose.msra.mxu0 0.0
  %527 = vmatprep.subr.mxu0 0.0
  %528 = vmatpush1.xpose.msra.mxu0 0.0
  %529 = vmatprep.subr.mxu0 0.0
  %530 = vmatpush1.xpose.msra.mxu0 0.0
  %531 = vmatprep.subr.mxu0 0.0
  %532 = vmatpush1.xpose.msra.mxu0 0.0
  %533 = vmatprep.subr.mxu0 0.0
  %534 = vmatpush1.xpose.msra.mxu0 0.0
  %535 = vmatprep.subr.mxu0 0.0
  %536 = vmatpush1.xpose.msra.mxu0 0.0
  %537 = vmatprep.subr.mxu0 0.0
  %538 = vmatpush1.xpose.msra.mxu0 0.0
  %539 = vmatprep.subr.mxu0 0.0
  %540 = vmatpush1.xpose.msra.mxu0 0.0
  %541 = vmatprep.subr.mxu0 0.0
  %542 = vmatpush1.xpose.msra.mxu0 0.0
  %543 = vmatprep.subr.mxu0 0.0
  %544 = vmatpush1.xpose.msra.mxu0 0.0
  %545 = vmatprep.subr.mxu0 0.0
  %546 = vmatpush1.xpose.msra.mxu0 0.0
  %547 = vmatprep.subr.mxu0 0.0
  %548 = vmatpush1.xpose.msra.mxu0 0.0
  %549 = vmatprep.subr.mxu0 0.0
  %550 = vmatpush1.xpose.msra.mxu0 0.0
  %551 = vmatprep.subr.mxu0 0.0
  %552 = vmatpush1.xpose.msra.mxu0 0.0
  %553 = vmatprep.subr.mxu0 0.0
  %554 = vmatpush1.xpose.msra.mxu0 0.0
  %555 = vmatprep.subr.mxu0 0.0
  %556 = vmatpush1.xpose.msra.mxu0 0.0
  %557 = vmatprep.subr.mxu0 0.0
  %558 = vmatpush1.xpose.msra.mxu0 0.0
  %559 = vmatprep.subr.mxu0 0.0
  %560 = vmatpush1.xpose.msra.mxu0 0.0
  %561 = vmatprep.subr.mxu0 0.0
  %562 = vmatpush1.xpose.msra.mxu0 0.0
  %563 = vmatprep.subr.mxu0 0.0
  %564 = vmatpush1.xpose.msra.mxu0 0.0
  %565 = vmatprep.subr.mxu0 0.0
  %566 = vmatpush1.xpose.msra.mxu0 0.0
  %567 = vmatprep.subr.mxu0 0.0
  %568 = vmatpush1.xpose.msra.mxu0 0.0
  %569 = vmatprep.subr.mxu0 0.0
  %570 = vmatpush1.xpose.msra.mxu0 0.0
  %571 = vmatprep.subr.mxu0 0.0
  %572 = vmatpush1.xpose.msra.mxu0 0.0
  %573 = vmatprep.subr.mxu0 0.0
  %574 = vmatpush1.xpose.msra.mxu0 0.0
  %575 = vmatprep.mubr.f32.mxu0 0.0
  %576 = vmatmul.mubr.f32.gmra.mrb[0].mxu0 %v507
  %v577 = vpop.f32.mrb[0].mxu0
  %v578 = vadd.f32 0.0, %v577
  %v579 = vpop.f32.mrb[0].mxu0
  %580 = vdwg.mxu0
  %581 = vrot.lane.b32.xlu0 %v181, 96
  %v582 = vpop.permute.xlu0 %581
  %v583 = vsel %vm202, %v167, 0
  %v585 = vsel %vm202, %v582, 0
  %587 = vmatprep.subr.mxu0 0.0
  %588 = vmatpush1.xpose.msra.mxu0 %v585
  %589 = vmatprep.subr.mxu0 0.0
  %590 = vmatpush1.xpose.msra.mxu0 0.0
  %591 = vmatprep.subr.mxu0 0.0
  %592 = vmatpush1.xpose.msra.mxu0 0.0
  %593 = vmatprep.subr.mxu0 0.0
  %594 = vmatpush1.xpose.msra.mxu0 0.0
  %595 = vmatprep.subr.mxu0 0.0
  %596 = vmatpush1.xpose.msra.mxu0 0.0
  %597 = vmatprep.subr.mxu0 0.0
  %598 = vmatpush1.xpose.msra.mxu0 0.0
  %599 = vmatprep.subr.mxu0 0.0
  %600 = vmatpush1.xpose.msra.mxu0 0.0
  %601 = vmatprep.subr.mxu0 0.0
  %602 = vmatpush1.xpose.msra.mxu0 0.0
  %603 = vmatprep.subr.mxu0 0.0
  %604 = vmatpush1.xpose.msra.mxu0 0.0
  %605 = vmatprep.subr.mxu0 0.0
  %606 = vmatpush1.xpose.msra.mxu0 0.0
  %607 = vmatprep.subr.mxu0 0.0
  %608 = vmatpush1.xpose.msra.mxu0 0.0
  %609 = vmatprep.subr.mxu0 0.0
  %610 = vmatpush1.xpose.msra.mxu0 0.0
  %611 = vmatprep.subr.mxu0 0.0
  %612 = vmatpush1.xpose.msra.mxu0 0.0
  %613 = vmatprep.subr.mxu0 0.0
  %614 = vmatpush1.xpose.msra.mxu0 0.0
  %615 = vmatprep.subr.mxu0 0.0
  %616 = vmatpush1.xpose.msra.mxu0 0.0
  %617 = vmatprep.subr.mxu0 0.0
  %618 = vmatpush1.xpose.msra.mxu0 0.0
  %619 = vmatprep.subr.mxu0 0.0
  %620 = vmatpush1.xpose.msra.mxu0 0.0
  %621 = vmatprep.subr.mxu0 0.0
  %622 = vmatpush1.xpose.msra.mxu0 0.0
  %623 = vmatprep.subr.mxu0 0.0
  %624 = vmatpush1.xpose.msra.mxu0 0.0
  %625 = vmatprep.subr.mxu0 0.0
  %626 = vmatpush1.xpose.msra.mxu0 0.0
  %627 = vmatprep.subr.mxu0 0.0
  %628 = vmatpush1.xpose.msra.mxu0 0.0
  %629 = vmatprep.subr.mxu0 0.0
  %630 = vmatpush1.xpose.msra.mxu0 0.0
  %631 = vmatprep.subr.mxu0 0.0
  %632 = vmatpush1.xpose.msra.mxu0 0.0
  %633 = vmatprep.subr.mxu0 0.0
  %634 = vmatpush1.xpose.msra.mxu0 0.0
  %635 = vmatprep.subr.mxu0 0.0
  %636 = vmatpush1.xpose.msra.mxu0 0.0
  %637 = vmatprep.subr.mxu0 0.0
  %638 = vmatpush1.xpose.msra.mxu0 0.0
  %639 = vmatprep.subr.mxu0 0.0
  %640 = vmatpush1.xpose.msra.mxu0 0.0
  %641 = vmatprep.subr.mxu0 0.0
  %642 = vmatpush1.xpose.msra.mxu0 0.0
  %643 = vmatprep.subr.mxu0 0.0
  %644 = vmatpush1.xpose.msra.mxu0 0.0
  %645 = vmatprep.subr.mxu0 0.0
  %646 = vmatpush1.xpose.msra.mxu0 0.0
  %647 = vmatprep.subr.mxu0 0.0
  %648 = vmatpush1.xpose.msra.mxu0 0.0
  %649 = vmatprep.subr.mxu0 0.0
  %650 = vmatpush1.xpose.msra.mxu0 0.0
  %651 = vmatprep.mubr.f32.mxu0 0.0
  %652 = vmatmul.mubr.f32.gmra.mrb[0].mxu0 %v583
  %v653 = vpop.f32.mrb[0].mxu0
  %v654 = vadd.f32 0.0, %v653
  %v655 = vpop.f32.mrb[0].mxu0
  %656 = vdwg.mxu0
  %657 = vrot.lane.b32.xlu0 %v183, 96
  %v658 = vpop.permute.xlu0 %657
  %v659 = vsel %vm202, %v169, 0
  %v661 = vsel %vm202, %v658, 0
  %663 = vmatprep.subr.mxu0 0.0
  %664 = vmatpush1.xpose.msra.mxu0 %v661
  %665 = vmatprep.subr.mxu0 0.0
  %666 = vmatpush1.xpose.msra.mxu0 0.0
  %667 = vmatprep.subr.mxu0 0.0
  %668 = vmatpush1.xpose.msra.mxu0 0.0
  %669 = vmatprep.subr.mxu0 0.0
  %670 = vmatpush1.xpose.msra.mxu0 0.0
  %671 = vmatprep.subr.mxu0 0.0
  %672 = vmatpush1.xpose.msra.mxu0 0.0
  %673 = vmatprep.subr.mxu0 0.0
  %674 = vmatpush1.xpose.msra.mxu0 0.0
  %675 = vmatprep.subr.mxu0 0.0
  %676 = vmatpush1.xpose.msra.mxu0 0.0
  %677 = vmatprep.subr.mxu0 0.0
  %678 = vmatpush1.xpose.msra.mxu0 0.0
  %679 = vmatprep.subr.mxu0 0.0
  %680 = vmatpush1.xpose.msra.mxu0 0.0
  %681 = vmatprep.subr.mxu0 0.0
  %682 = vmatpush1.xpose.msra.mxu0 0.0
  %683 = vmatprep.subr.mxu0 0.0
  %684 = vmatpush1.xpose.msra.mxu0 0.0
  %685 = vmatprep.subr.mxu0 0.0
  %686 = vmatpush1.xpose.msra.mxu0 0.0
  %687 = vmatprep.subr.mxu0 0.0
  %688 = vmatpush1.xpose.msra.mxu0 0.0
  %689 = vmatprep.subr.mxu0 0.0
  %690 = vmatpush1.xpose.msra.mxu0 0.0
  %691 = vmatprep.subr.mxu0 0.0
  %692 = vmatpush1.xpose.msra.mxu0 0.0
  %693 = vmatprep.subr.mxu0 0.0
  %694 = vmatpush1.xpose.msra.mxu0 0.0
  %695 = vmatprep.subr.mxu0 0.0
  %696 = vmatpush1.xpose.msra.mxu0 0.0
  %697 = vmatprep.subr.mxu0 0.0
  %698 = vmatpush1.xpose.msra.mxu0 0.0
  %699 = vmatprep.subr.mxu0 0.0
  %700 = vmatpush1.xpose.msra.mxu0 0.0
  %701 = vmatprep.subr.mxu0 0.0
  %702 = vmatpush1.xpose.msra.mxu0 0.0
  %703 = vmatprep.subr.mxu0 0.0
  %704 = vmatpush1.xpose.msra.mxu0 0.0
  %705 = vmatprep.subr.mxu0 0.0
  %706 = vmatpush1.xpose.msra.mxu0 0.0
  %707 = vmatprep.subr.mxu0 0.0
  %708 = vmatpush1.xpose.msra.mxu0 0.0
  %709 = vmatprep.subr.mxu0 0.0
  %710 = vmatpush1.xpose.msra.mxu0 0.0
  %711 = vmatprep.subr.mxu0 0.0
  %712 = vmatpush1.xpose.msra.mxu0 0.0
  %713 = vmatprep.subr.mxu0 0.0
  %714 = vmatpush1.xpose.msra.mxu0 0.0
  %715 = vmatprep.subr.mxu0 0.0
  %716 = vmatpush1.xpose.msra.mxu0 0.0
  %717 = vmatprep.subr.mxu0 0.0
  %718 = vmatpush1.xpose.msra.mxu0 0.0
  %719 = vmatprep.subr.mxu0 0.0
  %720 = vmatpush1.xpose.msra.mxu0 0.0
  %721 = vmatprep.subr.mxu0 0.0
  %722 = vmatpush1.xpose.msra.mxu0 0.0
  %723 = vmatprep.subr.mxu0 0.0
  %724 = vmatpush1.xpose.msra.mxu0 0.0
  %725 = vmatprep.subr.mxu0 0.0
  %726 = vmatpush1.xpose.msra.mxu0 0.0
  %727 = vmatprep.mubr.f32.mxu0 0.0
  %728 = vmatmul.mubr.f32.gmra.mrb[0].mxu0 %v659
  %v729 = vpop.f32.mrb[0].mxu0
  %v730 = vadd.f32 0.0, %v729
  %v731 = vpop.f32.mrb[0].mxu0
  %732 = vdwg.mxu0
  %733 = vrot.lane.b32.xlu0 %v185, 96
  %v734 = vpop.permute.xlu0 %733
  %v735 = vsel %vm202, %v171, 0
  %v737 = vsel %vm202, %v734, 0
  %739 = vmatprep.subr.mxu0 0.0
  %740 = vmatpush1.xpose.msra.mxu0 %v737
  %741 = vmatprep.subr.mxu0 0.0
  %742 = vmatpush1.xpose.msra.mxu0 0.0
  %743 = vmatprep.subr.mxu0 0.0
  %744 = vmatpush1.xpose.msra.mxu0 0.0
  %745 = vmatprep.subr.mxu0 0.0
  %746 = vmatpush1.xpose.msra.mxu0 0.0
  %747 = vmatprep.subr.mxu0 0.0
  %748 = vmatpush1.xpose.msra.mxu0 0.0
  %749 = vmatprep.subr.mxu0 0.0
  %750 = vmatpush1.xpose.msra.mxu0 0.0
  %751 = vmatprep.subr.mxu0 0.0
  %752 = vmatpush1.xpose.msra.mxu0 0.0
  %753 = vmatprep.subr.mxu0 0.0
  %754 = vmatpush1.xpose.msra.mxu0 0.0
  %755 = vmatprep.subr.mxu0 0.0
  %756 = vmatpush1.xpose.msra.mxu0 0.0
  %757 = vmatprep.subr.mxu0 0.0
  %758 = vmatpush1.xpose.msra.mxu0 0.0
  %759 = vmatprep.subr.mxu0 0.0
  %760 = vmatpush1.xpose.msra.mxu0 0.0
  %761 = vmatprep.subr.mxu0 0.0
  %762 = vmatpush1.xpose.msra.mxu0 0.0
  %763 = vmatprep.subr.mxu0 0.0
  %764 = vmatpush1.xpose.msra.mxu0 0.0
  %765 = vmatprep.subr.mxu0 0.0
  %766 = vmatpush1.xpose.msra.mxu0 0.0
  %767 = vmatprep.subr.mxu0 0.0
  %768 = vmatpush1.xpose.msra.mxu0 0.0
  %769 = vmatprep.subr.mxu0 0.0
  %770 = vmatpush1.xpose.msra.mxu0 0.0
  %771 = vmatprep.subr.mxu0 0.0
  %772 = vmatpush1.xpose.msra.mxu0 0.0
  %773 = vmatprep.subr.mxu0 0.0
  %774 = vmatpush1.xpose.msra.mxu0 0.0
  %775 = vmatprep.subr.mxu0 0.0
  %776 = vmatpush1.xpose.msra.mxu0 0.0
  %777 = vmatprep.subr.mxu0 0.0
  %778 = vmatpush1.xpose.msra.mxu0 0.0
  %779 = vmatprep.subr.mxu0 0.0
  %780 = vmatpush1.xpose.msra.mxu0 0.0
  %781 = vmatprep.subr.mxu0 0.0
  %782 = vmatpush1.xpose.msra.mxu0 0.0
  %783 = vmatprep.subr.mxu0 0.0
  %784 = vmatpush1.xpose.msra.mxu0 0.0
  %785 = vmatprep.subr.mxu0 0.0
  %786 = vmatpush1.xpose.msra.mxu0 0.0
  %787 = vmatprep.subr.mxu0 0.0
  %788 = vmatpush1.xpose.msra.mxu0 0.0
  %789 = vmatprep.subr.mxu0 0.0
  %790 = vmatpush1.xpose.msra.mxu0 0.0
  %791 = vmatprep.subr.mxu0 0.0
  %792 = vmatpush1.xpose.msra.mxu0 0.0
  %793 = vmatprep.subr.mxu0 0.0
  %794 = vmatpush1.xpose.msra.mxu0 0.0
  %795 = vmatprep.subr.mxu0 0.0
  %796 = vmatpush1.xpose.msra.mxu0 0.0
  %797 = vmatprep.subr.mxu0 0.0
  %798 = vmatpush1.xpose.msra.mxu0 0.0
  %799 = vmatprep.subr.mxu0 0.0
  %800 = vmatpush1.xpose.msra.mxu0 0.0
  %801 = vmatprep.subr.mxu0 0.0
  %802 = vmatpush1.xpose.msra.mxu0 0.0
  %803 = vmatprep.mubr.f32.mxu0 0.0
  %804 = vmatmul.mubr.f32.gmra.mrb[0].mxu0 %v735
  %v805 = vpop.f32.mrb[0].mxu0
  %v806 = vadd.f32 0.0, %v805
  %v807 = vpop.f32.mrb[0].mxu0
  %808 = vdwg.mxu0
  %v809 = vsel %vm202, %v274, -inf
  %810 = vmax.xlane.f32.xlu0 %v809
  %v811 = vpop.xlane.xlu0 %810
  %v812 = vsel %vm202, %v350, -inf
  %813 = vmax.xlane.f32.xlu0 %v812
  %v814 = vpop.xlane.xlu0 %813
  %v815 = vsel %vm202, %v426, -inf
  %816 = vmax.xlane.f32.xlu0 %v815
  %v817 = vpop.xlane.xlu0 %816
  %v818 = vsel %vm202, %v502, -inf
  %819 = vmax.xlane.f32.xlu0 %v818
  %v820 = vpop.xlane.xlu0 %819
  %v821 = vsel %vm202, %v578, -inf
  %822 = vmax.xlane.f32.xlu0 %v821
  %v823 = vpop.xlane.xlu0 %822
  %v824 = vsel %vm202, %v654, -inf
  %825 = vmax.xlane.f32.xlu0 %v824
  %v826 = vpop.xlane.xlu0 %825
  %v827 = vsel %vm202, %v730, -inf
  %828 = vmax.xlane.f32.xlu0 %v827
  %v829 = vpop.xlane.xlu0 %828
  %v830 = vsel %vm202, %v806, -inf
  %831 = vmax.xlane.f32.xlu0 %v830
  %v832 = vpop.xlane.xlu0 %831
  %v833 = vsub.f32 %v274, %v811
  %v834 = vsub.f32 %v350, %v814
  %v835 = vsub.f32 %v426, %v817
  %v836 = vsub.f32 %v502, %v820
  %v837 = vsub.f32 %v578, %v823
  %v838 = vsub.f32 %v654, %v826
  %v839 = vsub.f32 %v730, %v829
  %v840 = vsub.f32 %v806, %v832
  %v841 = vmul.f32 %v833, 1.442695
  %v842 = vpow.pop %v841
  %v843 = vmul.f32 %v834, 1.442695
  %v844 = vpow.pop %v843
  %v845 = vmul.f32 %v835, 1.442695
  %v846 = vpow.pop %v845
  %v847 = vmul.f32 %v836, 1.442695
  %v848 = vpow.pop %v847
  %v849 = vmul.f32 %v837, 1.442695
  %v850 = vpow.pop %v849
  %v851 = vmul.f32 %v838, 1.442695
  %v852 = vpow.pop %v851
  %v853 = vmul.f32 %v839, 1.442695
  %v854 = vpow.pop %v853
  %v855 = vmul.f32 %v840, 1.442695
  %v856 = vpow.pop %v855
  %v857 = vsel %vm202, %v842, 0.0
  %858 = vadd.xlane.f32.xlu0 %v857
  %v859 = vpop.xlane.xlu0 %858
  %v860 = vsel %vm202, %v844, 0.0
  %861 = vadd.xlane.f32.xlu0 %v860
  %v862 = vpop.xlane.xlu0 %861
  %v863 = vsel %vm202, %v846, 0.0
  %864 = vadd.xlane.f32.xlu0 %v863
  %v865 = vpop.xlane.xlu0 %864
  %v866 = vsel %vm202, %v848, 0.0
  %867 = vadd.xlane.f32.xlu0 %v866
  %v868 = vpop.xlane.xlu0 %867
  %v869 = vsel %vm202, %v850, 0.0
  %870 = vadd.xlane.f32.xlu0 %v869
  %v871 = vpop.xlane.xlu0 %870
  %v872 = vsel %vm202, %v852, 0.0
  %873 = vadd.xlane.f32.xlu0 %v872
  %v874 = vpop.xlane.xlu0 %873
  %v875 = vsel %vm202, %v854, 0.0
  %876 = vadd.xlane.f32.xlu0 %v875
  %v877 = vpop.xlane.xlu0 %876
  %v878 = vsel %vm202, %v856, 0.0
  %879 = vadd.xlane.f32.xlu0 %v878
  %v880 = vpop.xlane.xlu0 %879
  %v881 = vrcp.pop %v859
  %v882 = vrcp.pop %v862
  %v883 = vrcp.pop %v865
  %v884 = vrcp.pop %v868
  %v885 = vrcp.pop %v871
  %v886 = vrcp.pop %v874
  %v887 = vrcp.pop %v877
  %v888 = vrcp.pop %v880
  %v889 = vmul.f32 %v842, %v881
  %v890 = vmul.f32 %v844, %v882
  %v891 = vmul.f32 %v846, %v883
  %v892 = vmul.f32 %v848, %v884
  %v893 = vmul.f32 %v850, %v885
  %v894 = vmul.f32 %v852, %v886
  %v895 = vmul.f32 %v854, %v887
  %v896 = vmul.f32 %v856, %v888
  %897 = vrot.lane.b32.xlu0 %v156, 64
  %v898 = vpop.permute.xlu0 %897
  %v901 = vsel %vm202, %v889, 0
  %903 = vmatprep.subr.mxu0 0.0
  %904 = vmatpush1.msra.mxu0 %v898
  %905 = vmatprep.subr.mxu0 0.0
  %906 = vmatpush1.msra.mxu0 0.0
  %907 = vmatprep.subr.mxu0 0.0
  %908 = vmatpush1.msra.mxu0 0.0
  %909 = vmatprep.subr.mxu0 0.0
  %910 = vmatpush1.msra.mxu0 0.0
  %911 = vmatprep.subr.mxu0 0.0
  %912 = vmatpush1.msra.mxu0 0.0
  %913 = vmatprep.subr.mxu0 0.0
  %914 = vmatpush1.msra.mxu0 0.0
  %915 = vmatprep.subr.mxu0 0.0
  %916 = vmatpush1.msra.mxu0 0.0
  %917 = vmatprep.subr.mxu0 0.0
  %918 = vmatpush1.msra.mxu0 0.0
  %919 = vmatprep.subr.mxu0 0.0
  %920 = vmatpush1.msra.mxu0 0.0
  %921 = vmatprep.subr.mxu0 0.0
  %922 = vmatpush1.msra.mxu0 0.0
  %923 = vmatprep.subr.mxu0 0.0
  %924 = vmatpush1.msra.mxu0 0.0
  %925 = vmatprep.subr.mxu0 0.0
  %926 = vmatpush1.msra.mxu0 0.0
  %927 = vmatprep.subr.mxu0 0.0
  %928 = vmatpush1.msra.mxu0 0.0
  %929 = vmatprep.subr.mxu0 0.0
  %930 = vmatpush1.msra.mxu0 0.0
  %931 = vmatprep.subr.mxu0 0.0
  %932 = vmatpush1.msra.mxu0 0.0
  %933 = vmatprep.subr.mxu0 0.0
  %934 = vmatpush1.msra.mxu0 0.0
  %935 = vmatprep.subr.mxu0 0.0
  %936 = vmatpush1.msra.mxu0 0.0
  %937 = vmatprep.subr.mxu0 0.0
  %938 = vmatpush1.msra.mxu0 0.0
  %939 = vmatprep.subr.mxu0 0.0
  %940 = vmatpush1.msra.mxu0 0.0
  %941 = vmatprep.subr.mxu0 0.0
  %942 = vmatpush1.msra.mxu0 0.0
  %943 = vmatprep.subr.mxu0 0.0
  %944 = vmatpush1.msra.mxu0 0.0
  %945 = vmatprep.subr.mxu0 0.0
  %946 = vmatpush1.msra.mxu0 0.0
  %947 = vmatprep.subr.mxu0 0.0
  %948 = vmatpush1.msra.mxu0 0.0
  %949 = vmatprep.subr.mxu0 0.0
  %950 = vmatpush1.msra.mxu0 0.0
  %951 = vmatprep.subr.mxu0 0.0
  %952 = vmatpush1.msra.mxu0 0.0
  %953 = vmatprep.subr.mxu0 0.0
  %954 = vmatpush1.msra.mxu0 0.0
  %955 = vmatprep.subr.mxu0 0.0
  %956 = vmatpush1.msra.mxu0 0.0
  %957 = vmatprep.subr.mxu0 0.0
  %958 = vmatpush1.msra.mxu0 0.0
  %959 = vmatprep.subr.mxu0 0.0
  %960 = vmatpush1.msra.mxu0 0.0
  %961 = vmatprep.subr.mxu0 0.0
  %962 = vmatpush1.msra.mxu0 0.0
  %963 = vmatprep.subr.mxu0 0.0
  %964 = vmatpush1.msra.mxu0 0.0
  %965 = vmatprep.subr.mxu0 0.0
  %966 = vmatpush1.msra.mxu0 0.0
  %967 = vmatprep.mubr.f32.mxu0 0.0
  %968 = vmatmul.mubr.f32.gmra.mrb[0].mxu0 %v901
  %v969 = vpop.f32.mrb[0].mxu0
  %v970 = vadd.f32 0.0, %v969
  %v971 = vpop.f32.mrb[0].mxu0
  %972 = vdwg.mxu0
  %973 = vrot.lane.b32.xlu0 %v157, 64
  %v974 = vpop.permute.xlu0 %973
  %v977 = vsel %vm202, %v890, 0
  %979 = vmatprep.subr.mxu0 0.0
  %980 = vmatpush1.msra.mxu0 %v974
  %981 = vmatprep.subr.mxu0 0.0
  %982 = vmatpush1.msra.mxu0 0.0
  %983 = vmatprep.subr.mxu0 0.0
  %984 = vmatpush1.msra.mxu0 0.0
  %985 = vmatprep.subr.mxu0 0.0
  %986 = vmatpush1.msra.mxu0 0.0
  %987 = vmatprep.subr.mxu0 0.0
  %988 = vmatpush1.msra.mxu0 0.0
  %989 = vmatprep.subr.mxu0 0.0
  %990 = vmatpush1.msra.mxu0 0.0
  %991 = vmatprep.subr.mxu0 0.0
  %992 = vmatpush1.msra.mxu0 0.0
  %993 = vmatprep.subr.mxu0 0.0
  %994 = vmatpush1.msra.mxu0 0.0
  %995 = vmatprep.subr.mxu0 0.0
  %996 = vmatpush1.msra.mxu0 0.0
  %997 = vmatprep.subr.mxu0 0.0
  %998 = vmatpush1.msra.mxu0 0.0
  %999 = vmatprep.subr.mxu0 0.0
  %1000 = vmatpush1.msra.mxu0 0.0
  %1001 = vmatprep.subr.mxu0 0.0
  %1002 = vmatpush1.msra.mxu0 0.0
  %1003 = vmatprep.subr.mxu0 0.0
  %1004 = vmatpush1.msra.mxu0 0.0
  %1005 = vmatprep.subr.mxu0 0.0
  %1006 = vmatpush1.msra.mxu0 0.0
  %1007 = vmatprep.subr.mxu0 0.0
  %1008 = vmatpush1.msra.mxu0 0.0
  %1009 = vmatprep.subr.mxu0 0.0
  %1010 = vmatpush1.msra.mxu0 0.0
  %1011 = vmatprep.subr.mxu0 0.0
  %1012 = vmatpush1.msra.mxu0 0.0
  %1013 = vmatprep.subr.mxu0 0.0
  %1014 = vmatpush1.msra.mxu0 0.0
  %1015 = vmatprep.subr.mxu0 0.0
  %1016 = vmatpush1.msra.mxu0 0.0
  %1017 = vmatprep.subr.mxu0 0.0
  %1018 = vmatpush1.msra.mxu0 0.0
  %1019 = vmatprep.subr.mxu0 0.0
  %1020 = vmatpush1.msra.mxu0 0.0
  %1021 = vmatprep.subr.mxu0 0.0
  %1022 = vmatpush1.msra.mxu0 0.0
  %1023 = vmatprep.subr.mxu0 0.0
  %1024 = vmatpush1.msra.mxu0 0.0
  %1025 = vmatprep.subr.mxu0 0.0
  %1026 = vmatpush1.msra.mxu0 0.0
  %1027 = vmatprep.subr.mxu0 0.0
  %1028 = vmatpush1.msra.mxu0 0.0
  %1029 = vmatprep.subr.mxu0 0.0
  %1030 = vmatpush1.msra.mxu0 0.0
  %1031 = vmatprep.subr.mxu0 0.0
  %1032 = vmatpush1.msra.mxu0 0.0
  %1033 = vmatprep.subr.mxu0 0.0
  %1034 = vmatpush1.msra.mxu0 0.0
  %1035 = vmatprep.subr.mxu0 0.0
  %1036 = vmatpush1.msra.mxu0 0.0
  %1037 = vmatprep.subr.mxu0 0.0
  %1038 = vmatpush1.msra.mxu0 0.0
  %1039 = vmatprep.subr.mxu0 0.0
  %1040 = vmatpush1.msra.mxu0 0.0
  %1041 = vmatprep.subr.mxu0 0.0
  %1042 = vmatpush1.msra.mxu0 0.0
  %1043 = vmatprep.mubr.f32.mxu0 0.0
  %1044 = vmatmul.mubr.f32.gmra.mrb[0].mxu0 %v977
  %v1045 = vpop.f32.mrb[0].mxu0
  %v1046 = vadd.f32 0.0, %v1045
  %v1047 = vpop.f32.mrb[0].mxu0
  %1048 = vdwg.mxu0
  %1049 = vrot.lane.b32.xlu0 %v189, 64
  %v1050 = vpop.permute.xlu0 %1049
  %v1053 = vsel %vm202, %v891, 0
  %1055 = vmatprep.subr.mxu0 0.0
  %1056 = vmatpush1.msra.mxu0 %v1050
  %1057 = vmatprep.subr.mxu0 0.0
  %1058 = vmatpush1.msra.mxu0 0.0
  %1059 = vmatprep.subr.mxu0 0.0
  %1060 = vmatpush1.msra.mxu0 0.0
  %1061 = vmatprep.subr.mxu0 0.0
  %1062 = vmatpush1.msra.mxu0 0.0
  %1063 = vmatprep.subr.mxu0 0.0
  %1064 = vmatpush1.msra.mxu0 0.0
  %1065 = vmatprep.subr.mxu0 0.0
  %1066 = vmatpush1.msra.mxu0 0.0
  %1067 = vmatprep.subr.mxu0 0.0
  %1068 = vmatpush1.msra.mxu0 0.0
  %1069 = vmatprep.subr.mxu0 0.0
  %1070 = vmatpush1.msra.mxu0 0.0
  %1071 = vmatprep.subr.mxu0 0.0
  %1072 = vmatpush1.msra.mxu0 0.0
  %1073 = vmatprep.subr.mxu0 0.0
  %1074 = vmatpush1.msra.mxu0 0.0
  %1075 = vmatprep.subr.mxu0 0.0
  %1076 = vmatpush1.msra.mxu0 0.0
  %1077 = vmatprep.subr.mxu0 0.0
  %1078 = vmatpush1.msra.mxu0 0.0
  %1079 = vmatprep.subr.mxu0 0.0
  %1080 = vmatpush1.msra.mxu0 0.0
  %1081 = vmatprep.subr.mxu0 0.0
  %1082 = vmatpush1.msra.mxu0 0.0
  %1083 = vmatprep.subr.mxu0 0.0
  %1084 = vmatpush1.msra.mxu0 0.0
  %1085 = vmatprep.subr.mxu0 0.0
  %1086 = vmatpush1.msra.mxu0 0.0
  %1087 = vmatprep.subr.mxu0 0.0
  %1088 = vmatpush1.msra.mxu0 0.0
  %1089 = vmatprep.subr.mxu0 0.0
  %1090 = vmatpush1.msra.mxu0 0.0
  %1091 = vmatprep.subr.mxu0 0.0
  %1092 = vmatpush1.msra.mxu0 0.0
  %1093 = vmatprep.subr.mxu0 0.0
  %1094 = vmatpush1.msra.mxu0 0.0
  %1095 = vmatprep.subr.mxu0 0.0
  %1096 = vmatpush1.msra.mxu0 0.0
  %1097 = vmatprep.subr.mxu0 0.0
  %1098 = vmatpush1.msra.mxu0 0.0
  %1099 = vmatprep.subr.mxu0 0.0
  %1100 = vmatpush1.msra.mxu0 0.0
  %1101 = vmatprep.subr.mxu0 0.0
  %1102 = vmatpush1.msra.mxu0 0.0
  %1103 = vmatprep.subr.mxu0 0.0
  %1104 = vmatpush1.msra.mxu0 0.0
  %1105 = vmatprep.subr.mxu0 0.0
  %1106 = vmatpush1.msra.mxu0 0.0
  %1107 = vmatprep.subr.mxu0 0.0
  %1108 = vmatpush1.msra.mxu0 0.0
  %1109 = vmatprep.subr.mxu0 0.0
  %1110 = vmatpush1.msra.mxu0 0.0
  %1111 = vmatprep.subr.mxu0 0.0
  %1112 = vmatpush1.msra.mxu0 0.0
  %1113 = vmatprep.subr.mxu0 0.0
  %1114 = vmatpush1.msra.mxu0 0.0
  %1115 = vmatprep.subr.mxu0 0.0
  %1116 = vmatpush1.msra.mxu0 0.0
  %1117 = vmatprep.subr.mxu0 0.0
  %1118 = vmatpush1.msra.mxu0 0.0
  %1119 = vmatprep.mubr.f32.mxu0 0.0
  %1120 = vmatmul.mubr.f32.gmra.mrb[0].mxu0 %v1053
  %v1121 = vpop.f32.mrb[0].mxu0
  %v1122 = vadd.f32 0.0, %v1121
  %v1123 = vpop.f32.mrb[0].mxu0
  %1124 = vdwg.mxu0
  %1125 = vrot.lane.b32.xlu0 %v191, 64
  %v1126 = vpop.permute.xlu0 %1125
  %v1129 = vsel %vm202, %v892, 0
  %1131 = vmatprep.subr.mxu0 0.0
  %1132 = vmatpush1.msra.mxu0 %v1126
  %1133 = vmatprep.subr.mxu0 0.0
  %1134 = vmatpush1.msra.mxu0 0.0
  %1135 = vmatprep.subr.mxu0 0.0
  %1136 = vmatpush1.msra.mxu0 0.0
  %1137 = vmatprep.subr.mxu0 0.0
  %1138 = vmatpush1.msra.mxu0 0.0
  %1139 = vmatprep.subr.mxu0 0.0
  %1140 = vmatpush1.msra.mxu0 0.0
  %1141 = vmatprep.subr.mxu0 0.0
  %1142 = vmatpush1.msra.mxu0 0.0
  %1143 = vmatprep.subr.mxu0 0.0
  %1144 = vmatpush1.msra.mxu0 0.0
  %1145 = vmatprep.subr.mxu0 0.0
  %1146 = vmatpush1.msra.mxu0 0.0
  %1147 = vmatprep.subr.mxu0 0.0
  %1148 = vmatpush1.msra.mxu0 0.0
  %1149 = vmatprep.subr.mxu0 0.0
  %1150 = vmatpush1.msra.mxu0 0.0
  %1151 = vmatprep.subr.mxu0 0.0
  %1152 = vmatpush1.msra.mxu0 0.0
  %1153 = vmatprep.subr.mxu0 0.0
  %1154 = vmatpush1.msra.mxu0 0.0
  %1155 = vmatprep.subr.mxu0 0.0
  %1156 = vmatpush1.msra.mxu0 0.0
  %1157 = vmatprep.subr.mxu0 0.0
  %1158 = vmatpush1.msra.mxu0 0.0
  %1159 = vmatprep.subr.mxu0 0.0
  %1160 = vmatpush1.msra.mxu0 0.0
  %1161 = vmatprep.subr.mxu0 0.0
  %1162 = vmatpush1.msra.mxu0 0.0
  %1163 = vmatprep.subr.mxu0 0.0
  %1164 = vmatpush1.msra.mxu0 0.0
  %1165 = vmatprep.subr.mxu0 0.0
  %1166 = vmatpush1.msra.mxu0 0.0
  %1167 = vmatprep.subr.mxu0 0.0
  %1168 = vmatpush1.msra.mxu0 0.0
  %1169 = vmatprep.subr.mxu0 0.0
  %1170 = vmatpush1.msra.mxu0 0.0
  %1171 = vmatprep.subr.mxu0 0.0
  %1172 = vmatpush1.msra.mxu0 0.0
  %1173 = vmatprep.subr.mxu0 0.0
  %1174 = vmatpush1.msra.mxu0 0.0
  %1175 = vmatprep.subr.mxu0 0.0
  %1176 = vmatpush1.msra.mxu0 0.0
  %1177 = vmatprep.subr.mxu0 0.0
  %1178 = vmatpush1.msra.mxu0 0.0
  %1179 = vmatprep.subr.mxu0 0.0
  %1180 = vmatpush1.msra.mxu0 0.0
  %1181 = vmatprep.subr.mxu0 0.0
  %1182 = vmatpush1.msra.mxu0 0.0
  %1183 = vmatprep.subr.mxu0 0.0
  %1184 = vmatpush1.msra.mxu0 0.0
  %1185 = vmatprep.subr.mxu0 0.0
  %1186 = vmatpush1.msra.mxu0 0.0
  %1187 = vmatprep.subr.mxu0 0.0
  %1188 = vmatpush1.msra.mxu0 0.0
  %1189 = vmatprep.subr.mxu0 0.0
  %1190 = vmatpush1.msra.mxu0 0.0
  %1191 = vmatprep.subr.mxu0 0.0
  %1192 = vmatpush1.msra.mxu0 0.0
  %1193 = vmatprep.subr.mxu0 0.0
  %1194 = vmatpush1.msra.mxu0 0.0
  %1195 = vmatprep.mubr.f32.mxu0 0.0
  %1196 = vmatmul.mubr.f32.gmra.mrb[0].mxu0 %v1129
  %v1197 = vpop.f32.mrb[0].mxu0
  %v1198 = vadd.f32 0.0, %v1197
  %v1199 = vpop.f32.mrb[0].mxu0
  %1200 = vdwg.mxu0
  %1201 = vrot.lane.b32.xlu0 %v193, 64
  %v1202 = vpop.permute.xlu0 %1201
  %v1205 = vsel %vm202, %v893, 0
  %1207 = vmatprep.subr.mxu0 0.0
  %1208 = vmatpush1.msra.mxu0 %v1202
  %1209 = vmatprep.subr.mxu0 0.0
  %1210 = vmatpush1.msra.mxu0 0.0
  %1211 = vmatprep.subr.mxu0 0.0
  %1212 = vmatpush1.msra.mxu0 0.0
  %1213 = vmatprep.subr.mxu0 0.0
  %1214 = vmatpush1.msra.mxu0 0.0
  %1215 = vmatprep.subr.mxu0 0.0
  %1216 = vmatpush1.msra.mxu0 0.0
  %1217 = vmatprep.subr.mxu0 0.0
  %1218 = vmatpush1.msra.mxu0 0.0
  %1219 = vmatprep.subr.mxu0 0.0
  %1220 = vmatpush1.msra.mxu0 0.0
  %1221 = vmatprep.subr.mxu0 0.0
  %1222 = vmatpush1.msra.mxu0 0.0
  %1223 = vmatprep.subr.mxu0 0.0
  %1224 = vmatpush1.msra.mxu0 0.0
  %1225 = vmatprep.subr.mxu0 0.0
  %1226 = vmatpush1.msra.mxu0 0.0
  %1227 = vmatprep.subr.mxu0 0.0
  %1228 = vmatpush1.msra.mxu0 0.0
  %1229 = vmatprep.subr.mxu0 0.0
  %1230 = vmatpush1.msra.mxu0 0.0
  %1231 = vmatprep.subr.mxu0 0.0
  %1232 = vmatpush1.msra.mxu0 0.0
  %1233 = vmatprep.subr.mxu0 0.0
  %1234 = vmatpush1.msra.mxu0 0.0
  %1235 = vmatprep.subr.mxu0 0.0
  %1236 = vmatpush1.msra.mxu0 0.0
  %1237 = vmatprep.subr.mxu0 0.0
  %1238 = vmatpush1.msra.mxu0 0.0
  %1239 = vmatprep.subr.mxu0 0.0
  %1240 = vmatpush1.msra.mxu0 0.0
  %1241 = vmatprep.subr.mxu0 0.0
  %1242 = vmatpush1.msra.mxu0 0.0
  %1243 = vmatprep.subr.mxu0 0.0
  %1244 = vmatpush1.msra.mxu0 0.0
  %1245 = vmatprep.subr.mxu0 0.0
  %1246 = vmatpush1.msra.mxu0 0.0
  %1247 = vmatprep.subr.mxu0 0.0
  %1248 = vmatpush1.msra.mxu0 0.0
  %1249 = vmatprep.subr.mxu0 0.0
  %1250 = vmatpush1.msra.mxu0 0.0
  %1251 = vmatprep.subr.mxu0 0.0
  %1252 = vmatpush1.msra.mxu0 0.0
  %1253 = vmatprep.subr.mxu0 0.0
  %1254 = vmatpush1.msra.mxu0 0.0
  %1255 = vmatprep.subr.mxu0 0.0
  %1256 = vmatpush1.msra.mxu0 0.0
  %1257 = vmatprep.subr.mxu0 0.0
  %1258 = vmatpush1.msra.mxu0 0.0
  %1259 = vmatprep.subr.mxu0 0.0
  %1260 = vmatpush1.msra.mxu0 0.0
  %1261 = vmatprep.subr.mxu0 0.0
  %1262 = vmatpush1.msra.mxu0 0.0
  %1263 = vmatprep.subr.mxu0 0.0
  %1264 = vmatpush1.msra.mxu0 0.0
  %1265 = vmatprep.subr.mxu0 0.0
  %1266 = vmatpush1.msra.mxu0 0.0
  %1267 = vmatprep.subr.mxu0 0.0
  %1268 = vmatpush1.msra.mxu0 0.0
  %1269 = vmatprep.subr.mxu0 0.0
  %1270 = vmatpush1.msra.mxu0 0.0
  %1271 = vmatprep.mubr.f32.mxu0 0.0
  %1272 = vmatmul.mubr.f32.gmra.mrb[0].mxu0 %v1205
  %v1273 = vpop.f32.mrb[0].mxu0
  %v1274 = vadd.f32 0.0, %v1273
  %v1275 = vpop.f32.mrb[0].mxu0
  %1276 = vdwg.mxu0
  %1277 = vrot.lane.b32.xlu0 %v195, 64
  %v1278 = vpop.permute.xlu0 %1277
  %v1281 = vsel %vm202, %v894, 0
  %1283 = vmatprep.subr.mxu0 0.0
  %1284 = vmatpush1.msra.mxu0 %v1278
  %1285 = vmatprep.subr.mxu0 0.0
  %1286 = vmatpush1.msra.mxu0 0.0
  %1287 = vmatprep.subr.mxu0 0.0
  %1288 = vmatpush1.msra.mxu0 0.0
  %1289 = vmatprep.subr.mxu0 0.0
  %1290 = vmatpush1.msra.mxu0 0.0
  %1291 = vmatprep.subr.mxu0 0.0
  %1292 = vmatpush1.msra.mxu0 0.0
  %1293 = vmatprep.subr.mxu0 0.0
  %1294 = vmatpush1.msra.mxu0 0.0
  %1295 = vmatprep.subr.mxu0 0.0
  %1296 = vmatpush1.msra.mxu0 0.0
  %1297 = vmatprep.subr.mxu0 0.0
  %1298 = vmatpush1.msra.mxu0 0.0
  %1299 = vmatprep.subr.mxu0 0.0
  %1300 = vmatpush1.msra.mxu0 0.0
  %1301 = vmatprep.subr.mxu0 0.0
  %1302 = vmatpush1.msra.mxu0 0.0
  %1303 = vmatprep.subr.mxu0 0.0
  %1304 = vmatpush1.msra.mxu0 0.0
  %1305 = vmatprep.subr.mxu0 0.0
  %1306 = vmatpush1.msra.mxu0 0.0
  %1307 = vmatprep.subr.mxu0 0.0
  %1308 = vmatpush1.msra.mxu0 0.0
  %1309 = vmatprep.subr.mxu0 0.0
  %1310 = vmatpush1.msra.mxu0 0.0
  %1311 = vmatprep.subr.mxu0 0.0
  %1312 = vmatpush1.msra.mxu0 0.0
  %1313 = vmatprep.subr.mxu0 0.0
  %1314 = vmatpush1.msra.mxu0 0.0
  %1315 = vmatprep.subr.mxu0 0.0
  %1316 = vmatpush1.msra.mxu0 0.0
  %1317 = vmatprep.subr.mxu0 0.0
  %1318 = vmatpush1.msra.mxu0 0.0
  %1319 = vmatprep.subr.mxu0 0.0
  %1320 = vmatpush1.msra.mxu0 0.0
  %1321 = vmatprep.subr.mxu0 0.0
  %1322 = vmatpush1.msra.mxu0 0.0
  %1323 = vmatprep.subr.mxu0 0.0
  %1324 = vmatpush1.msra.mxu0 0.0
  %1325 = vmatprep.subr.mxu0 0.0
  %1326 = vmatpush1.msra.mxu0 0.0
  %1327 = vmatprep.subr.mxu0 0.0
  %1328 = vmatpush1.msra.mxu0 0.0
  %1329 = vmatprep.subr.mxu0 0.0
  %1330 = vmatpush1.msra.mxu0 0.0
  %1331 = vmatprep.subr.mxu0 0.0
  %1332 = vmatpush1.msra.mxu0 0.0
  %1333 = vmatprep.subr.mxu0 0.0
  %1334 = vmatpush1.msra.mxu0 0.0
  %1335 = vmatprep.subr.mxu0 0.0
  %1336 = vmatpush1.msra.mxu0 0.0
  %1337 = vmatprep.subr.mxu0 0.0
  %1338 = vmatpush1.msra.mxu0 0.0
  %1339 = vmatprep.subr.mxu0 0.0
  %1340 = vmatpush1.msra.mxu0 0.0
  %1341 = vmatprep.subr.mxu0 0.0
  %1342 = vmatpush1.msra.mxu0 0.0
  %1343 = vmatprep.subr.mxu0 0.0
  %1344 = vmatpush1.msra.mxu0 0.0
  %1345 = vmatprep.subr.mxu0 0.0
  %1346 = vmatpush1.msra.mxu0 0.0
  %1347 = vmatprep.mubr.f32.mxu0 0.0
  %1348 = vmatmul.mubr.f32.gmra.mrb[0].mxu0 %v1281
  %v1349 = vpop.f32.mrb[0].mxu0
  %v1350 = vadd.f32 0.0, %v1349
  %v1351 = vpop.f32.mrb[0].mxu0
  %1352 = vdwg.mxu0
  %1353 = vrot.lane.b32.xlu0 %v197, 64
  %v1354 = vpop.permute.xlu0 %1353
  %v1357 = vsel %vm202, %v895, 0
  %1359 = vmatprep.subr.mxu0 0.0
  %1360 = vmatpush1.msra.mxu0 %v1354
  %1361 = vmatprep.subr.mxu0 0.0
  %1362 = vmatpush1.msra.mxu0 0.0
  %1363 = vmatprep.subr.mxu0 0.0
  %1364 = vmatpush1.msra.mxu0 0.0
  %1365 = vmatprep.subr.mxu0 0.0
  %1366 = vmatpush1.msra.mxu0 0.0
  %1367 = vmatprep.subr.mxu0 0.0
  %1368 = vmatpush1.msra.mxu0 0.0
  %1369 = vmatprep.subr.mxu0 0.0
  %1370 = vmatpush1.msra.mxu0 0.0
  %1371 = vmatprep.subr.mxu0 0.0
  %1372 = vmatpush1.msra.mxu0 0.0
  %1373 = vmatprep.subr.mxu0 0.0
  %1374 = vmatpush1.msra.mxu0 0.0
  %1375 = vmatprep.subr.mxu0 0.0
  %1376 = vmatpush1.msra.mxu0 0.0
  %1377 = vmatprep.subr.mxu0 0.0
  %1378 = vmatpush1.msra.mxu0 0.0
  %1379 = vmatprep.subr.mxu0 0.0
  %1380 = vmatpush1.msra.mxu0 0.0
  %1381 = vmatprep.subr.mxu0 0.0
  %1382 = vmatpush1.msra.mxu0 0.0
  %1383 = vmatprep.subr.mxu0 0.0
  %1384 = vmatpush1.msra.mxu0 0.0
  %1385 = vmatprep.subr.mxu0 0.0
  %1386 = vmatpush1.msra.mxu0 0.0
  %1387 = vmatprep.subr.mxu0 0.0
  %1388 = vmatpush1.msra.mxu0 0.0
  %1389 = vmatprep.subr.mxu0 0.0
  %1390 = vmatpush1.msra.mxu0 0.0
  %1391 = vmatprep.subr.mxu0 0.0
  %1392 = vmatpush1.msra.mxu0 0.0
  %1393 = vmatprep.subr.mxu0 0.0
  %1394 = vmatpush1.msra.mxu0 0.0
  %1395 = vmatprep.subr.mxu0 0.0
  %1396 = vmatpush1.msra.mxu0 0.0
  %1397 = vmatprep.subr.mxu0 0.0
  %1398 = vmatpush1.msra.mxu0 0.0
  %1399 = vmatprep.subr.mxu0 0.0
  %1400 = vmatpush1.msra.mxu0 0.0
  %1401 = vmatprep.subr.mxu0 0.0
  %1402 = vmatpush1.msra.mxu0 0.0
  %1403 = vmatprep.subr.mxu0 0.0
  %1404 = vmatpush1.msra.mxu0 0.0
  %1405 = vmatprep.subr.mxu0 0.0
  %1406 = vmatpush1.msra.mxu0 0.0
  %1407 = vmatprep.subr.mxu0 0.0
  %1408 = vmatpush1.msra.mxu0 0.0
  %1409 = vmatprep.subr.mxu0 0.0
  %1410 = vmatpush1.msra.mxu0 0.0
  %1411 = vmatprep.subr.mxu0 0.0
  %1412 = vmatpush1.msra.mxu0 0.0
  %1413 = vmatprep.subr.mxu0 0.0
  %1414 = vmatpush1.msra.mxu0 0.0
  %1415 = vmatprep.subr.mxu0 0.0
  %1416 = vmatpush1.msra.mxu0 0.0
  %1417 = vmatprep.subr.mxu0 0.0
  %1418 = vmatpush1.msra.mxu0 0.0
  %1419 = vmatprep.subr.mxu0 0.0
  %1420 = vmatpush1.msra.mxu0 0.0
  %1421 = vmatprep.subr.mxu0 0.0
  %1422 = vmatpush1.msra.mxu0 0.0
  %1423 = vmatprep.mubr.f32.mxu0 0.0
  %1424 = vmatmul.mubr.f32.gmra.mrb[0].mxu0 %v1357
  %v1425 = vpop.f32.mrb[0].mxu0
  %v1426 = vadd.f32 0.0, %v1425
  %v1427 = vpop.f32.mrb[0].mxu0
  %1428 = vdwg.mxu0
  %1429 = vrot.lane.b32.xlu0 %v199, 64
  %v1430 = vpop.permute.xlu0 %1429
  %v1433 = vsel %vm202, %v896, 0
  %1435 = vmatprep.subr.mxu0 0.0
  %1436 = vmatpush1.msra.mxu0 %v1430
  %1437 = vmatprep.subr.mxu0 0.0
  %1438 = vmatpush1.msra.mxu0 0.0
  %1439 = vmatprep.subr.mxu0 0.0
  %1440 = vmatpush1.msra.mxu0 0.0
  %1441 = vmatprep.subr.mxu0 0.0
  %1442 = vmatpush1.msra.mxu0 0.0
  %1443 = vmatprep.subr.mxu0 0.0
  %1444 = vmatpush1.msra.mxu0 0.0
  %1445 = vmatprep.subr.mxu0 0.0
  %1446 = vmatpush1.msra.mxu0 0.0
  %1447 = vmatprep.subr.mxu0 0.0
  %1448 = vmatpush1.msra.mxu0 0.0
  %1449 = vmatprep.subr.mxu0 0.0
  %1450 = vmatpush1.msra.mxu0 0.0
  %1451 = vmatprep.subr.mxu0 0.0
  %1452 = vmatpush1.msra.mxu0 0.0
  %1453 = vmatprep.subr.mxu0 0.0
  %1454 = vmatpush1.msra.mxu0 0.0
  %1455 = vmatprep.subr.mxu0 0.0
  %1456 = vmatpush1.msra.mxu0 0.0
  %1457 = vmatprep.subr.mxu0 0.0
  %1458 = vmatpush1.msra.mxu0 0.0
  %1459 = vmatprep.subr.mxu0 0.0
  %1460 = vmatpush1.msra.mxu0 0.0
  %1461 = vmatprep.subr.mxu0 0.0
  %1462 = vmatpush1.msra.mxu0 0.0
  %1463 = vmatprep.subr.mxu0 0.0
  %1464 = vmatpush1.msra.mxu0 0.0
  %1465 = vmatprep.subr.mxu0 0.0
  %1466 = vmatpush1.msra.mxu0 0.0
  %1467 = vmatprep.subr.mxu0 0.0
  %1468 = vmatpush1.msra.mxu0 0.0
  %1469 = vmatprep.subr.mxu0 0.0
  %1470 = vmatpush1.msra.mxu0 0.0
  %1471 = vmatprep.subr.mxu0 0.0
  %1472 = vmatpush1.msra.mxu0 0.0
  %1473 = vmatprep.subr.mxu0 0.0
  %1474 = vmatpush1.msra.mxu0 0.0
  %1475 = vmatprep.subr.mxu0 0.0
  %1476 = vmatpush1.msra.mxu0 0.0
  %1477 = vmatprep.subr.mxu0 0.0
  %1478 = vmatpush1.msra.mxu0 0.0
  %1479 = vmatprep.subr.mxu0 0.0
  %1480 = vmatpush1.msra.mxu0 0.0
  %1481 = vmatprep.subr.mxu0 0.0
  %1482 = vmatpush1.msra.mxu0 0.0
  %1483 = vmatprep.subr.mxu0 0.0
  %1484 = vmatpush1.msra.mxu0 0.0
  %1485 = vmatprep.subr.mxu0 0.0
  %1486 = vmatpush1.msra.mxu0 0.0
  %1487 = vmatprep.subr.mxu0 0.0
  %1488 = vmatpush1.msra.mxu0 0.0
  %1489 = vmatprep.subr.mxu0 0.0
  %1490 = vmatpush1.msra.mxu0 0.0
  %1491 = vmatprep.subr.mxu0 0.0
  %1492 = vmatpush1.msra.mxu0 0.0
  %1493 = vmatprep.subr.mxu0 0.0
  %1494 = vmatpush1.msra.mxu0 0.0
  %1495 = vmatprep.subr.mxu0 0.0
  %1496 = vmatpush1.msra.mxu0 0.0
  %1497 = vmatprep.subr.mxu0 0.0
  %1498 = vmatpush1.msra.mxu0 0.0
  %1499 = vmatprep.mubr.f32.mxu0 0.0
  %1500 = vmatmul.mubr.f32.gmra.mrb[0].mxu0 %v1433
  %v1501 = vpop.f32.mrb[0].mxu0
  %v1502 = vadd.f32 0.0, %v1501
  %v1503 = vpop.f32.mrb[0].mxu0
  %1504 = vdwg.mxu0
  %1507 = vrot.lane.b32.xlu0 %v1122, 8
  %v1508 = vpop.permute.xlu0 %1507
  %1509 = vrot.lane.b32.xlu0 %v1198, 8
  %v1510 = vpop.permute.xlu0 %1509
  %1515 = vrot.lane.b32.xlu0 %v1274, 16
  %v1516 = vpop.permute.xlu0 %1515
  %1517 = vrot.lane.b32.xlu0 %v1350, 16
  %v1518 = vpop.permute.xlu0 %1517
  %1523 = vrot.lane.b32.xlu0 %v1426, 24
  %v1524 = vpop.permute.xlu0 %1523
  %1525 = vrot.lane.b32.xlu0 %v1502, 24
  %v1526 = vpop.permute.xlu0 %1525
  %v1529 = vsel %vm202, %v970, %v1508
  %v1530 = vsel %vm202, %v1046, %v1510
  %vm1531 = vcmask 130048
  %v1532 = vsel %vm1531, %v1529, %v1516
  %v1533 = vsel %vm1531, %v1530, %v1518
  %vm1534 = vcmask 195584
  %v1535 = vsel %vm1534, %v1532, %v1524
  %v1536 = vsel %vm1534, %v1533, %v1526
  %v1537 = vld [vmem:[%s3] sm:$0xff]
  %v1538 = vld [vmem:[%s3 + $0x8] sm:$0xff]
  %v1539 = vld [vmem:[%s3 + $0x10] sm:$0xff]
  %v1540 = vld [vmem:[%s3 + $0x18] sm:$0xff]
  %v1541 = vlaneseq
  %v1542 = vshrl.u32 %v1541, 7
  %v1543 = vsub.s32 3, %v1542
  %v1544 = vrot.slane %v38, %v1543
  %v1546 = vsel %vm50, %v1535, 0
  %v1549 = vsel %vm50, %v1536, 0
  %1551 = vmatprep.subr.mxu0 0.0
  %1552 = vmatpush1.msra.mxu0 %v1537
  %1553 = vmatprep.subr.mxu0 0.0
  %1554 = vmatpush1.msra.mxu0 %v1538
  %1555 = vmatprep.subr.mxu0 0.0
  %1556 = vmatpush1.msra.mxu0 %v1539
  %1557 = vmatprep.subr.mxu0 0.0
  %1558 = vmatpush1.msra.mxu0 %v1540
  %1559 = vmatprep.subr.mxu0 0.0
  %1560 = vmatpush1.msra.mxu0 0.0
  %1561 = vmatprep.subr.mxu0 0.0
  %1562 = vmatpush1.msra.mxu0 0.0
  %1563 = vmatprep.subr.mxu0 0.0
  %1564 = vmatpush1.msra.mxu0 0.0
  %1565 = vmatprep.subr.mxu0 0.0
  %1566 = vmatpush1.msra.mxu0 0.0
  %1567 = vmatprep.subr.mxu0 0.0
  %1568 = vmatpush1.msra.mxu0 0.0
  %1569 = vmatprep.subr.mxu0 0.0
  %1570 = vmatpush1.msra.mxu0 0.0
  %1571 = vmatprep.subr.mxu0 0.0
  %1572 = vmatpush1.msra.mxu0 0.0
  %1573 = vmatprep.subr.mxu0 0.0
  %1574 = vmatpush1.msra.mxu0 0.0
  %1575 = vmatprep.subr.mxu0 0.0
  %1576 = vmatpush1.msra.mxu0 0.0
  %1577 = vmatprep.subr.mxu0 0.0
  %1578 = vmatpush1.msra.mxu0 0.0
  %1579 = vmatprep.subr.mxu0 0.0
  %1580 = vmatpush1.msra.mxu0 0.0
  %1581 = vmatprep.subr.mxu0 0.0
  %1582 = vmatpush1.msra.mxu0 0.0
  %1583 = vmatprep.subr.mxu0 0.0
  %1584 = vmatpush1.msra.mxu0 0.0
  %1585 = vmatprep.subr.mxu0 0.0
  %1586 = vmatpush1.msra.mxu0 0.0
  %1587 = vmatprep.subr.mxu0 0.0
  %1588 = vmatpush1.msra.mxu0 0.0
  %1589 = vmatprep.subr.mxu0 0.0
  %1590 = vmatpush1.msra.mxu0 0.0
  %1591 = vmatprep.subr.mxu0 0.0
  %1592 = vmatpush1.msra.mxu0 0.0
  %1593 = vmatprep.subr.mxu0 0.0
  %1594 = vmatpush1.msra.mxu0 0.0
  %1595 = vmatprep.subr.mxu0 0.0
  %1596 = vmatpush1.msra.mxu0 0.0
  %1597 = vmatprep.subr.mxu0 0.0
  %1598 = vmatpush1.msra.mxu0 0.0
  %1599 = vmatprep.subr.mxu0 0.0
  %1600 = vmatpush1.msra.mxu0 0.0
  %1601 = vmatprep.subr.mxu0 0.0
  %1602 = vmatpush1.msra.mxu0 0.0
  %1603 = vmatprep.subr.mxu0 0.0
  %1604 = vmatpush1.msra.mxu0 0.0
  %1605 = vmatprep.subr.mxu0 0.0
  %1606 = vmatpush1.msra.mxu0 0.0
  %1607 = vmatprep.subr.mxu0 0.0
  %1608 = vmatpush1.msra.mxu0 0.0
  %1609 = vmatprep.subr.mxu0 0.0
  %1610 = vmatpush1.msra.mxu0 0.0
  %1611 = vmatprep.subr.mxu0 0.0
  %1612 = vmatpush1.msra.mxu0 0.0
  %1613 = vmatprep.subr.mxu0 0.0
  %1614 = vmatpush1.msra.mxu0 0.0
  %1615 = vmatprep.mubr.f32.mxu0 0.0
  %1616 = vmatmul.mubr.f32.gmra.mrb[0].mxu0 %v1546
  %v1617 = vpop.f32.mrb[0].mxu0
  %v1618 = vadd.f32 %v1544, %v1617
  %v1619 = vpop.f32.mrb[0].mxu0
  %1620 = vmatprep.mubr.f32.mxu0 0.0
  %1621 = vmatmul.mubr.f32.gmra.mrb[0].mxu0 %v1549
  %v1622 = vpop.f32.mrb[0].mxu0
  %v1623 = vadd.f32 %v1544, %v1622
  %v1624 = vpop.f32.mrb[0].mxu0
  %1625 = vdwg.mxu0
  %v1626 = vadd.f32 %v40, %v1618
  %v1627 = vadd.f32 %v41, %v1623
  %v1628 = vsel %vm50, %v1626, 0.0
  %1629 = vadd.xlane.f32.xlu0 %v1628
  %v1630 = vpop.xlane.xlu0 %1629
  %v1631 = vsel %vm50, %v1627, 0.0
  %1632 = vadd.xlane.f32.xlu0 %v1631
  %v1633 = vpop.xlane.xlu0 %1632
  %v1634 = vrcp.pop 32.0
  %v1635 = vmul.f32 %v1630, %v1634
  %v1636 = vmul.f32 %v1633, %v1634
  %v1637 = vsub.f32 %v1626, %v1635
  %v1638 = vsub.f32 %v1627, %v1636
  %v1639 = vmul.f32 %v1637, %v1637
  %v1640 = vmul.f32 %v1638, %v1638
  %v1641 = vsel %vm50, %v1639, 0.0
  %1642 = vadd.xlane.f32.xlu0 %v1641
  %v1643 = vpop.xlane.xlu0 %1642
  %v1644 = vsel %vm50, %v1640, 0.0
  %1645 = vadd.xlane.f32.xlu0 %v1644
  %v1646 = vpop.xlane.xlu0 %1645
  %v1647 = vmul.f32 %v1643, %v1634
  %v1648 = vmul.f32 %v1646, %v1634
  %v1649 = vadd.f32 %v1647, 1e-05
  %v1650 = vadd.f32 %v1648, 1e-05
  %v1651 = vrsqrt.pop %v1649
  %v1652 = vrsqrt.pop %v1650
  %v1653 = vmul.f32 %v1637, %v1651
  %v1654 = vmul.f32 %v1638, %v1652
  %v1655 = vlaneseq
  %v1656 = vshrl.u32 %v1655, 7
  %v1657 = vsub.s32 1, %v1656
  %v1658 = vrot.slane %v39, %v1657
  %v1659 = vmul.f32 %v1653, %v1658
  %v1660 = vmul.f32 %v1654, %v1658
  %v1661 = vlaneseq
  %v1662 = vshrl.u32 %v1661, 7
  %v1663 = vsub.s32 2, %v1662
  %v1664 = vrot.slane %v39, %v1663
  %v1665 = vadd.f32 %v1659, %v1664
  %v1666 = vadd.f32 %v1660, %v1664
  %v1667 = vld [vmem:[%s4] sm:$0xff]
  %v1668 = vld [vmem:[%s4 + $0x8] sm:$0xff]
  %v1669 = vld [vmem:[%s4 + $0x10] sm:$0xff]
  %v1670 = vld [vmem:[%s4 + $0x18] sm:$0xff]
  %v1671 = vlaneseq
  %v1672 = vshrl.u32 %v1671, 7
  %v1673 = vsub.s32 4, %v1672
  %v1674 = vrot.slane %v38, %v1673
  %v1676 = vsel %vm50, %v1665, 0
  %v1679 = vsel %vm50, %v1666, 0
  %1681 = vmatprep.subr.mxu0 0.0
  %1682 = vmatpush1.msra.mxu0 %v1667
  %1683 = vmatprep.subr.mxu0 0.0
  %1684 = vmatpush1.msra.mxu0 %v1668
  %1685 = vmatprep.subr.mxu0 0.0
  %1686 = vmatpush1.msra.mxu0 %v1669
  %1687 = vmatprep.subr.mxu0 0.0
  %1688 = vmatpush1.msra.mxu0 %v1670
  %1689 = vmatprep.subr.mxu0 0.0
  %1690 = vmatpush1.msra.mxu0 0.0
  %1691 = vmatprep.subr.mxu0 0.0
  %1692 = vmatpush1.msra.mxu0 0.0
  %1693 = vmatprep.subr.mxu0 0.0
  %1694 = vmatpush1.msra.mxu0 0.0
  %1695 = vmatprep.subr.mxu0 0.0
  %1696 = vmatpush1.msra.mxu0 0.0
  %1697 = vmatprep.subr.mxu0 0.0
  %1698 = vmatpush1.msra.mxu0 0.0
  %1699 = vmatprep.subr.mxu0 0.0
  %1700 = vmatpush1.msra.mxu0 0.0
  %1701 = vmatprep.subr.mxu0 0.0
  %1702 = vmatpush1.msra.mxu0 0.0
  %1703 = vmatprep.subr.mxu0 0.0
  %1704 = vmatpush1.msra.mxu0 0.0
  %1705 = vmatprep.subr.mxu0 0.0
  %1706 = vmatpush1.msra.mxu0 0.0
  %1707 = vmatprep.subr.mxu0 0.0
  %1708 = vmatpush1.msra.mxu0 0.0
  %1709 = vmatprep.subr.mxu0 0.0
  %1710 = vmatpush1.msra.mxu0 0.0
  %1711 = vmatprep.subr.mxu0 0.0
  %1712 = vmatpush1.msra.mxu0 0.0
  %1713 = vmatprep.subr.mxu0 0.0
  %1714 = vmatpush1.msra.mxu0 0.0
  %1715 = vmatprep.subr.mxu0 0.0
  %1716 = vmatpush1.msra.mxu0 0.0
  %1717 = vmatprep.subr.mxu0 0.0
  %1718 = vmatpush1.msra.mxu0 0.0
  %1719 = vmatprep.subr.mxu0 0.0
  %1720 = vmatpush1.msra.mxu0 0.0
  %1721 = vmatprep.subr.mxu0 0.0
  %1722 = vmatpush1.msra.mxu0 0.0
  %1723 = vmatprep.subr.mxu0 0.0
  %1724 = vmatpush1.msra.mxu0 0.0
  %1725 = vmatprep.subr.mxu0 0.0
  %1726 = vmatpush1.msra.mxu0 0.0
  %1727 = vmatprep.subr.mxu0 0.0
  %1728 = vmatpush1.msra.mxu0 0.0
  %1729 = vmatprep.subr.mxu0 0.0
  %1730 = vmatpush1.msra.mxu0 0.0
  %1731 = vmatprep.subr.mxu0 0.0
  %1732 = vmatpush1.msra.mxu0 0.0
  %1733 = vmatprep.subr.mxu0 0.0
  %1734 = vmatpush1.msra.mxu0 0.0
  %1735 = vmatprep.subr.mxu0 0.0
  %1736 = vmatpush1.msra.mxu0 0.0
  %1737 = vmatprep.subr.mxu0 0.0
  %1738 = vmatpush1.msra.mxu0 0.0
  %1739 = vmatprep.subr.mxu0 0.0
  %1740 = vmatpush1.msra.mxu0 0.0
  %1741 = vmatprep.subr.mxu0 0.0
  %1742 = vmatpush1.msra.mxu0 0.0
  %1743 = vmatprep.subr.mxu0 0.0
  %1744 = vmatpush1.msra.mxu0 0.0
  %1745 = vmatprep.mubr.f32.mxu0 0.0
  %1746 = vmatmul.mubr.f32.gmra.mrb[0].mxu0 %v1676
  %v1747 = vpop.f32.mrb[0].mxu0
  %v1748 = vadd.f32 %v1674, %v1747
  %v1749 = vpop.f32.mrb[0].mxu0
  %1750 = vmatprep.mubr.f32.mxu0 0.0
  %1751 = vmatmul.mubr.f32.gmra.mrb[0].mxu0 %v1679
  %v1752 = vpop.f32.mrb[0].mxu0
  %v1753 = vadd.f32 %v1674, %v1752
  %v1754 = vpop.f32.mrb[0].mxu0
  %1755 = vdwg.mxu0
  %v1756 = vld [vmem:[%s5] sm:$0xff]
  %v1757 = vld [vmem:[%s5 + $0x8] sm:$0xff]
  %v1758 = vld [vmem:[%s5 + $0x10] sm:$0xff]
  %v1759 = vld [vmem:[%s5 + $0x18] sm:$0xff]
  %v1761 = vsel %vm50, %v42, 0
  %v1764 = vsel %vm50, %v43, 0
  %v1767 = vsel %vm50, %v44, 0
  %v1770 = vsel %vm50, %v45, 0
  %1772 = vmatprep.subr.mxu0 0.0
  %1773 = vmatpush1.msra.mxu0 %v1756
  %1774 = vmatprep.subr.mxu0 0.0
  %1775 = vmatpush1.msra.mxu0 %v1757
  %1776 = vmatprep.subr.mxu0 0.0
  %1777 = vmatpush1.msra.mxu0 %v1758
  %1778 = vmatprep.subr.mxu0 0.0
  %1779 = vmatpush1.msra.mxu0 %v1759
  %1780 = vmatprep.subr.mxu0 0.0
  %1781 = vmatpush1.msra.mxu0 0.0
  %1782 = vmatprep.subr.mxu0 0.0
  %1783 = vmatpush1.msra.mxu0 0.0
  %1784 = vmatprep.subr.mxu0 0.0
  %1785 = vmatpush1.msra.mxu0 0.0
  %1786 = vmatprep.subr.mxu0 0.0
  %1787 = vmatpush1.msra.mxu0 0.0
  %1788 = vmatprep.subr.mxu0 0.0
  %1789 = vmatpush1.msra.mxu0 0.0
  %1790 = vmatprep.subr.mxu0 0.0
  %1791 = vmatpush1.msra.mxu0 0.0
  %1792 = vmatprep.subr.mxu0 0.0
  %1793 = vmatpush1.msra.mxu0 0.0
  %1794 = vmatprep.subr.mxu0 0.0
  %1795 = vmatpush1.msra.mxu0 0.0
  %1796 = vmatprep.subr.mxu0 0.0
  %1797 = vmatpush1.msra.mxu0 0.0
  %1798 = vmatprep.subr.mxu0 0.0
  %1799 = vmatpush1.msra.mxu0 0.0
  %1800 = vmatprep.subr.mxu0 0.0
  %1801 = vmatpush1.msra.mxu0 0.0
  %1802 = vmatprep.subr.mxu0 0.0
  %1803 = vmatpush1.msra.mxu0 0.0
  %1804 = vmatprep.subr.mxu0 0.0
  %1805 = vmatpush1.msra.mxu0 0.0
  %1806 = vmatprep.subr.mxu0 0.0
  %1807 = vmatpush1.msra.mxu0 0.0
  %1808 = vmatprep.subr.mxu0 0.0
  %1809 = vmatpush1.msra.mxu0 0.0
  %1810 = vmatprep.subr.mxu0 0.0
  %1811 = vmatpush1.msra.mxu0 0.0
  %1812 = vmatprep.subr.mxu0 0.0
  %1813 = vmatpush1.msra.mxu0 0.0
  %1814 = vmatprep.subr.mxu0 0.0
  %1815 = vmatpush1.msra.mxu0 0.0
  %1816 = vmatprep.subr.mxu0 0.0
  %1817 = vmatpush1.msra.mxu0 0.0
  %1818 = vmatprep.subr.mxu0 0.0
  %1819 = vmatpush1.msra.mxu0 0.0
  %1820 = vmatprep.subr.mxu0 0.0
  %1821 = vmatpush1.msra.mxu0 0.0
  %1822 = vmatprep.subr.mxu0 0.0
  %1823 = vmatpush1.msra.mxu0 0.0
  %1824 = vmatprep.subr.mxu0 0.0
  %1825 = vmatpush1.msra.mxu0 0.0
  %1826 = vmatprep.subr.mxu0 0.0
  %1827 = vmatpush1.msra.mxu0 0.0
  %1828 = vmatprep.subr.mxu0 0.0
  %1829 = vmatpush1.msra.mxu0 0.0
  %1830 = vmatprep.subr.mxu0 0.0
  %1831 = vmatpush1.msra.mxu0 0.0
  %1832 = vmatprep.subr.mxu0 0.0
  %1833 = vmatpush1.msra.mxu0 0.0
  %1834 = vmatprep.subr.mxu0 0.0
  %1835 = vmatpush1.msra.mxu0 0.0
  %1836 = vmatprep.mubr.f32.mxu0 0.0
  %1837 = vmatmul.mubr.f32.gmra.mrb[0].mxu0 %v1761
  %v1838 = vpop.f32.mrb[0].mxu0
  %v1839 = vadd.f32 0.0, %v1838
  %v1840 = vpop.f32.mrb[0].mxu0
  %1841 = vmatprep.mubr.f32.mxu0 0.0
  %1842 = vmatmul.mubr.f32.gmra.mrb[0].mxu0 %v1764
  %v1843 = vpop.f32.mrb[0].mxu0
  %v1844 = vadd.f32 0.0, %v1843
  %v1845 = vpop.f32.mrb[0].mxu0
  %1846 = vmatprep.mubr.f32.mxu0 0.0
  %1847 = vmatmul.mubr.f32.gmra.mrb[0].mxu0 %v1767
  %v1848 = vpop.f32.mrb[0].mxu0
  %v1849 = vadd.f32 0.0, %v1848
  %v1850 = vpop.f32.mrb[0].mxu0
  %1851 = vmatprep.mubr.f32.mxu0 0.0
  %1852 = vmatmul.mubr.f32.gmra.mrb[0].mxu0 %v1770
  %v1853 = vpop.f32.mrb[0].mxu0
  %v1854 = vadd.f32 0.0, %v1853
  %v1855 = vpop.f32.mrb[0].mxu0
  %1856 = vdwg.mxu0
  %v1857 = vlaneseq
  %v1858 = vshrl.u32 %v1857, 7
  %v1859 = vsub.s32 5, %v1858
  %v1860 = vrot.slane %v38, %v1859
  %v1861 = vadd.f32 %v1839, %v1860
  %v1862 = vadd.f32 %v1844, %v1860
  %v1863 = vadd.f32 %v1849, %v1860
  %v1864 = vadd.f32 %v1854, %v1860
  %v1865 = vlaneseq
  %v1866 = vshrl.u32 %v1865, 7
  %v1867 = vsub.s32 6, %v1866
  %v1868 = vrot.slane %v38, %v1867
  %1870 = vrot.lane.b32.xlu0 %v1868, 32
  %v1871 = vpop.permute.xlu0 %1870
  %v1873 = vadd.f32 %v1839, %v1871
  %v1874 = vadd.f32 %v1844, %v1871
  %v1875 = vadd.f32 %v1849, %v1871
  %v1876 = vadd.f32 %v1854, %v1871
  %1879 = vrot.lane.b32.xlu0 %v1748, 120
  %v1880 = vpop.permute.xlu0 %1879
  %1881 = vrot.lane.b32.xlu0 %v1753, 120
  %v1882 = vpop.permute.xlu0 %1881
  %1883 = vrot.lane.b32.xlu0 %v1748, 112
  %v1884 = vpop.permute.xlu0 %1883
  %1885 = vrot.lane.b32.xlu0 %v1753, 112
  %v1886 = vpop.permute.xlu0 %1885
  %1887 = vrot.lane.b32.xlu0 %v1748, 104
  %v1888 = vpop.permute.xlu0 %1887
  %1889 = vrot.lane.b32.xlu0 %v1753, 104
  %v1890 = vpop.permute.xlu0 %1889
  %1895 = vrot.lane.b32.xlu0 %v1861, 120
  %v1896 = vpop.permute.xlu0 %1895
  %1897 = vrot.lane.b32.xlu0 %v1862, 120
  %v1898 = vpop.permute.xlu0 %1897
  %1899 = vrot.lane.b32.xlu0 %v1863, 120
  %v1900 = vpop.permute.xlu0 %1899
  %1901 = vrot.lane.b32.xlu0 %v1864, 120
  %v1902 = vpop.permute.xlu0 %1901
  %1903 = vrot.lane.b32.xlu0 %v1861, 112
  %v1904 = vpop.permute.xlu0 %1903
  %1905 = vrot.lane.b32.xlu0 %v1862, 112
  %v1906 = vpop.permute.xlu0 %1905
  %1907 = vrot.lane.b32.xlu0 %v1863, 112
  %v1908 = vpop.permute.xlu0 %1907
  %1909 = vrot.lane.b32.xlu0 %v1864, 112
  %v1910 = vpop.permute.xlu0 %1909
  %1911 = vrot.lane.b32.xlu0 %v1861, 104
  %v1912 = vpop.permute.xlu0 %1911
  %1913 = vrot.lane.b32.xlu0 %v1862, 104
  %v1914 = vpop.permute.xlu0 %1913
  %1915 = vrot.lane.b32.xlu0 %v1863, 104
  %v1916 = vpop.permute.xlu0 %1915
  %1917 = vrot.lane.b32.xlu0 %v1864, 104
  %v1918 = vpop.permute.xlu0 %1917
  %1923 = vrot.lane.b32.xlu0 %v1873, 120
  %v1924 = vpop.permute.xlu0 %1923
  %1925 = vrot.lane.b32.xlu0 %v1874, 120
  %v1926 = vpop.permute.xlu0 %1925
  %1927 = vrot.lane.b32.xlu0 %v1875, 120
  %v1928 = vpop.permute.xlu0 %1927
  %1929 = vrot.lane.b32.xlu0 %v1876, 120
  %v1930 = vpop.permute.xlu0 %1929
  %1931 = vrot.lane.b32.xlu0 %v1873, 112
  %v1932 = vpop.permute.xlu0 %1931
  %1933 = vrot.lane.b32.xlu0 %v1874, 112
  %v1934 = vpop.permute.xlu0 %1933
  %1935 = vrot.lane.b32.xlu0 %v1875, 112
  %v1936 = vpop.permute.xlu0 %1935
  %1937 = vrot.lane.b32.xlu0 %v1876, 112
  %v1938 = vpop.permute.xlu0 %1937
  %1939 = vrot.lane.b32.xlu0 %v1873, 104
  %v1940 = vpop.permute.xlu0 %1939
  %1941 = vrot.lane.b32.xlu0 %v1874, 104
  %v1942 = vpop.permute.xlu0 %1941
  %1943 = vrot.lane.b32.xlu0 %v1875, 104
  %v1944 = vpop.permute.xlu0 %1943
  %1945 = vrot.lane.b32.xlu0 %v1876, 104
  %v1946 = vpop.permute.xlu0 %1945
  %v1947 = vsel %vm202, %v1748, 0
  %v1949 = vsel %vm202, %v1861, 0
  %v1951 = vsel %vm202, %v1862, 0
  %1953 = vmatprep.subr.mxu0 0.0
  %1954 = vmatpush1.xpose.msra.mxu0 %v1949
  %1955 = vmatprep.subr.mxu0 0.0
  %1956 = vmatpush1.xpose.msra.mxu0 %v1951
  %1957 = vmatprep.subr.mxu0 0.0
  %1958 = vmatpush1.xpose.msra.mxu0 0.0
  %1959 = vmatprep.subr.mxu0 0.0
  %1960 = vmatpush1.xpose.msra.mxu0 0.0
  %1961 = vmatprep.subr.mxu0 0.0
  %1962 = vmatpush1.xpose.msra.mxu0 0.0
  %1963 = vmatprep.subr.mxu0 0.0
  %1964 = vmatpush1.xpose.msra.mxu0 0.0
  %1965 = vmatprep.subr.mxu0 0.0
  %1966 = vmatpush1.xpose.msra.mxu0 0.0
  %1967 = vmatprep.subr.mxu0 0.0
  %1968 = vmatpush1.xpose.msra.mxu0 0.0
  %1969 = vmatprep.subr.mxu0 0.0
  %1970 = vmatpush1.xpose.msra.mxu0 0.0
  %1971 = vmatprep.subr.mxu0 0.0
  %1972 = vmatpush1.xpose.msra.mxu0 0.0
  %1973 = vmatprep.subr.mxu0 0.0
  %1974 = vmatpush1.xpose.msra.mxu0 0.0
  %1975 = vmatprep.subr.mxu0 0.0
  %1976 = vmatpush1.xpose.msra.mxu0 0.0
  %1977 = vmatprep.subr.mxu0 0.0
  %1978 = vmatpush1.xpose.msra.mxu0 0.0
  %1979 = vmatprep.subr.mxu0 0.0
  %1980 = vmatpush1.xpose.msra.mxu0 0.0
  %1981 = vmatprep.subr.mxu0 0.0
  %1982 = vmatpush1.xpose.msra.mxu0 0.0
  %1983 = vmatprep.subr.mxu0 0.0
  %1984 = vmatpush1.xpose.msra.mxu0 0.0
  %1985 = vmatprep.subr.mxu0 0.0
  %1986 = vmatpush1.xpose.msra.mxu0 0.0
  %1987 = vmatprep.subr.mxu0 0.0
  %1988 = vmatpush1.xpose.msra.mxu0 0.0
  %1989 = vmatprep.subr.mxu0 0.0
  %1990 = vmatpush1.xpose.msra.mxu0 0.0
  %1991 = vmatprep.subr.mxu0 0.0
  %1992 = vmatpush1.xpose.msra.mxu0 0.0
  %1993 = vmatprep.subr.mxu0 0.0
  %1994 = vmatpush1.xpose.msra.mxu0 0.0
  %1995 = vmatprep.subr.mxu0 0.0
  %1996 = vmatpush1.xpose.msra.mxu0 0.0
  %1997 = vmatprep.subr.mxu0 0.0
  %1998 = vmatpush1.xpose.msra.mxu0 0.0
  %1999 = vmatprep.subr.mxu0 0.0
  %2000 = vmatpush1.xpose.msra.mxu0 0.0
  %2001 = vmatprep.subr.mxu0 0.0
  %2002 = vmatpush1.xpose.msra.mxu0 0.0
  %2003 = vmatprep.subr.mxu0 0.0
  %2004 = vmatpush1.xpose.msra.mxu0 0.0
  %2005 = vmatprep.subr.mxu0 0.0
  %2006 = vmatpush1.xpose.msra.mxu0 0.0
  %2007 = vmatprep.subr.mxu0 0.0
  %2008 = vmatpush1.xpose.msra.mxu0 0.0
  %2009 = vmatprep.subr.mxu0 0.0
  %2010 = vmatpush1.xpose.msra.mxu0 0.0
  %2011 = vmatprep.subr.mxu0 0.0
  %2012 = vmatpush1.xpose.msra.mxu0 0.0
  %2013 = vmatprep.subr.mxu0 0.0
  %2014 = vmatpush1.xpose.msra.mxu0 0.0
  %2015 = vmatprep.subr.mxu0 0.0
  %2016 = vmatpush1.xpose.msra.mxu0 0.0
  %2017 = vmatprep.mubr.f32.mxu0 0.0
  %2018 = vmatmul.mubr.f32.gmra.mrb[0].mxu0 %v1947
  %v2019 = vpop.f32.mrb[0].mxu0
  %v2020 = vadd.f32 0.0, %v2019
  %v2021 = vpop.f32.mrb[0].mxu0
  %2022 = vdwg.mxu0
  %v2023 = vsel %vm202, %v1753, 0
  %v2025 = vsel %vm202, %v1863, 0
  %v2027 = vsel %vm202, %v1864, 0
  %2029 = vmatprep.subr.mxu0 0.0
  %2030 = vmatpush1.xpose.msra.mxu0 %v2025
  %2031 = vmatprep.subr.mxu0 0.0
  %2032 = vmatpush1.xpose.msra.mxu0 %v2027
  %2033 = vmatprep.subr.mxu0 0.0
  %2034 = vmatpush1.xpose.msra.mxu0 0.0
  %2035 = vmatprep.subr.mxu0 0.0
  %2036 = vmatpush1.xpose.msra.mxu0 0.0
  %2037 = vmatprep.subr.mxu0 0.0
  %2038 = vmatpush1.xpose.msra.mxu0 0.0
  %2039 = vmatprep.subr.mxu0 0.0
  %2040 = vmatpush1.xpose.msra.mxu0 0.0
  %2041 = vmatprep.subr.mxu0 0.0
  %2042 = vmatpush1.xpose.msra.mxu0 0.0
  %2043 = vmatprep.subr.mxu0 0.0
  %2044 = vmatpush1.xpose.msra.mxu0 0.0
  %2045 = vmatprep.subr.mxu0 0.0
  %2046 = vmatpush1.xpose.msra.mxu0 0.0
  %2047 = vmatprep.subr.mxu0 0.0
  %2048 = vmatpush1.xpose.msra.mxu0 0.0
  %2049 = vmatprep.subr.mxu0 0.0
  %2050 = vmatpush1.xpose.msra.mxu0 0.0
  %2051 = vmatprep.subr.mxu0 0.0
  %2052 = vmatpush1.xpose.msra.mxu0 0.0
  %2053 = vmatprep.subr.mxu0 0.0
  %2054 = vmatpush1.xpose.msra.mxu0 0.0
  %2055 = vmatprep.subr.mxu0 0.0
  %2056 = vmatpush1.xpose.msra.mxu0 0.0
  %2057 = vmatprep.subr.mxu0 0.0
  %2058 = vmatpush1.xpose.msra.mxu0 0.0
  %2059 = vmatprep.subr.mxu0 0.0
  %2060 = vmatpush1.xpose.msra.mxu0 0.0
  %2061 = vmatprep.subr.mxu0 0.0
  %2062 = vmatpush1.xpose.msra.mxu0 0.0
  %2063 = vmatprep.subr.mxu0 0.0
  %2064 = vmatpush1.xpose.msra.mxu0 0.0
  %2065 = vmatprep.subr.mxu0 0.0
  %2066 = vmatpush1.xpose.msra.mxu0 0.0
  %2067 = vmatprep.subr.mxu0 0.0
  %2068 = vmatpush1.xpose.msra.mxu0 0.0
  %2069 = vmatprep.subr.mxu0 0.0
  %2070 = vmatpush1.xpose.msra.mxu0 0.0
  %2071 = vmatprep.subr.mxu0 0.0
  %2072 = vmatpush1.xpose.msra.mxu0 0.0
  %2073 = vmatprep.subr.mxu0 0.0
  %2074 = vmatpush1.xpose.msra.mxu0 0.0
  %2075 = vmatprep.subr.mxu0 0.0
  %2076 = vmatpush1.xpose.msra.mxu0 0.0
  %2077 = vmatprep.subr.mxu0 0.0
  %2078 = vmatpush1.xpose.msra.mxu0 0.0
  %2079 = vmatprep.subr.mxu0 0.0
  %2080 = vmatpush1.xpose.msra.mxu0 0.0
  %2081 = vmatprep.subr.mxu0 0.0
  %2082 = vmatpush1.xpose.msra.mxu0 0.0
  %2083 = vmatprep.subr.mxu0 0.0
  %2084 = vmatpush1.xpose.msra.mxu0 0.0
  %2085 = vmatprep.subr.mxu0 0.0
  %2086 = vmatpush1.xpose.msra.mxu0 0.0
  %2087 = vmatprep.subr.mxu0 0.0
  %2088 = vmatpush1.xpose.msra.mxu0 0.0
  %2089 = vmatprep.subr.mxu0 0.0
  %2090 = vmatpush1.xpose.msra.mxu0 0.0
  %2091 = vmatprep.subr.mxu0 0.0
  %2092 = vmatpush1.xpose.msra.mxu0 0.0
  %2093 = vmatprep.mubr.f32.mxu0 0.0
  %2094 = vmatmul.mubr.f32.gmra.mrb[0].mxu0 %v2023
  %v2095 = vpop.f32.mrb[0].mxu0
  %v2096 = vadd.f32 0.0, %v2095
  %v2097 = vpop.f32.mrb[0].mxu0
  %2098 = vdwg.mxu0
  %v2099 = vsel %vm202, %v1880, 0
  %v2101 = vsel %vm202, %v1896, 0
  %v2103 = vsel %vm202, %v1898, 0
  %2105 = vmatprep.subr.mxu0 0.0
  %2106 = vmatpush1.xpose.msra.mxu0 %v2101
  %2107 = vmatprep.subr.mxu0 0.0
  %2108 = vmatpush1.xpose.msra.mxu0 %v2103
  %2109 = vmatprep.subr.mxu0 0.0
  %2110 = vmatpush1.xpose.msra.mxu0 0.0
  %2111 = vmatprep.subr.mxu0 0.0
  %2112 = vmatpush1.xpose.msra.mxu0 0.0
  %2113 = vmatprep.subr.mxu0 0.0
  %2114 = vmatpush1.xpose.msra.mxu0 0.0
  %2115 = vmatprep.subr.mxu0 0.0
  %2116 = vmatpush1.xpose.msra.mxu0 0.0
  %2117 = vmatprep.subr.mxu0 0.0
  %2118 = vmatpush1.xpose.msra.mxu0 0.0
  %2119 = vmatprep.subr.mxu0 0.0
  %2120 = vmatpush1.xpose.msra.mxu0 0.0
  %2121 = vmatprep.subr.mxu0 0.0
  %2122 = vmatpush1.xpose.msra.mxu0 0.0
  %2123 = vmatprep.subr.mxu0 0.0
  %2124 = vmatpush1.xpose.msra.mxu0 0.0
  %2125 = vmatprep.subr.mxu0 0.0
  %2126 = vmatpush1.xpose.msra.mxu0 0.0
  %2127 = vmatprep.subr.mxu0 0.0
  %2128 = vmatpush1.xpose.msra.mxu0 0.0
  %2129 = vmatprep.subr.mxu0 0.0
  %2130 = vmatpush1.xpose.msra.mxu0 0.0
  %2131 = vmatprep.subr.mxu0 0.0
  %2132 = vmatpush1.xpose.msra.mxu0 0.0
  %2133 = vmatprep.subr.mxu0 0.0
  %2134 = vmatpush1.xpose.msra.mxu0 0.0
  %2135 = vmatprep.subr.mxu0 0.0
  %2136 = vmatpush1.xpose.msra.mxu0 0.0
  %2137 = vmatprep.subr.mxu0 0.0
  %2138 = vmatpush1.xpose.msra.mxu0 0.0
  %2139 = vmatprep.subr.mxu0 0.0
  %2140 = vmatpush1.xpose.msra.mxu0 0.0
  %2141 = vmatprep.subr.mxu0 0.0
  %2142 = vmatpush1.xpose.msra.mxu0 0.0
  %2143 = vmatprep.subr.mxu0 0.0
  %2144 = vmatpush1.xpose.msra.mxu0 0.0
  %2145 = vmatprep.subr.mxu0 0.0
  %2146 = vmatpush1.xpose.msra.mxu0 0.0
  %2147 = vmatprep.subr.mxu0 0.0
  %2148 = vmatpush1.xpose.msra.mxu0 0.0
  %2149 = vmatprep.subr.mxu0 0.0
  %2150 = vmatpush1.xpose.msra.mxu0 0.0
  %2151 = vmatprep.subr.mxu0 0.0
  %2152 = vmatpush1.xpose.msra.mxu0 0.0
  %2153 = vmatprep.subr.mxu0 0.0
  %2154 = vmatpush1.xpose.msra.mxu0 0.0
  %2155 = vmatprep.subr.mxu0 0.0
  %2156 = vmatpush1.xpose.msra.mxu0 0.0
  %2157 = vmatprep.subr.mxu0 0.0
  %2158 = vmatpush1.xpose.msra.mxu0 0.0
  %2159 = vmatprep.subr.mxu0 0.0
  %2160 = vmatpush1.xpose.msra.mxu0 0.0
  %2161 = vmatprep.subr.mxu0 0.0
  %2162 = vmatpush1.xpose.msra.mxu0 0.0
  %2163 = vmatprep.subr.mxu0 0.0
  %2164 = vmatpush1.xpose.msra.mxu0 0.0
  %2165 = vmatprep.subr.mxu0 0.0
  %2166 = vmatpush1.xpose.msra.mxu0 0.0
  %2167 = vmatprep.subr.mxu0 0.0
  %2168 = vmatpush1.xpose.msra.mxu0 0.0
  %2169 = vmatprep.mubr.f32.mxu0 0.0
  %2170 = vmatmul.mubr.f32.gmra.mrb[0].mxu0 %v2099
  %v2171 = vpop.f32.mrb[0].mxu0
  %v2172 = vadd.f32 0.0, %v2171
  %v2173 = vpop.f32.mrb[0].mxu0
  %2174 = vdwg.mxu0
  %v2175 = vsel %vm202, %v1882, 0
  %v2177 = vsel %vm202, %v1900, 0
  %v2179 = vsel %vm202, %v1902, 0
  %2181 = vmatprep.subr.mxu0 0.0
  %2182 = vmatpush1.xpose.msra.mxu0 %v2177
  %2183 = vmatprep.subr.mxu0 0.0
  %2184 = vmatpush1.xpose.msra.mxu0 %v2179
  %2185 = vmatprep.subr.mxu0 0.0
  %2186 = vmatpush1.xpose.msra.mxu0 0.0
  %2187 = vmatprep.subr.mxu0 0.0
  %2188 = vmatpush1.xpose.msra.mxu0 0.0
  %2189 = vmatprep.subr.mxu0 0.0
  %2190 = vmatpush1.xpose.msra.mxu0 0.0
  %2191 = vmatprep.subr.mxu0 0.0
  %2192 = vmatpush1.xpose.msra.mxu0 0.0
  %2193 = vmatprep.subr.mxu0 0.0
  %2194 = vmatpush1.xpose.msra.mxu0 0.0
  %2195 = vmatprep.subr.mxu0 0.0
  %2196 = vmatpush1.xpose.msra.mxu0 0.0
  %2197 = vmatprep.subr.mxu0 0.0
  %2198 = vmatpush1.xpose.msra.mxu0 0.0
  %2199 = vmatprep.subr.mxu0 0.0
  %2200 = vmatpush1.xpose.msra.mxu0 0.0
  %2201 = vmatprep.subr.mxu0 0.0
  %2202 = vmatpush1.xpose.msra.mxu0 0.0
  %2203 = vmatprep.subr.mxu0 0.0
  %2204 = vmatpush1.xpose.msra.mxu0 0.0
  %2205 = vmatprep.subr.mxu0 0.0
  %2206 = vmatpush1.xpose.msra.mxu0 0.0
  %2207 = vmatprep.subr.mxu0 0.0
  %2208 = vmatpush1.xpose.msra.mxu0 0.0
  %2209 = vmatprep.subr.mxu0 0.0
  %2210 = vmatpush1.xpose.msra.mxu0 0.0
  %2211 = vmatprep.subr.mxu0 0.0
  %2212 = vmatpush1.xpose.msra.mxu0 0.0
  %2213 = vmatprep.subr.mxu0 0.0
  %2214 = vmatpush1.xpose.msra.mxu0 0.0
  %2215 = vmatprep.subr.mxu0 0.0
  %2216 = vmatpush1.xpose.msra.mxu0 0.0
  %2217 = vmatprep.subr.mxu0 0.0
  %2218 = vmatpush1.xpose.msra.mxu0 0.0
  %2219 = vmatprep.subr.mxu0 0.0
  %2220 = vmatpush1.xpose.msra.mxu0 0.0
  %2221 = vmatprep.subr.mxu0 0.0
  %2222 = vmatpush1.xpose.msra.mxu0 0.0
  %2223 = vmatprep.subr.mxu0 0.0
  %2224 = vmatpush1.xpose.msra.mxu0 0.0
  %2225 = vmatprep.subr.mxu0 0.0
  %2226 = vmatpush1.xpose.msra.mxu0 0.0
  %2227 = vmatprep.subr.mxu0 0.0
  %2228 = vmatpush1.xpose.msra.mxu0 0.0
  %2229 = vmatprep.subr.mxu0 0.0
  %2230 = vmatpush1.xpose.msra.mxu0 0.0
  %2231 = vmatprep.subr.mxu0 0.0
  %2232 = vmatpush1.xpose.msra.mxu0 0.0
  %2233 = vmatprep.subr.mxu0 0.0
  %2234 = vmatpush1.xpose.msra.mxu0 0.0
  %2235 = vmatprep.subr.mxu0 0.0
  %2236 = vmatpush1.xpose.msra.mxu0 0.0
  %2237 = vmatprep.subr.mxu0 0.0
  %2238 = vmatpush1.xpose.msra.mxu0 0.0
  %2239 = vmatprep.subr.mxu0 0.0
  %2240 = vmatpush1.xpose.msra.mxu0 0.0
  %2241 = vmatprep.subr.mxu0 0.0
  %2242 = vmatpush1.xpose.msra.mxu0 0.0
  %2243 = vmatprep.subr.mxu0 0.0
  %2244 = vmatpush1.xpose.msra.mxu0 0.0
  %2245 = vmatprep.mubr.f32.mxu0 0.0
  %2246 = vmatmul.mubr.f32.gmra.mrb[0].mxu0 %v2175
  %v2247 = vpop.f32.mrb[0].mxu0
  %v2248 = vadd.f32 0.0, %v2247
  %v2249 = vpop.f32.mrb[0].mxu0
  %2250 = vdwg.mxu0
  %v2251 = vsel %vm202, %v1884, 0
  %v2253 = vsel %vm202, %v1904, 0
  %v2255 = vsel %vm202, %v1906, 0
  %2257 = vmatprep.subr.mxu0 0.0
  %2258 = vmatpush1.xpose.msra.mxu0 %v2253
  %2259 = vmatprep.subr.mxu0 0.0
  %2260 = vmatpush1.xpose.msra.mxu0 %v2255
  %2261 = vmatprep.subr.mxu0 0.0
  %2262 = vmatpush1.xpose.msra.mxu0 0.0
  %2263 = vmatprep.subr.mxu0 0.0
  %2264 = vmatpush1.xpose.msra.mxu0 0.0
  %2265 = vmatprep.subr.mxu0 0.0
  %2266 = vmatpush1.xpose.msra.mxu0 0.0
  %2267 = vmatprep.subr.mxu0 0.0
  %2268 = vmatpush1.xpose.msra.mxu0 0.0
  %2269 = vmatprep.subr.mxu0 0.0
  %2270 = vmatpush1.xpose.msra.mxu0 0.0
  %2271 = vmatprep.subr.mxu0 0.0
  %2272 = vmatpush1.xpose.msra.mxu0 0.0
  %2273 = vmatprep.subr.mxu0 0.0
  %2274 = vmatpush1.xpose.msra.mxu0 0.0
  %2275 = vmatprep.subr.mxu0 0.0
  %2276 = vmatpush1.xpose.msra.mxu0 0.0
  %2277 = vmatprep.subr.mxu0 0.0
  %2278 = vmatpush1.xpose.msra.mxu0 0.0
  %2279 = vmatprep.subr.mxu0 0.0
  %2280 = vmatpush1.xpose.msra.mxu0 0.0
  %2281 = vmatprep.subr.mxu0 0.0
  %2282 = vmatpush1.xpose.msra.mxu0 0.0
  %2283 = vmatprep.subr.mxu0 0.0
  %2284 = vmatpush1.xpose.msra.mxu0 0.0
  %2285 = vmatprep.subr.mxu0 0.0
  %2286 = vmatpush1.xpose.msra.mxu0 0.0
  %2287 = vmatprep.subr.mxu0 0.0
  %2288 = vmatpush1.xpose.msra.mxu0 0.0
  %2289 = vmatprep.subr.mxu0 0.0
  %2290 = vmatpush1.xpose.msra.mxu0 0.0
  %2291 = vmatprep.subr.mxu0 0.0
  %2292 = vmatpush1.xpose.msra.mxu0 0.0
  %2293 = vmatprep.subr.mxu0 0.0
  %2294 = vmatpush1.xpose.msra.mxu0 0.0
  %2295 = vmatprep.subr.mxu0 0.0
  %2296 = vmatpush1.xpose.msra.mxu0 0.0
  %2297 = vmatprep.subr.mxu0 0.0
  %2298 = vmatpush1.xpose.msra.mxu0 0.0
  %2299 = vmatprep.subr.mxu0 0.0
  %2300 = vmatpush1.xpose.msra.mxu0 0.0
  %2301 = vmatprep.subr.mxu0 0.0
  %2302 = vmatpush1.xpose.msra.mxu0 0.0
  %2303 = vmatprep.subr.mxu0 0.0
  %2304 = vmatpush1.xpose.msra.mxu0 0.0
  %2305 = vmatprep.subr.mxu0 0.0
  %2306 = vmatpush1.xpose.msra.mxu0 0.0
  %2307 = vmatprep.subr.mxu0 0.0
  %2308 = vmatpush1.xpose.msra.mxu0 0.0
  %2309 = vmatprep.subr.mxu0 0.0
  %2310 = vmatpush1.xpose.msra.mxu0 0.0
  %2311 = vmatprep.subr.mxu0 0.0
  %2312 = vmatpush1.xpose.msra.mxu0 0.0
  %2313 = vmatprep.subr.mxu0 0.0
  %2314 = vmatpush1.xpose.msra.mxu0 0.0
  %2315 = vmatprep.subr.mxu0 0.0
  %2316 = vmatpush1.xpose.msra.mxu0 0.0
  %2317 = vmatprep.subr.mxu0 0.0
  %2318 = vmatpush1.xpose.msra.mxu0 0.0
  %2319 = vmatprep.subr.mxu0 0.0
  %2320 = vmatpush1.xpose.msra.mxu0 0.0
  %2321 = vmatprep.mubr.f32.mxu0 0.0
  %2322 = vmatmul.mubr.f32.gmra.mrb[0].mxu0 %v2251
  %v2323 = vpop.f32.mrb[0].mxu0
  %v2324 = vadd.f32 0.0, %v2323
  %v2325 = vpop.f32.mrb[0].mxu0
  %2326 = vdwg.mxu0
  %v2327 = vsel %vm202, %v1886, 0
  %v2329 = vsel %vm202, %v1908, 0
  %v2331 = vsel %vm202, %v1910, 0
  %2333 = vmatprep.subr.mxu0 0.0
  %2334 = vmatpush1.xpose.msra.mxu0 %v2329
  %2335 = vmatprep.subr.mxu0 0.0
  %2336 = vmatpush1.xpose.msra.mxu0 %v2331
  %2337 = vmatprep.subr.mxu0 0.0
  %2338 = vmatpush1.xpose.msra.mxu0 0.0
  %2339 = vmatprep.subr.mxu0 0.0
  %2340 = vmatpush1.xpose.msra.mxu0 0.0
  %2341 = vmatprep.subr.mxu0 0.0
  %2342 = vmatpush1.xpose.msra.mxu0 0.0
  %2343 = vmatprep.subr.mxu0 0.0
  %2344 = vmatpush1.xpose.msra.mxu0 0.0
  %2345 = vmatprep.subr.mxu0 0.0
  %2346 = vmatpush1.xpose.msra.mxu0 0.0
  %2347 = vmatprep.subr.mxu0 0.0
  %2348 = vmatpush1.xpose.msra.mxu0 0.0
  %2349 = vmatprep.subr.mxu0 0.0
  %2350 = vmatpush1.xpose.msra.mxu0 0.0
  %2351 = vmatprep.subr.mxu0 0.0
  %2352 = vmatpush1.xpose.msra.mxu0 0.0
  %2353 = vmatprep.subr.mxu0 0.0
  %2354 = vmatpush1.xpose.msra.mxu0 0.0
  %2355 = vmatprep.subr.mxu0 0.0
  %2356 = vmatpush1.xpose.msra.mxu0 0.0
  %2357 = vmatprep.subr.mxu0 0.0
  %2358 = vmatpush1.xpose.msra.mxu0 0.0
  %2359 = vmatprep.subr.mxu0 0.0
  %2360 = vmatpush1.xpose.msra.mxu0 0.0
  %2361 = vmatprep.subr.mxu0 0.0
  %2362 = vmatpush1.xpose.msra.mxu0 0.0
  %2363 = vmatprep.subr.mxu0 0.0
  %2364 = vmatpush1.xpose.msra.mxu0 0.0
  %2365 = vmatprep.subr.mxu0 0.0
  %2366 = vmatpush1.xpose.msra.mxu0 0.0
  %2367 = vmatprep.subr.mxu0 0.0
  %2368 = vmatpush1.xpose.msra.mxu0 0.0
  %2369 = vmatprep.subr.mxu0 0.0
  %2370 = vmatpush1.xpose.msra.mxu0 0.0
  %2371 = vmatprep.subr.mxu0 0.0
  %2372 = vmatpush1.xpose.msra.mxu0 0.0
  %2373 = vmatprep.subr.mxu0 0.0
  %2374 = vmatpush1.xpose.msra.mxu0 0.0
  %2375 = vmatprep.subr.mxu0 0.0
  %2376 = vmatpush1.xpose.msra.mxu0 0.0
  %2377 = vmatprep.subr.mxu0 0.0
  %2378 = vmatpush1.xpose.msra.mxu0 0.0
  %2379 = vmatprep.subr.mxu0 0.0
  %2380 = vmatpush1.xpose.msra.mxu0 0.0
  %2381 = vmatprep.subr.mxu0 0.0
  %2382 = vmatpush1.xpose.msra.mxu0 0.0
  %2383 = vmatprep.subr.mxu0 0.0
  %2384 = vmatpush1.xpose.msra.mxu0 0.0
  %2385 = vmatprep.subr.mxu0 0.0
  %2386 = vmatpush1.xpose.msra.mxu0 0.0
  %2387 = vmatprep.subr.mxu0 0.0
  %2388 = vmatpush1.xpose.msra.mxu0 0.0
  %2389 = vmatprep.subr.mxu0 0.0
  %2390 = vmatpush1.xpose.msra.mxu0 0.0
  %2391 = vmatprep.subr.mxu0 0.0
  %2392 = vmatpush1.xpose.msra.mxu0 0.0
  %2393 = vmatprep.subr.mxu0 0.0
  %2394 = vmatpush1.xpose.msra.mxu0 0.0
  %2395 = vmatprep.subr.mxu0 0.0
  %2396 = vmatpush1.xpose.msra.mxu0 0.0
  %2397 = vmatprep.mubr.f32.mxu0 0.0
  %2398 = vmatmul.mubr.f32.gmra.mrb[0].mxu0 %v2327
  %v2399 = vpop.f32.mrb[0].mxu0
  %v2400 = vadd.f32 0.0, %v2399
  %v2401 = vpop.f32.mrb[0].mxu0
  %2402 = vdwg.mxu0
  %v2403 = vsel %vm202, %v1888, 0
  %v2405 = vsel %vm202, %v1912, 0
  %v2407 = vsel %vm202, %v1914, 0
  %2409 = vmatprep.subr.mxu0 0.0
  %2410 = vmatpush1.xpose.msra.mxu0 %v2405
  %2411 = vmatprep.subr.mxu0 0.0
  %2412 = vmatpush1.xpose.msra.mxu0 %v2407
  %2413 = vmatprep.subr.mxu0 0.0
  %2414 = vmatpush1.xpose.msra.mxu0 0.0
  %2415 = vmatprep.subr.mxu0 0.0
  %2416 = vmatpush1.xpose.msra.mxu0 0.0
  %2417 = vmatprep.subr.mxu0 0.0
  %2418 = vmatpush1.xpose.msra.mxu0 0.0
  %2419 = vmatprep.subr.mxu0 0.0
  %2420 = vmatpush1.xpose.msra.mxu0 0.0
  %2421 = vmatprep.subr.mxu0 0.0
  %2422 = vmatpush1.xpose.msra.mxu0 0.0
  %2423 = vmatprep.subr.mxu0 0.0
  %2424 = vmatpush1.xpose.msra.mxu0 0.0
  %2425 = vmatprep.subr.mxu0 0.0
  %2426 = vmatpush1.xpose.msra.mxu0 0.0
  %2427 = vmatprep.subr.mxu0 0.0
  %2428 = vmatpush1.xpose.msra.mxu0 0.0
  %2429 = vmatprep.subr.mxu0 0.0
  %2430 = vmatpush1.xpose.msra.mxu0 0.0
  %2431 = vmatprep.subr.mxu0 0.0
  %2432 = vmatpush1.xpose.msra.mxu0 0.0
  %2433 = vmatprep.subr.mxu0 0.0
  %2434 = vmatpush1.xpose.msra.mxu0 0.0
  %2435 = vmatprep.subr.mxu0 0.0
  %2436 = vmatpush1.xpose.msra.mxu0 0.0
  %2437 = vmatprep.subr.mxu0 0.0
  %2438 = vmatpush1.xpose.msra.mxu0 0.0
  %2439 = vmatprep.subr.mxu0 0.0
  %2440 = vmatpush1.xpose.msra.mxu0 0.0
  %2441 = vmatprep.subr.mxu0 0.0
  %2442 = vmatpush1.xpose.msra.mxu0 0.0
  %2443 = vmatprep.subr.mxu0 0.0
  %2444 = vmatpush1.xpose.msra.mxu0 0.0
  %2445 = vmatprep.subr.mxu0 0.0
  %2446 = vmatpush1.xpose.msra.mxu0 0.0
  %2447 = vmatprep.subr.mxu0 0.0
  %2448 = vmatpush1.xpose.msra.mxu0 0.0
  %2449 = vmatprep.subr.mxu0 0.0
  %2450 = vmatpush1.xpose.msra.mxu0 0.0
  %2451 = vmatprep.subr.mxu0 0.0
  %2452 = vmatpush1.xpose.msra.mxu0 0.0
  %2453 = vmatprep.subr.mxu0 0.0
  %2454 = vmatpush1.xpose.msra.mxu0 0.0
  %2455 = vmatprep.subr.mxu0 0.0
  %2456 = vmatpush1.xpose.msra.mxu0 0.0
  %2457 = vmatprep.subr.mxu0 0.0
  %2458 = vmatpush1.xpose.msra.mxu0 0.0
  %2459 = vmatprep.subr.mxu0 0.0
  %2460 = vmatpush1.xpose.msra.mxu0 0.0
  %2461 = vmatprep.subr.mxu0 0.0
  %2462 = vmatpush1.xpose.msra.mxu0 0.0
  %2463 = vmatprep.subr.mxu0 0.0
  %2464 = vmatpush1.xpose.msra.mxu0 0.0
  %2465 = vmatprep.subr.mxu0 0.0
  %2466 = vmatpush1.xpose.msra.mxu0 0.0
  %2467 = vmatprep.subr.mxu0 0.0
  %2468 = vmatpush1.xpose.msra.mxu0 0.0
  %2469 = vmatprep.subr.mxu0 0.0
  %2470 = vmatpush1.xpose.msra.mxu0 0.0
  %2471 = vmatprep.subr.mxu0 0.0
  %2472 = vmatpush1.xpose.msra.mxu0 0.0
  %2473 = vmatprep.mubr.f32.mxu0 0.0
  %2474 = vmatmul.mubr.f32.gmra.mrb[0].mxu0 %v2403
  %v2475 = vpop.f32.mrb[0].mxu0
  %v2476 = vadd.f32 0.0, %v2475
  %v2477 = vpop.f32.mrb[0].mxu0
  %2478 = vdwg.mxu0
  %v2479 = vsel %vm202, %v1890, 0
  %v2481 = vsel %vm202, %v1916, 0
  %v2483 = vsel %vm202, %v1918, 0
  %2485 = vmatprep.subr.mxu0 0.0
  %2486 = vmatpush1.xpose.msra.mxu0 %v2481
  %2487 = vmatprep.subr.mxu0 0.0
  %2488 = vmatpush1.xpose.msra.mxu0 %v2483
  %2489 = vmatprep.subr.mxu0 0.0
  %2490 = vmatpush1.xpose.msra.mxu0 0.0
  %2491 = vmatprep.subr.mxu0 0.0
  %2492 = vmatpush1.xpose.msra.mxu0 0.0
  %2493 = vmatprep.subr.mxu0 0.0
  %2494 = vmatpush1.xpose.msra.mxu0 0.0
  %2495 = vmatprep.subr.mxu0 0.0
  %2496 = vmatpush1.xpose.msra.mxu0 0.0
  %2497 = vmatprep.subr.mxu0 0.0
  %2498 = vmatpush1.xpose.msra.mxu0 0.0
  %2499 = vmatprep.subr.mxu0 0.0
  %2500 = vmatpush1.xpose.msra.mxu0 0.0
  %2501 = vmatprep.subr.mxu0 0.0
  %2502 = vmatpush1.xpose.msra.mxu0 0.0
  %2503 = vmatprep.subr.mxu0 0.0
  %2504 = vmatpush1.xpose.msra.mxu0 0.0
  %2505 = vmatprep.subr.mxu0 0.0
  %2506 = vmatpush1.xpose.msra.mxu0 0.0
  %2507 = vmatprep.subr.mxu0 0.0
  %2508 = vmatpush1.xpose.msra.mxu0 0.0
  %2509 = vmatprep.subr.mxu0 0.0
  %2510 = vmatpush1.xpose.msra.mxu0 0.0
  %2511 = vmatprep.subr.mxu0 0.0
  %2512 = vmatpush1.xpose.msra.mxu0 0.0
  %2513 = vmatprep.subr.mxu0 0.0
  %2514 = vmatpush1.xpose.msra.mxu0 0.0
  %2515 = vmatprep.subr.mxu0 0.0
  %2516 = vmatpush1.xpose.msra.mxu0 0.0
  %2517 = vmatprep.subr.mxu0 0.0
  %2518 = vmatpush1.xpose.msra.mxu0 0.0
  %2519 = vmatprep.subr.mxu0 0.0
  %2520 = vmatpush1.xpose.msra.mxu0 0.0
  %2521 = vmatprep.subr.mxu0 0.0
  %2522 = vmatpush1.xpose.msra.mxu0 0.0
  %2523 = vmatprep.subr.mxu0 0.0
  %2524 = vmatpush1.xpose.msra.mxu0 0.0
  %2525 = vmatprep.subr.mxu0 0.0
  %2526 = vmatpush1.xpose.msra.mxu0 0.0
  %2527 = vmatprep.subr.mxu0 0.0
  %2528 = vmatpush1.xpose.msra.mxu0 0.0
  %2529 = vmatprep.subr.mxu0 0.0
  %2530 = vmatpush1.xpose.msra.mxu0 0.0
  %2531 = vmatprep.subr.mxu0 0.0
  %2532 = vmatpush1.xpose.msra.mxu0 0.0
  %2533 = vmatprep.subr.mxu0 0.0
  %2534 = vmatpush1.xpose.msra.mxu0 0.0
  %2535 = vmatprep.subr.mxu0 0.0
  %2536 = vmatpush1.xpose.msra.mxu0 0.0
  %2537 = vmatprep.subr.mxu0 0.0
  %2538 = vmatpush1.xpose.msra.mxu0 0.0
  %2539 = vmatprep.subr.mxu0 0.0
  %2540 = vmatpush1.xpose.msra.mxu0 0.0
  %2541 = vmatprep.subr.mxu0 0.0
  %2542 = vmatpush1.xpose.msra.mxu0 0.0
  %2543 = vmatprep.subr.mxu0 0.0
  %2544 = vmatpush1.xpose.msra.mxu0 0.0
  %2545 = vmatprep.subr.mxu0 0.0
  %2546 = vmatpush1.xpose.msra.mxu0 0.0
  %2547 = vmatprep.subr.mxu0 0.0
  %2548 = vmatpush1.xpose.msra.mxu0 0.0
  %2549 = vmatprep.mubr.f32.mxu0 0.0
  %2550 = vmatmul.mubr.f32.gmra.mrb[0].mxu0 %v2479
  %v2551 = vpop.f32.mrb[0].mxu0
  %v2552 = vadd.f32 0.0, %v2551
  %v2553 = vpop.f32.mrb[0].mxu0
  %2554 = vdwg.mxu0
  %v2555 = vlaneseq
  %v2556 = vand.u32 %v2555, 127
  %vm2557 = vcmp.lt.s32.totalorder %v2556, 12
  %v2558 = vsel %vm2557, %v2020, -1e+30
  %v2559 = vsel %vm2557, %v2096, -1e+30
  %v2560 = vsel %vm2557, %v2172, -1e+30
  %v2561 = vsel %vm2557, %v2248, -1e+30
  %v2562 = vsel %vm2557, %v2324, -1e+30
  %v2563 = vsel %vm2557, %v2400, -1e+30
  %v2564 = vsel %vm2557, %v2476, -1e+30
  %v2565 = vsel %vm2557, %v2552, -1e+30
  %v2566 = vsel %vm1531, %v2558, -inf
  %2567 = vmax.xlane.f32.xlu0 %v2566
  %v2568 = vpop.xlane.xlu0 %2567
  %v2569 = vsel %vm1531, %v2559, -inf
  %2570 = vmax.xlane.f32.xlu0 %v2569
  %v2571 = vpop.xlane.xlu0 %2570
  %v2572 = vsel %vm1531, %v2560, -inf
  %2573 = vmax.xlane.f32.xlu0 %v2572
  %v2574 = vpop.xlane.xlu0 %2573
  %v2575 = vsel %vm1531, %v2561, -inf
  %2576 = vmax.xlane.f32.xlu0 %v2575
  %v2577 = vpop.xlane.xlu0 %2576
  %v2578 = vsel %vm1531, %v2562, -inf
  %2579 = vmax.xlane.f32.xlu0 %v2578
  %v2580 = vpop.xlane.xlu0 %2579
  %v2581 = vsel %vm1531, %v2563, -inf
  %2582 = vmax.xlane.f32.xlu0 %v2581
  %v2583 = vpop.xlane.xlu0 %2582
  %v2584 = vsel %vm1531, %v2564, -inf
  %2585 = vmax.xlane.f32.xlu0 %v2584
  %v2586 = vpop.xlane.xlu0 %2585
  %v2587 = vsel %vm1531, %v2565, -inf
  %2588 = vmax.xlane.f32.xlu0 %v2587
  %v2589 = vpop.xlane.xlu0 %2588
  %v2590 = vsub.f32 %v2558, %v2568
  %v2591 = vsub.f32 %v2559, %v2571
  %v2592 = vsub.f32 %v2560, %v2574
  %v2593 = vsub.f32 %v2561, %v2577
  %v2594 = vsub.f32 %v2562, %v2580
  %v2595 = vsub.f32 %v2563, %v2583
  %v2596 = vsub.f32 %v2564, %v2586
  %v2597 = vsub.f32 %v2565, %v2589
  %v2598 = vmul.f32 %v2590, 1.442695
  %v2599 = vpow.pop %v2598
  %v2600 = vmul.f32 %v2591, 1.442695
  %v2601 = vpow.pop %v2600
  %v2602 = vmul.f32 %v2592, 1.442695
  %v2603 = vpow.pop %v2602
  %v2604 = vmul.f32 %v2593, 1.442695
  %v2605 = vpow.pop %v2604
  %v2606 = vmul.f32 %v2594, 1.442695
  %v2607 = vpow.pop %v2606
  %v2608 = vmul.f32 %v2595, 1.442695
  %v2609 = vpow.pop %v2608
  %v2610 = vmul.f32 %v2596, 1.442695
  %v2611 = vpow.pop %v2610
  %v2612 = vmul.f32 %v2597, 1.442695
  %v2613 = vpow.pop %v2612
  %v2614 = vsel %vm1531, %v2599, 0.0
  %2615 = vadd.xlane.f32.xlu0 %v2614
  %v2616 = vpop.xlane.xlu0 %2615
  %v2617 = vsel %vm1531, %v2601, 0.0
  %2618 = vadd.xlane.f32.xlu0 %v2617
  %v2619 = vpop.xlane.xlu0 %2618
  %v2620 = vsel %vm1531, %v2603, 0.0
  %2621 = vadd.xlane.f32.xlu0 %v2620
  %v2622 = vpop.xlane.xlu0 %2621
  %v2623 = vsel %vm1531, %v2605, 0.0
  %2624 = vadd.xlane.f32.xlu0 %v2623
  %v2625 = vpop.xlane.xlu0 %2624
  %v2626 = vsel %vm1531, %v2607, 0.0
  %2627 = vadd.xlane.f32.xlu0 %v2626
  %v2628 = vpop.xlane.xlu0 %2627
  %v2629 = vsel %vm1531, %v2609, 0.0
  %2630 = vadd.xlane.f32.xlu0 %v2629
  %v2631 = vpop.xlane.xlu0 %2630
  %v2632 = vsel %vm1531, %v2611, 0.0
  %2633 = vadd.xlane.f32.xlu0 %v2632
  %v2634 = vpop.xlane.xlu0 %2633
  %v2635 = vsel %vm1531, %v2613, 0.0
  %2636 = vadd.xlane.f32.xlu0 %v2635
  %v2637 = vpop.xlane.xlu0 %2636
  %v2638 = vrcp.pop %v2616
  %v2639 = vrcp.pop %v2619
  %v2640 = vrcp.pop %v2622
  %v2641 = vrcp.pop %v2625
  %v2642 = vrcp.pop %v2628
  %v2643 = vrcp.pop %v2631
  %v2644 = vrcp.pop %v2634
  %v2645 = vrcp.pop %v2637
  %v2646 = vmul.f32 %v2599, %v2638
  %v2647 = vmul.f32 %v2601, %v2639
  %v2648 = vmul.f32 %v2603, %v2640
  %v2649 = vmul.f32 %v2605, %v2641
  %v2650 = vmul.f32 %v2607, %v2642
  %v2651 = vmul.f32 %v2609, %v2643
  %v2652 = vmul.f32 %v2611, %v2644
  %v2653 = vmul.f32 %v2613, %v2645
  %2654 = vrot.lane.b32.xlu0 %v1873, 96
  %v2655 = vpop.permute.xlu0 %2654
  %2656 = vrot.lane.b32.xlu0 %v1874, 96
  %v2657 = vpop.permute.xlu0 %2656
  %v2661 = vsel %vm1531, %v2646, 0
  %2663 = vmatprep.subr.mxu0 0.0
  %2664 = vmatpush1.msra.mxu0 %v2655
  %2665 = vmatprep.subr.mxu0 0.0
  %2666 = vmatpush1.msra.mxu0 %v2657
  %2667 = vmatprep.subr.mxu0 0.0
  %2668 = vmatpush1.msra.mxu0 0.0
  %2669 = vmatprep.subr.mxu0 0.0
  %2670 = vmatpush1.msra.mxu0 0.0
  %2671 = vmatprep.subr.mxu0 0.0
  %2672 = vmatpush1.msra.mxu0 0.0
  %2673 = vmatprep.subr.mxu0 0.0
  %2674 = vmatpush1.msra.mxu0 0.0
  %2675 = vmatprep.subr.mxu0 0.0
  %2676 = vmatpush1.msra.mxu0 0.0
  %2677 = vmatprep.subr.mxu0 0.0
  %2678 = vmatpush1.msra.mxu0 0.0
  %2679 = vmatprep.subr.mxu0 0.0
  %2680 = vmatpush1.msra.mxu0 0.0
  %2681 = vmatprep.subr.mxu0 0.0
  %2682 = vmatpush1.msra.mxu0 0.0
  %2683 = vmatprep.subr.mxu0 0.0
  %2684 = vmatpush1.msra.mxu0 0.0
  %2685 = vmatprep.subr.mxu0 0.0
  %2686 = vmatpush1.msra.mxu0 0.0
  %2687 = vmatprep.subr.mxu0 0.0
  %2688 = vmatpush1.msra.mxu0 0.0
  %2689 = vmatprep.subr.mxu0 0.0
  %2690 = vmatpush1.msra.mxu0 0.0
  %2691 = vmatprep.subr.mxu0 0.0
  %2692 = vmatpush1.msra.mxu0 0.0
  %2693 = vmatprep.subr.mxu0 0.0
  %2694 = vmatpush1.msra.mxu0 0.0
  %2695 = vmatprep.subr.mxu0 0.0
  %2696 = vmatpush1.msra.mxu0 0.0
  %2697 = vmatprep.subr.mxu0 0.0
  %2698 = vmatpush1.msra.mxu0 0.0
  %2699 = vmatprep.subr.mxu0 0.0
  %2700 = vmatpush1.msra.mxu0 0.0
  %2701 = vmatprep.subr.mxu0 0.0
  %2702 = vmatpush1.msra.mxu0 0.0
  %2703 = vmatprep.subr.mxu0 0.0
  %2704 = vmatpush1.msra.mxu0 0.0
  %2705 = vmatprep.subr.mxu0 0.0
  %2706 = vmatpush1.msra.mxu0 0.0
  %2707 = vmatprep.subr.mxu0 0.0
  %2708 = vmatpush1.msra.mxu0 0.0
  %2709 = vmatprep.subr.mxu0 0.0
  %2710 = vmatpush1.msra.mxu0 0.0
  %2711 = vmatprep.subr.mxu0 0.0
  %2712 = vmatpush1.msra.mxu0 0.0
  %2713 = vmatprep.subr.mxu0 0.0
  %2714 = vmatpush1.msra.mxu0 0.0
  %2715 = vmatprep.subr.mxu0 0.0
  %2716 = vmatpush1.msra.mxu0 0.0
  %2717 = vmatprep.subr.mxu0 0.0
  %2718 = vmatpush1.msra.mxu0 0.0
  %2719 = vmatprep.subr.mxu0 0.0
  %2720 = vmatpush1.msra.mxu0 0.0
  %2721 = vmatprep.subr.mxu0 0.0
  %2722 = vmatpush1.msra.mxu0 0.0
  %2723 = vmatprep.subr.mxu0 0.0
  %2724 = vmatpush1.msra.mxu0 0.0
  %2725 = vmatprep.subr.mxu0 0.0
  %2726 = vmatpush1.msra.mxu0 0.0
  %2727 = vmatprep.mubr.f32.mxu0 0.0
  %2728 = vmatmul.mubr.f32.gmra.mrb[0].mxu0 %v2661
  %v2729 = vpop.f32.mrb[0].mxu0
  %v2730 = vadd.f32 0.0, %v2729
  %v2731 = vpop.f32.mrb[0].mxu0
  %2732 = vdwg.mxu0
  %2733 = vrot.lane.b32.xlu0 %v1875, 96
  %v2734 = vpop.permute.xlu0 %2733
  %2735 = vrot.lane.b32.xlu0 %v1876, 96
  %v2736 = vpop.permute.xlu0 %2735
  %v2740 = vsel %vm1531, %v2647, 0
  %2742 = vmatprep.subr.mxu0 0.0
  %2743 = vmatpush1.msra.mxu0 %v2734
  %2744 = vmatprep.subr.mxu0 0.0
  %2745 = vmatpush1.msra.mxu0 %v2736
  %2746 = vmatprep.subr.mxu0 0.0
  %2747 = vmatpush1.msra.mxu0 0.0
  %2748 = vmatprep.subr.mxu0 0.0
  %2749 = vmatpush1.msra.mxu0 0.0
  %2750 = vmatprep.subr.mxu0 0.0
  %2751 = vmatpush1.msra.mxu0 0.0
  %2752 = vmatprep.subr.mxu0 0.0
  %2753 = vmatpush1.msra.mxu0 0.0
  %2754 = vmatprep.subr.mxu0 0.0
  %2755 = vmatpush1.msra.mxu0 0.0
  %2756 = vmatprep.subr.mxu0 0.0
  %2757 = vmatpush1.msra.mxu0 0.0
  %2758 = vmatprep.subr.mxu0 0.0
  %2759 = vmatpush1.msra.mxu0 0.0
  %2760 = vmatprep.subr.mxu0 0.0
  %2761 = vmatpush1.msra.mxu0 0.0
  %2762 = vmatprep.subr.mxu0 0.0
  %2763 = vmatpush1.msra.mxu0 0.0
  %2764 = vmatprep.subr.mxu0 0.0
  %2765 = vmatpush1.msra.mxu0 0.0
  %2766 = vmatprep.subr.mxu0 0.0
  %2767 = vmatpush1.msra.mxu0 0.0
  %2768 = vmatprep.subr.mxu0 0.0
  %2769 = vmatpush1.msra.mxu0 0.0
  %2770 = vmatprep.subr.mxu0 0.0
  %2771 = vmatpush1.msra.mxu0 0.0
  %2772 = vmatprep.subr.mxu0 0.0
  %2773 = vmatpush1.msra.mxu0 0.0
  %2774 = vmatprep.subr.mxu0 0.0
  %2775 = vmatpush1.msra.mxu0 0.0
  %2776 = vmatprep.subr.mxu0 0.0
  %2777 = vmatpush1.msra.mxu0 0.0
  %2778 = vmatprep.subr.mxu0 0.0
  %2779 = vmatpush1.msra.mxu0 0.0
  %2780 = vmatprep.subr.mxu0 0.0
  %2781 = vmatpush1.msra.mxu0 0.0
  %2782 = vmatprep.subr.mxu0 0.0
  %2783 = vmatpush1.msra.mxu0 0.0
  %2784 = vmatprep.subr.mxu0 0.0
  %2785 = vmatpush1.msra.mxu0 0.0
  %2786 = vmatprep.subr.mxu0 0.0
  %2787 = vmatpush1.msra.mxu0 0.0
  %2788 = vmatprep.subr.mxu0 0.0
  %2789 = vmatpush1.msra.mxu0 0.0
  %2790 = vmatprep.subr.mxu0 0.0
  %2791 = vmatpush1.msra.mxu0 0.0
  %2792 = vmatprep.subr.mxu0 0.0
  %2793 = vmatpush1.msra.mxu0 0.0
  %2794 = vmatprep.subr.mxu0 0.0
  %2795 = vmatpush1.msra.mxu0 0.0
  %2796 = vmatprep.subr.mxu0 0.0
  %2797 = vmatpush1.msra.mxu0 0.0
  %2798 = vmatprep.subr.mxu0 0.0
  %2799 = vmatpush1.msra.mxu0 0.0
  %2800 = vmatprep.subr.mxu0 0.0
  %2801 = vmatpush1.msra.mxu0 0.0
  %2802 = vmatprep.subr.mxu0 0.0
  %2803 = vmatpush1.msra.mxu0 0.0
  %2804 = vmatprep.subr.mxu0 0.0
  %2805 = vmatpush1.msra.mxu0 0.0
  %2806 = vmatprep.mubr.f32.mxu0 0.0
  %2807 = vmatmul.mubr.f32.gmra.mrb[0].mxu0 %v2740
  %v2808 = vpop.f32.mrb[0].mxu0
  %v2809 = vadd.f32 0.0, %v2808
  %v2810 = vpop.f32.mrb[0].mxu0
  %2811 = vdwg.mxu0
  %2812 = vrot.lane.b32.xlu0 %v1924, 96
  %v2813 = vpop.permute.xlu0 %2812
  %2814 = vrot.lane.b32.xlu0 %v1926, 96
  %v2815 = vpop.permute.xlu0 %2814
  %v2819 = vsel %vm1531, %v2648, 0
  %2821 = vmatprep.subr.mxu0 0.0
  %2822 = vmatpush1.msra.mxu0 %v2813
  %2823 = vmatprep.subr.mxu0 0.0
  %2824 = vmatpush1.msra.mxu0 %v2815
  %2825 = vmatprep.subr.mxu0 0.0
  %2826 = vmatpush1.msra.mxu0 0.0
  %2827 = vmatprep.subr.mxu0 0.0
  %2828 = vmatpush1.msra.mxu0 0.0
  %2829 = vmatprep.subr.mxu0 0.0
  %2830 = vmatpush1.msra.mxu0 0.0
  %2831 = vmatprep.subr.mxu0 0.0
  %2832 = vmatpush1.msra.mxu0 0.0
  %2833 = vmatprep.subr.mxu0 0.0
  %2834 = vmatpush1.msra.mxu0 0.0
  %2835 = vmatprep.subr.mxu0 0.0
  %2836 = vmatpush1.msra.mxu0 0.0
  %2837 = vmatprep.subr.mxu0 0.0
  %2838 = vmatpush1.msra.mxu0 0.0
  %2839 = vmatprep.subr.mxu0 0.0
  %2840 = vmatpush1.msra.mxu0 0.0
  %2841 = vmatprep.subr.mxu0 0.0
  %2842 = vmatpush1.msra.mxu0 0.0
  %2843 = vmatprep.subr.mxu0 0.0
  %2844 = vmatpush1.msra.mxu0 0.0
  %2845 = vmatprep.subr.mxu0 0.0
  %2846 = vmatpush1.msra.mxu0 0.0
  %2847 = vmatprep.subr.mxu0 0.0
  %2848 = vmatpush1.msra.mxu0 0.0
  %2849 = vmatprep.subr.mxu0 0.0
  %2850 = vmatpush1.msra.mxu0 0.0
  %2851 = vmatprep.subr.mxu0 0.0
  %2852 = vmatpush1.msra.mxu0 0.0
  %2853 = vmatprep.subr.mxu0 0.0
  %2854 = vmatpush1.msra.mxu0 0.0
  %2855 = vmatprep.subr.mxu0 0.0
  %2856 = vmatpush1.msra.mxu0 0.0
  %2857 = vmatprep.subr.mxu0 0.0
  %2858 = vmatpush1.msra.mxu0 0.0
  %2859 = vmatprep.subr.mxu0 0.0
  %2860 = vmatpush1.msra.mxu0 0.0
  %2861 = vmatprep.subr.mxu0 0.0
  %2862 = vmatpush1.msra.mxu0 0.0
  %2863 = vmatprep.subr.mxu0 0.0
  %2864 = vmatpush1.msra.mxu0 0.0
  %2865 = vmatprep.subr.mxu0 0.0
  %2866 = vmatpush1.msra.mxu0 0.0
  %2867 = vmatprep.subr.mxu0 0.0
  %2868 = vmatpush1.msra.mxu0 0.0
  %2869 = vmatprep.subr.mxu0 0.0
  %2870 = vmatpush1.msra.mxu0 0.0
  %2871 = vmatprep.subr.mxu0 0.0
  %2872 = vmatpush1.msra.mxu0 0.0
  %2873 = vmatprep.subr.mxu0 0.0
  %2874 = vmatpush1.msra.mxu0 0.0
  %2875 = vmatprep.subr.mxu0 0.0
  %2876 = vmatpush1.msra.mxu0 0.0
  %2877 = vmatprep.subr.mxu0 0.0
  %2878 = vmatpush1.msra.mxu0 0.0
  %2879 = vmatprep.subr.mxu0 0.0
  %2880 = vmatpush1.msra.mxu0 0.0
  %2881 = vmatprep.subr.mxu0 0.0
  %2882 = vmatpush1.msra.mxu0 0.0
  %2883 = vmatprep.subr.mxu0 0.0
  %2884 = vmatpush1.msra.mxu0 0.0
  %2885 = vmatprep.mubr.f32.mxu0 0.0
  %2886 = vmatmul.mubr.f32.gmra.mrb[0].mxu0 %v2819
  %v2887 = vpop.f32.mrb[0].mxu0
  %v2888 = vadd.f32 0.0, %v2887
  %v2889 = vpop.f32.mrb[0].mxu0
  %2890 = vdwg.mxu0
  %2891 = vrot.lane.b32.xlu0 %v1928, 96
  %v2892 = vpop.permute.xlu0 %2891
  %2893 = vrot.lane.b32.xlu0 %v1930, 96
  %v2894 = vpop.permute.xlu0 %2893
  %v2898 = vsel %vm1531, %v2649, 0
  %2900 = vmatprep.subr.mxu0 0.0
  %2901 = vmatpush1.msra.mxu0 %v2892
  %2902 = vmatprep.subr.mxu0 0.0
  %2903 = vmatpush1.msra.mxu0 %v2894
  %2904 = vmatprep.subr.mxu0 0.0
  %2905 = vmatpush1.msra.mxu0 0.0
  %2906 = vmatprep.subr.mxu0 0.0
  %2907 = vmatpush1.msra.mxu0 0.0
  %2908 = vmatprep.subr.mxu0 0.0
  %2909 = vmatpush1.msra.mxu0 0.0
  %2910 = vmatprep.subr.mxu0 0.0
  %2911 = vmatpush1.msra.mxu0 0.0
  %2912 = vmatprep.subr.mxu0 0.0
  %2913 = vmatpush1.msra.mxu0 0.0
  %2914 = vmatprep.subr.mxu0 0.0
  %2915 = vmatpush1.msra.mxu0 0.0
  %2916 = vmatprep.subr.mxu0 0.0
  %2917 = vmatpush1.msra.mxu0 0.0
  %2918 = vmatprep.subr.mxu0 0.0
  %2919 = vmatpush1.msra.mxu0 0.0
  %2920 = vmatprep.subr.mxu0 0.0
  %2921 = vmatpush1.msra.mxu0 0.0
  %2922 = vmatprep.subr.mxu0 0.0
  %2923 = vmatpush1.msra.mxu0 0.0
  %2924 = vmatprep.subr.mxu0 0.0
  %2925 = vmatpush1.msra.mxu0 0.0
  %2926 = vmatprep.subr.mxu0 0.0
  %2927 = vmatpush1.msra.mxu0 0.0
  %2928 = vmatprep.subr.mxu0 0.0
  %2929 = vmatpush1.msra.mxu0 0.0
  %2930 = vmatprep.subr.mxu0 0.0
  %2931 = vmatpush1.msra.mxu0 0.0
  %2932 = vmatprep.subr.mxu0 0.0
  %2933 = vmatpush1.msra.mxu0 0.0
  %2934 = vmatprep.subr.mxu0 0.0
  %2935 = vmatpush1.msra.mxu0 0.0
  %2936 = vmatprep.subr.mxu0 0.0
  %2937 = vmatpush1.msra.mxu0 0.0
  %2938 = vmatprep.subr.mxu0 0.0
  %2939 = vmatpush1.msra.mxu0 0.0
  %2940 = vmatprep.subr.mxu0 0.0
  %2941 = vmatpush1.msra.mxu0 0.0
  %2942 = vmatprep.subr.mxu0 0.0
  %2943 = vmatpush1.msra.mxu0 0.0
  %2944 = vmatprep.subr.mxu0 0.0
  %2945 = vmatpush1.msra.mxu0 0.0
  %2946 = vmatprep.subr.mxu0 0.0
  %2947 = vmatpush1.msra.mxu0 0.0
  %2948 = vmatprep.subr.mxu0 0.0
  %2949 = vmatpush1.msra.mxu0 0.0
  %2950 = vmatprep.subr.mxu0 0.0
  %2951 = vmatpush1.msra.mxu0 0.0
  %2952 = vmatprep.subr.mxu0 0.0
  %2953 = vmatpush1.msra.mxu0 0.0
  %2954 = vmatprep.subr.mxu0 0.0
  %2955 = vmatpush1.msra.mxu0 0.0
  %2956 = vmatprep.subr.mxu0 0.0
  %2957 = vmatpush1.msra.mxu0 0.0
  %2958 = vmatprep.subr.mxu0 0.0
  %2959 = vmatpush1.msra.mxu0 0.0
  %2960 = vmatprep.subr.mxu0 0.0
  %2961 = vmatpush1.msra.mxu0 0.0
  %2962 = vmatprep.subr.mxu0 0.0
  %2963 = vmatpush1.msra.mxu0 0.0
  %2964 = vmatprep.mubr.f32.mxu0 0.0
  %2965 = vmatmul.mubr.f32.gmra.mrb[0].mxu0 %v2898
  %v2966 = vpop.f32.mrb[0].mxu0
  %v2967 = vadd.f32 0.0, %v2966
  %v2968 = vpop.f32.mrb[0].mxu0
  %2969 = vdwg.mxu0
  %2970 = vrot.lane.b32.xlu0 %v1932, 96
  %v2971 = vpop.permute.xlu0 %2970
  %2972 = vrot.lane.b32.xlu0 %v1934, 96
  %v2973 = vpop.permute.xlu0 %2972
  %v2977 = vsel %vm1531, %v2650, 0
  %2979 = vmatprep.subr.mxu0 0.0
  %2980 = vmatpush1.msra.mxu0 %v2971
  %2981 = vmatprep.subr.mxu0 0.0
  %2982 = vmatpush1.msra.mxu0 %v2973
  %2983 = vmatprep.subr.mxu0 0.0
  %2984 = vmatpush1.msra.mxu0 0.0
  %2985 = vmatprep.subr.mxu0 0.0
  %2986 = vmatpush1.msra.mxu0 0.0
  %2987 = vmatprep.subr.mxu0 0.0
  %2988 = vmatpush1.msra.mxu0 0.0
  %2989 = vmatprep.subr.mxu0 0.0
  %2990 = vmatpush1.msra.mxu0 0.0
  %2991 = vmatprep.subr.mxu0 0.0
  %2992 = vmatpush1.msra.mxu0 0.0
  %2993 = vmatprep.subr.mxu0 0.0
  %2994 = vmatpush1.msra.mxu0 0.0
  %2995 = vmatprep.subr.mxu0 0.0
  %2996 = vmatpush1.msra.mxu0 0.0
  %2997 = vmatprep.subr.mxu0 0.0
  %2998 = vmatpush1.msra.mxu0 0.0
  %2999 = vmatprep.subr.mxu0 0.0
  %3000 = vmatpush1.msra.mxu0 0.0
  %3001 = vmatprep.subr.mxu0 0.0
  %3002 = vmatpush1.msra.mxu0 0.0
  %3003 = vmatprep.subr.mxu0 0.0
  %3004 = vmatpush1.msra.mxu0 0.0
  %3005 = vmatprep.subr.mxu0 0.0
  %3006 = vmatpush1.msra.mxu0 0.0
  %3007 = vmatprep.subr.mxu0 0.0
  %3008 = vmatpush1.msra.mxu0 0.0
  %3009 = vmatprep.subr.mxu0 0.0
  %3010 = vmatpush1.msra.mxu0 0.0
  %3011 = vmatprep.subr.mxu0 0.0
  %3012 = vmatpush1.msra.mxu0 0.0
  %3013 = vmatprep.subr.mxu0 0.0
  %3014 = vmatpush1.msra.mxu0 0.0
  %3015 = vmatprep.subr.mxu0 0.0
  %3016 = vmatpush1.msra.mxu0 0.0
  %3017 = vmatprep.subr.mxu0 0.0
  %3018 = vmatpush1.msra.mxu0 0.0
  %3019 = vmatprep.subr.mxu0 0.0
  %3020 = vmatpush1.msra.mxu0 0.0
  %3021 = vmatprep.subr.mxu0 0.0
  %3022 = vmatpush1.msra.mxu0 0.0
  %3023 = vmatprep.subr.mxu0 0.0
  %3024 = vmatpush1.msra.mxu0 0.0
  %3025 = vmatprep.subr.mxu0 0.0
  %3026 = vmatpush1.msra.mxu0 0.0
  %3027 = vmatprep.subr.mxu0 0.0
  %3028 = vmatpush1.msra.mxu0 0.0
  %3029 = vmatprep.subr.mxu0 0.0
  %3030 = vmatpush1.msra.mxu0 0.0
  %3031 = vmatprep.subr.mxu0 0.0
  %3032 = vmatpush1.msra.mxu0 0.0
  %3033 = vmatprep.subr.mxu0 0.0
  %3034 = vmatpush1.msra.mxu0 0.0
  %3035 = vmatprep.subr.mxu0 0.0
  %3036 = vmatpush1.msra.mxu0 0.0
  %3037 = vmatprep.subr.mxu0 0.0
  %3038 = vmatpush1.msra.mxu0 0.0
  %3039 = vmatprep.subr.mxu0 0.0
  %3040 = vmatpush1.msra.mxu0 0.0
  %3041 = vmatprep.subr.mxu0 0.0
  %3042 = vmatpush1.msra.mxu0 0.0
  %3043 = vmatprep.mubr.f32.mxu0 0.0
  %3044 = vmatmul.mubr.f32.gmra.mrb[0].mxu0 %v2977
  %v3045 = vpop.f32.mrb[0].mxu0
  %v3046 = vadd.f32 0.0, %v3045
  %v3047 = vpop.f32.mrb[0].mxu0
  %3048 = vdwg.mxu0
  %3049 = vrot.lane.b32.xlu0 %v1936, 96
  %v3050 = vpop.permute.xlu0 %3049
  %3051 = vrot.lane.b32.xlu0 %v1938, 96
  %v3052 = vpop.permute.xlu0 %3051
  %v3056 = vsel %vm1531, %v2651, 0
  %3058 = vmatprep.subr.mxu0 0.0
  %3059 = vmatpush1.msra.mxu0 %v3050
  %3060 = vmatprep.subr.mxu0 0.0
  %3061 = vmatpush1.msra.mxu0 %v3052
  %3062 = vmatprep.subr.mxu0 0.0
  %3063 = vmatpush1.msra.mxu0 0.0
  %3064 = vmatprep.subr.mxu0 0.0
  %3065 = vmatpush1.msra.mxu0 0.0
  %3066 = vmatprep.subr.mxu0 0.0
  %3067 = vmatpush1.msra.mxu0 0.0
  %3068 = vmatprep.subr.mxu0 0.0
  %3069 = vmatpush1.msra.mxu0 0.0
  %3070 = vmatprep.subr.mxu0 0.0
  %3071 = vmatpush1.msra.mxu0 0.0
  %3072 = vmatprep.subr.mxu0 0.0
  %3073 = vmatpush1.msra.mxu0 0.0
  %3074 = vmatprep.subr.mxu0 0.0
  %3075 = vmatpush1.msra.mxu0 0.0
  %3076 = vmatprep.subr.mxu0 0.0
  %3077 = vmatpush1.msra.mxu0 0.0
  %3078 = vmatprep.subr.mxu0 0.0
  %3079 = vmatpush1.msra.mxu0 0.0
  %3080 = vmatprep.subr.mxu0 0.0
  %3081 = vmatpush1.msra.mxu0 0.0
  %3082 = vmatprep.subr.mxu0 0.0
  %3083 = vmatpush1.msra.mxu0 0.0
  %3084 = vmatprep.subr.mxu0 0.0
  %3085 = vmatpush1.msra.mxu0 0.0
  %3086 = vmatprep.subr.mxu0 0.0
  %3087 = vmatpush1.msra.mxu0 0.0
  %3088 = vmatprep.subr.mxu0 0.0
  %3089 = vmatpush1.msra.mxu0 0.0
  %3090 = vmatprep.subr.mxu0 0.0
  %3091 = vmatpush1.msra.mxu0 0.0
  %3092 = vmatprep.subr.mxu0 0.0
  %3093 = vmatpush1.msra.mxu0 0.0
  %3094 = vmatprep.subr.mxu0 0.0
  %3095 = vmatpush1.msra.mxu0 0.0
  %3096 = vmatprep.subr.mxu0 0.0
  %3097 = vmatpush1.msra.mxu0 0.0
  %3098 = vmatprep.subr.mxu0 0.0
  %3099 = vmatpush1.msra.mxu0 0.0
  %3100 = vmatprep.subr.mxu0 0.0
  %3101 = vmatpush1.msra.mxu0 0.0
  %3102 = vmatprep.subr.mxu0 0.0
  %3103 = vmatpush1.msra.mxu0 0.0
  %3104 = vmatprep.subr.mxu0 0.0
  %3105 = vmatpush1.msra.mxu0 0.0
  %3106 = vmatprep.subr.mxu0 0.0
  %3107 = vmatpush1.msra.mxu0 0.0
  %3108 = vmatprep.subr.mxu0 0.0
  %3109 = vmatpush1.msra.mxu0 0.0
  %3110 = vmatprep.subr.mxu0 0.0
  %3111 = vmatpush1.msra.mxu0 0.0
  %3112 = vmatprep.subr.mxu0 0.0
  %3113 = vmatpush1.msra.mxu0 0.0
  %3114 = vmatprep.subr.mxu0 0.0
  %3115 = vmatpush1.msra.mxu0 0.0
  %3116 = vmatprep.subr.mxu0 0.0
  %3117 = vmatpush1.msra.mxu0 0.0
  %3118 = vmatprep.subr.mxu0 0.0
  %3119 = vmatpush1.msra.mxu0 0.0
  %3120 = vmatprep.subr.mxu0 0.0
  %3121 = vmatpush1.msra.mxu0 0.0
  %3122 = vmatprep.mubr.f32.mxu0 0.0
  %3123 = vmatmul.mubr.f32.gmra.mrb[0].mxu0 %v3056
  %v3124 = vpop.f32.mrb[0].mxu0
  %v3125 = vadd.f32 0.0, %v3124
  %v3126 = vpop.f32.mrb[0].mxu0
  %3127 = vdwg.mxu0
  %3128 = vrot.lane.b32.xlu0 %v1940, 96
  %v3129 = vpop.permute.xlu0 %3128
  %3130 = vrot.lane.b32.xlu0 %v1942, 96
  %v3131 = vpop.permute.xlu0 %3130
  %v3135 = vsel %vm1531, %v2652, 0
  %3137 = vmatprep.subr.mxu0 0.0
  %3138 = vmatpush1.msra.mxu0 %v3129
  %3139 = vmatprep.subr.mxu0 0.0
  %3140 = vmatpush1.msra.mxu0 %v3131
  %3141 = vmatprep.subr.mxu0 0.0
  %3142 = vmatpush1.msra.mxu0 0.0
  %3143 = vmatprep.subr.mxu0 0.0
  %3144 = vmatpush1.msra.mxu0 0.0
  %3145 = vmatprep.subr.mxu0 0.0
  %3146 = vmatpush1.msra.mxu0 0.0
  %3147 = vmatprep.subr.mxu0 0.0
  %3148 = vmatpush1.msra.mxu0 0.0
  %3149 = vmatprep.subr.mxu0 0.0
  %3150 = vmatpush1.msra.mxu0 0.0
  %3151 = vmatprep.subr.mxu0 0.0
  %3152 = vmatpush1.msra.mxu0 0.0
  %3153 = vmatprep.subr.mxu0 0.0
  %3154 = vmatpush1.msra.mxu0 0.0
  %3155 = vmatprep.subr.mxu0 0.0
  %3156 = vmatpush1.msra.mxu0 0.0
  %3157 = vmatprep.subr.mxu0 0.0
  %3158 = vmatpush1.msra.mxu0 0.0
  %3159 = vmatprep.subr.mxu0 0.0
  %3160 = vmatpush1.msra.mxu0 0.0
  %3161 = vmatprep.subr.mxu0 0.0
  %3162 = vmatpush1.msra.mxu0 0.0
  %3163 = vmatprep.subr.mxu0 0.0
  %3164 = vmatpush1.msra.mxu0 0.0
  %3165 = vmatprep.subr.mxu0 0.0
  %3166 = vmatpush1.msra.mxu0 0.0
  %3167 = vmatprep.subr.mxu0 0.0
  %3168 = vmatpush1.msra.mxu0 0.0
  %3169 = vmatprep.subr.mxu0 0.0
  %3170 = vmatpush1.msra.mxu0 0.0
  %3171 = vmatprep.subr.mxu0 0.0
  %3172 = vmatpush1.msra.mxu0 0.0
  %3173 = vmatprep.subr.mxu0 0.0
  %3174 = vmatpush1.msra.mxu0 0.0
  %3175 = vmatprep.subr.mxu0 0.0
  %3176 = vmatpush1.msra.mxu0 0.0
  %3177 = vmatprep.subr.mxu0 0.0
  %3178 = vmatpush1.msra.mxu0 0.0
  %3179 = vmatprep.subr.mxu0 0.0
  %3180 = vmatpush1.msra.mxu0 0.0
  %3181 = vmatprep.subr.mxu0 0.0
  %3182 = vmatpush1.msra.mxu0 0.0
  %3183 = vmatprep.subr.mxu0 0.0
  %3184 = vmatpush1.msra.mxu0 0.0
  %3185 = vmatprep.subr.mxu0 0.0
  %3186 = vmatpush1.msra.mxu0 0.0
  %3187 = vmatprep.subr.mxu0 0.0
  %3188 = vmatpush1.msra.mxu0 0.0
  %3189 = vmatprep.subr.mxu0 0.0
  %3190 = vmatpush1.msra.mxu0 0.0
  %3191 = vmatprep.subr.mxu0 0.0
  %3192 = vmatpush1.msra.mxu0 0.0
  %3193 = vmatprep.subr.mxu0 0.0
  %3194 = vmatpush1.msra.mxu0 0.0
  %3195 = vmatprep.subr.mxu0 0.0
  %3196 = vmatpush1.msra.mxu0 0.0
  %3197 = vmatprep.subr.mxu0 0.0
  %3198 = vmatpush1.msra.mxu0 0.0
  %3199 = vmatprep.subr.mxu0 0.0
  %3200 = vmatpush1.msra.mxu0 0.0
  %3201 = vmatprep.mubr.f32.mxu0 0.0
  %3202 = vmatmul.mubr.f32.gmra.mrb[0].mxu0 %v3135
  %v3203 = vpop.f32.mrb[0].mxu0
  %v3204 = vadd.f32 0.0, %v3203
  %v3205 = vpop.f32.mrb[0].mxu0
  %3206 = vdwg.mxu0
  %3207 = vrot.lane.b32.xlu0 %v1944, 96
  %v3208 = vpop.permute.xlu0 %3207
  %3209 = vrot.lane.b32.xlu0 %v1946, 96
  %v3210 = vpop.permute.xlu0 %3209
  %v3214 = vsel %vm1531, %v2653, 0
  %3216 = vmatprep.subr.mxu0 0.0
  %3217 = vmatpush1.msra.mxu0 %v3208
  %3218 = vmatprep.subr.mxu0 0.0
  %3219 = vmatpush1.msra.mxu0 %v3210
  %3220 = vmatprep.subr.mxu0 0.0
  %3221 = vmatpush1.msra.mxu0 0.0
  %3222 = vmatprep.subr.mxu0 0.0
  %3223 = vmatpush1.msra.mxu0 0.0
  %3224 = vmatprep.subr.mxu0 0.0
  %3225 = vmatpush1.msra.mxu0 0.0
  %3226 = vmatprep.subr.mxu0 0.0
  %3227 = vmatpush1.msra.mxu0 0.0
  %3228 = vmatprep.subr.mxu0 0.0
  %3229 = vmatpush1.msra.mxu0 0.0
  %3230 = vmatprep.subr.mxu0 0.0
  %3231 = vmatpush1.msra.mxu0 0.0
  %3232 = vmatprep.subr.mxu0 0.0
  %3233 = vmatpush1.msra.mxu0 0.0
  %3234 = vmatprep.subr.mxu0 0.0
  %3235 = vmatpush1.msra.mxu0 0.0
  %3236 = vmatprep.subr.mxu0 0.0
  %3237 = vmatpush1.msra.mxu0 0.0
  %3238 = vmatprep.subr.mxu0 0.0
  %3239 = vmatpush1.msra.mxu0 0.0
  %3240 = vmatprep.subr.mxu0 0.0
  %3241 = vmatpush1.msra.mxu0 0.0
  %3242 = vmatprep.subr.mxu0 0.0
  %3243 = vmatpush1.msra.mxu0 0.0
  %3244 = vmatprep.subr.mxu0 0.0
  %3245 = vmatpush1.msra.mxu0 0.0
  %3246 = vmatprep.subr.mxu0 0.0
  %3247 = vmatpush1.msra.mxu0 0.0
  %3248 = vmatprep.subr.mxu0 0.0
  %3249 = vmatpush1.msra.mxu0 0.0
  %3250 = vmatprep.subr.mxu0 0.0
  %3251 = vmatpush1.msra.mxu0 0.0
  %3252 = vmatprep.subr.mxu0 0.0
  %3253 = vmatpush1.msra.mxu0 0.0
  %3254 = vmatprep.subr.mxu0 0.0
  %3255 = vmatpush1.msra.mxu0 0.0
  %3256 = vmatprep.subr.mxu0 0.0
  %3257 = vmatpush1.msra.mxu0 0.0
  %3258 = vmatprep.subr.mxu0 0.0
  %3259 = vmatpush1.msra.mxu0 0.0
  %3260 = vmatprep.subr.mxu0 0.0
  %3261 = vmatpush1.msra.mxu0 0.0
  %3262 = vmatprep.subr.mxu0 0.0
  %3263 = vmatpush1.msra.mxu0 0.0
  %3264 = vmatprep.subr.mxu0 0.0
  %3265 = vmatpush1.msra.mxu0 0.0
  %3266 = vmatprep.subr.mxu0 0.0
  %3267 = vmatpush1.msra.mxu0 0.0
  %3268 = vmatprep.subr.mxu0 0.0
  %3269 = vmatpush1.msra.mxu0 0.0
  %3270 = vmatprep.subr.mxu0 0.0
  %3271 = vmatpush1.msra.mxu0 0.0
  %3272 = vmatprep.subr.mxu0 0.0
  %3273 = vmatpush1.msra.mxu0 0.0
  %3274 = vmatprep.subr.mxu0 0.0
  %3275 = vmatpush1.msra.mxu0 0.0
  %3276 = vmatprep.subr.mxu0 0.0
  %3277 = vmatpush1.msra.mxu0 0.0
  %3278 = vmatprep.subr.mxu0 0.0
  %3279 = vmatpush1.msra.mxu0 0.0
  %3280 = vmatprep.mubr.f32.mxu0 0.0
  %3281 = vmatmul.mubr.f32.gmra.mrb[0].mxu0 %v3214
  %v3282 = vpop.f32.mrb[0].mxu0
  %v3283 = vadd.f32 0.0, %v3282
  %v3284 = vpop.f32.mrb[0].mxu0
  %3285 = vdwg.mxu0
  %3288 = vrot.lane.b32.xlu0 %v2888, 8
  %v3289 = vpop.permute.xlu0 %3288
  %3290 = vrot.lane.b32.xlu0 %v2967, 8
  %v3291 = vpop.permute.xlu0 %3290
  %3296 = vrot.lane.b32.xlu0 %v3046, 16
  %v3297 = vpop.permute.xlu0 %3296
  %3298 = vrot.lane.b32.xlu0 %v3125, 16
  %v3299 = vpop.permute.xlu0 %3298
  %3304 = vrot.lane.b32.xlu0 %v3204, 24
  %v3305 = vpop.permute.xlu0 %3304
  %3306 = vrot.lane.b32.xlu0 %v3283, 24
  %v3307 = vpop.permute.xlu0 %3306
  %v3310 = vsel %vm202, %v2730, %v3289
  %v3311 = vsel %vm202, %v2809, %v3291
  %v3312 = vsel %vm1531, %v3310, %v3297
  %v3313 = vsel %vm1531, %v3311, %v3299
  %v3314 = vsel %vm1534, %v3312, %v3305
  %v3315 = vsel %vm1534, %v3313, %v3307
  %v3316 = vld [vmem:[%s6] sm:$0xff]
  %v3317 = vld [vmem:[%s6 + $0x8] sm:$0xff]
  %v3318 = vld [vmem:[%s6 + $0x10] sm:$0xff]
  %v3319 = vld [vmem:[%s6 + $0x18] sm:$0xff]
  %v3320 = vlaneseq
  %v3321 = vshrl.u32 %v3320, 7
  %v3322 = vsub.s32 7, %v3321
  %v3323 = vrot.slane %v38, %v3322
  %v3325 = vsel %vm50, %v3314, 0
  %v3328 = vsel %vm50, %v3315, 0
  %3330 = vmatprep.subr.mxu0 0.0
  %3331 = vmatpush1.msra.mxu0 %v3316
  %3332 = vmatprep.subr.mxu0 0.0
  %3333 = vmatpush1.msra.mxu0 %v3317
  %3334 = vmatprep.subr.mxu0 0.0
  %3335 = vmatpush1.msra.mxu0 %v3318
  %3336 = vmatprep.subr.mxu0 0.0
  %3337 = vmatpush1.msra.mxu0 %v3319
  %3338 = vmatprep.subr.mxu0 0.0
  %3339 = vmatpush1.msra.mxu0 0.0
  %3340 = vmatprep.subr.mxu0 0.0
  %3341 = vmatpush1.msra.mxu0 0.0
  %3342 = vmatprep.subr.mxu0 0.0
  %3343 = vmatpush1.msra.mxu0 0.0
  %3344 = vmatprep.subr.mxu0 0.0
  %3345 = vmatpush1.msra.mxu0 0.0
  %3346 = vmatprep.subr.mxu0 0.0
  %3347 = vmatpush1.msra.mxu0 0.0
  %3348 = vmatprep.subr.mxu0 0.0
  %3349 = vmatpush1.msra.mxu0 0.0
  %3350 = vmatprep.subr.mxu0 0.0
  %3351 = vmatpush1.msra.mxu0 0.0
  %3352 = vmatprep.subr.mxu0 0.0
  %3353 = vmatpush1.msra.mxu0 0.0
  %3354 = vmatprep.subr.mxu0 0.0
  %3355 = vmatpush1.msra.mxu0 0.0
  %3356 = vmatprep.subr.mxu0 0.0
  %3357 = vmatpush1.msra.mxu0 0.0
  %3358 = vmatprep.subr.mxu0 0.0
  %3359 = vmatpush1.msra.mxu0 0.0
  %3360 = vmatprep.subr.mxu0 0.0
  %3361 = vmatpush1.msra.mxu0 0.0
  %3362 = vmatprep.subr.mxu0 0.0
  %3363 = vmatpush1.msra.mxu0 0.0
  %3364 = vmatprep.subr.mxu0 0.0
  %3365 = vmatpush1.msra.mxu0 0.0
  %3366 = vmatprep.subr.mxu0 0.0
  %3367 = vmatpush1.msra.mxu0 0.0
  %3368 = vmatprep.subr.mxu0 0.0
  %3369 = vmatpush1.msra.mxu0 0.0
  %3370 = vmatprep.subr.mxu0 0.0
  %3371 = vmatpush1.msra.mxu0 0.0
  %3372 = vmatprep.subr.mxu0 0.0
  %3373 = vmatpush1.msra.mxu0 0.0
  %3374 = vmatprep.subr.mxu0 0.0
  %3375 = vmatpush1.msra.mxu0 0.0
  %3376 = vmatprep.subr.mxu0 0.0
  %3377 = vmatpush1.msra.mxu0 0.0
  %3378 = vmatprep.subr.mxu0 0.0
  %3379 = vmatpush1.msra.mxu0 0.0
  %3380 = vmatprep.subr.mxu0 0.0
  %3381 = vmatpush1.msra.mxu0 0.0
  %3382 = vmatprep.subr.mxu0 0.0
  %3383 = vmatpush1.msra.mxu0 0.0
  %3384 = vmatprep.subr.mxu0 0.0
  %3385 = vmatpush1.msra.mxu0 0.0
  %3386 = vmatprep.subr.mxu0 0.0
  %3387 = vmatpush1.msra.mxu0 0.0
  %3388 = vmatprep.subr.mxu0 0.0
  %3389 = vmatpush1.msra.mxu0 0.0
  %3390 = vmatprep.subr.mxu0 0.0
  %3391 = vmatpush1.msra.mxu0 0.0
  %3392 = vmatprep.subr.mxu0 0.0
  %3393 = vmatpush1.msra.mxu0 0.0
  %3394 = vmatprep.mubr.f32.mxu0 0.0
  %3395 = vmatmul.mubr.f32.gmra.mrb[0].mxu0 %v3325
  %v3396 = vpop.f32.mrb[0].mxu0
  %v3397 = vadd.f32 %v3323, %v3396
  %v3398 = vpop.f32.mrb[0].mxu0
  %3399 = vmatprep.mubr.f32.mxu0 0.0
  %3400 = vmatmul.mubr.f32.gmra.mrb[0].mxu0 %v3328
  %v3401 = vpop.f32.mrb[0].mxu0
  %v3402 = vadd.f32 %v3323, %v3401
  %v3403 = vpop.f32.mrb[0].mxu0
  %3404 = vdwg.mxu0
  %v3405 = vadd.f32 %v1665, %v3397
  %v3406 = vadd.f32 %v1666, %v3402
  %v3407 = vsel %vm50, %v3405, 0.0
  %3408 = vadd.xlane.f32.xlu0 %v3407
  %v3409 = vpop.xlane.xlu0 %3408
  %v3410 = vsel %vm50, %v3406, 0.0
  %3411 = vadd.xlane.f32.xlu0 %v3410
  %v3412 = vpop.xlane.xlu0 %3411
  %v3413 = vmul.f32 %v3409, %v1634
  %v3414 = vmul.f32 %v3412, %v1634
  %v3415 = vsub.f32 %v3405, %v3413
  %v3416 = vsub.f32 %v3406, %v3414
  %v3417 = vmul.f32 %v3415, %v3415
  %v3418 = vmul.f32 %v3416, %v3416
  %v3419 = vsel %vm50, %v3417, 0.0
  %3420 = vadd.xlane.f32.xlu0 %v3419
  %v3421 = vpop.xlane.xlu0 %3420
  %v3422 = vsel %vm50, %v3418, 0.0
  %3423 = vadd.xlane.f32.xlu0 %v3422
  %v3424 = vpop.xlane.xlu0 %3423
  %v3425 = vmul.f32 %v3421, %v1634
  %v3426 = vmul.f32 %v3424, %v1634
  %v3427 = vadd.f32 %v3425, 1e-05
  %v3428 = vadd.f32 %v3426, 1e-05
  %v3429 = vrsqrt.pop %v3427
  %v3430 = vrsqrt.pop %v3428
  %v3431 = vmul.f32 %v3415, %v3429
  %v3432 = vmul.f32 %v3416, %v3430
  %v3433 = vlaneseq
  %v3434 = vshrl.u32 %v3433, 7
  %v3435 = vsub.s32 3, %v3434
  %v3436 = vrot.slane %v39, %v3435
  %v3437 = vmul.f32 %v3431, %v3436
  %v3438 = vmul.f32 %v3432, %v3436
  %v3439 = vlaneseq
  %v3440 = vshrl.u32 %v3439, 7
  %v3441 = vsub.s32 4, %v3440
  %v3442 = vrot.slane %v39, %v3441
  %v3443 = vadd.f32 %v3437, %v3442
  %v3444 = vadd.f32 %v3438, %v3442
  %v3445 = vld [vmem:[%s8] sm:$0x1]
  %v3446 = vld [vmem:[%s7] sm:$0xff]
  %v3447 = vld [vmem:[%s7 + $0x8] sm:$0xff]
  %v3448 = vld [vmem:[%s7 + $0x10] sm:$0xff]
  %v3449 = vld [vmem:[%s7 + $0x18] sm:$0xff]
  %v3451 = vlaneseq
  %v3452 = vshrl.u32 %v3451, 7
  %v3453 = vsub.s32 0, %v3452
  %v3454 = vrot.slane %v3445, %v3453
  %v3457 = vsel %vm50, %v3443, 0
  %v3460 = vsel %vm50, %v3444, 0
  %3462 = vmatprep.subr.mxu0 0.0
  %3463 = vmatpush1.msra.mxu0 %v3446
  %3464 = vmatprep.subr.mxu0 0.0
  %3465 = vmatpush1.msra.mxu0 %v3447
  %3466 = vmatprep.subr.mxu0 0.0
  %3467 = vmatpush1.msra.mxu0 %v3448
  %3468 = vmatprep.subr.mxu0 0.0
  %3469 = vmatpush1.msra.mxu0 %v3449
  %3470 = vmatprep.subr.mxu0 0.0
  %3471 = vmatpush1.msra.mxu0 0.0
  %3472 = vmatprep.subr.mxu0 0.0
  %3473 = vmatpush1.msra.mxu0 0.0
  %3474 = vmatprep.subr.mxu0 0.0
  %3475 = vmatpush1.msra.mxu0 0.0
  %3476 = vmatprep.subr.mxu0 0.0
  %3477 = vmatpush1.msra.mxu0 0.0
  %3478 = vmatprep.subr.mxu0 0.0
  %3479 = vmatpush1.msra.mxu0 0.0
  %3480 = vmatprep.subr.mxu0 0.0
  %3481 = vmatpush1.msra.mxu0 0.0
  %3482 = vmatprep.subr.mxu0 0.0
  %3483 = vmatpush1.msra.mxu0 0.0
  %3484 = vmatprep.subr.mxu0 0.0
  %3485 = vmatpush1.msra.mxu0 0.0
  %3486 = vmatprep.subr.mxu0 0.0
  %3487 = vmatpush1.msra.mxu0 0.0
  %3488 = vmatprep.subr.mxu0 0.0
  %3489 = vmatpush1.msra.mxu0 0.0
  %3490 = vmatprep.subr.mxu0 0.0
  %3491 = vmatpush1.msra.mxu0 0.0
  %3492 = vmatprep.subr.mxu0 0.0
  %3493 = vmatpush1.msra.mxu0 0.0
  %3494 = vmatprep.subr.mxu0 0.0
  %3495 = vmatpush1.msra.mxu0 0.0
  %3496 = vmatprep.subr.mxu0 0.0
  %3497 = vmatpush1.msra.mxu0 0.0
  %3498 = vmatprep.subr.mxu0 0.0
  %3499 = vmatpush1.msra.mxu0 0.0
  %3500 = vmatprep.subr.mxu0 0.0
  %3501 = vmatpush1.msra.mxu0 0.0
  %3502 = vmatprep.subr.mxu0 0.0
  %3503 = vmatpush1.msra.mxu0 0.0
  %3504 = vmatprep.subr.mxu0 0.0
  %3505 = vmatpush1.msra.mxu0 0.0
  %3506 = vmatprep.subr.mxu0 0.0
  %3507 = vmatpush1.msra.mxu0 0.0
  %3508 = vmatprep.subr.mxu0 0.0
  %3509 = vmatpush1.msra.mxu0 0.0
  %3510 = vmatprep.subr.mxu0 0.0
  %3511 = vmatpush1.msra.mxu0 0.0
  %3512 = vmatprep.subr.mxu0 0.0
  %3513 = vmatpush1.msra.mxu0 0.0
  %3514 = vmatprep.subr.mxu0 0.0
  %3515 = vmatpush1.msra.mxu0 0.0
  %3516 = vmatprep.subr.mxu0 0.0
  %3517 = vmatpush1.msra.mxu0 0.0
  %3518 = vmatprep.subr.mxu0 0.0
  %3519 = vmatpush1.msra.mxu0 0.0
  %3520 = vmatprep.subr.mxu0 0.0
  %3521 = vmatpush1.msra.mxu0 0.0
  %3522 = vmatprep.subr.mxu0 0.0
  %3523 = vmatpush1.msra.mxu0 0.0
  %3524 = vmatprep.subr.mxu0 0.0
  %3525 = vmatpush1.msra.mxu0 0.0
  %3526 = vmatprep.mubr.f32.mxu0 0.0
  %3527 = vmatmul.mubr.f32.gmra.mrb[0].mxu0 %v3457
  %v3528 = vpop.f32.mrb[0].mxu0
  %v3529 = vadd.f32 %v3454, %v3528
  %v3530 = vpop.f32.mrb[0].mxu0
  %3531 = vmatprep.mubr.f32.mxu0 0.0
  %3532 = vmatmul.mubr.f32.gmra.mrb[0].mxu0 %v3460
  %v3533 = vpop.f32.mrb[0].mxu0
  %v3534 = vadd.f32 %v3454, %v3533
  %v3535 = vpop.f32.mrb[0].mxu0
  %3536 = vdwg.mxu0
  %v3537 = vmax.f32 %v3529, 0.0
  %v3538 = vmax.f32 %v3534, 0.0
  %v3539 = vld [vmem:[%s9] sm:$0xff]
  %v3540 = vld [vmem:[%s9 + $0x8] sm:$0xff]
  %v3541 = vld [vmem:[%s9 + $0x10] sm:$0xff]
  %v3542 = vld [vmem:[%s9 + $0x18] sm:$0xff]
  %v3543 = vld [vmem:[%s9 + $0x20] sm:$0xff]
  %v3544 = vld [vmem:[%s9 + $0x28] sm:$0xff]
  %v3545 = vld [vmem:[%s9 + $0x30] sm:$0xff]
  %v3546 = vld [vmem:[%s9 + $0x38] sm:$0xff]
  %v3547 = vlaneseq
  %v3548 = vshrl.u32 %v3547, 7
  %v3549 = vsub.s32 0, %v3548
  %v3550 = vrot.slane %v39, %v3549
  %vm3551 = vcmask 523264
  %v3553 = vsel %vm3551, %v3537, 0
  %v3556 = vsel %vm3551, %v3538, 0
  %3558 = vmatprep.subr.mxu0 0.0
  %3559 = vmatpush1.msra.mxu0 %v3539
  %3560 = vmatprep.subr.mxu0 0.0
  %3561 = vmatpush1.msra.mxu0 %v3540
  %3562 = vmatprep.subr.mxu0 0.0
  %3563 = vmatpush1.msra.mxu0 %v3541
  %3564 = vmatprep.subr.mxu0 0.0
  %3565 = vmatpush1.msra.mxu0 %v3542
  %3566 = vmatprep.subr.mxu0 0.0
  %3567 = vmatpush1.msra.mxu0 %v3543
  %3568 = vmatprep.subr.mxu0 0.0
  %3569 = vmatpush1.msra.mxu0 %v3544
  %3570 = vmatprep.subr.mxu0 0.0
  %3571 = vmatpush1.msra.mxu0 %v3545
  %3572 = vmatprep.subr.mxu0 0.0
  %3573 = vmatpush1.msra.mxu0 %v3546
  %3574 = vmatprep.subr.mxu0 0.0
  %3575 = vmatpush1.msra.mxu0 0.0
  %3576 = vmatprep.subr.mxu0 0.0
  %3577 = vmatpush1.msra.mxu0 0.0
  %3578 = vmatprep.subr.mxu0 0.0
  %3579 = vmatpush1.msra.mxu0 0.0
  %3580 = vmatprep.subr.mxu0 0.0
  %3581 = vmatpush1.msra.mxu0 0.0
  %3582 = vmatprep.subr.mxu0 0.0
  %3583 = vmatpush1.msra.mxu0 0.0
  %3584 = vmatprep.subr.mxu0 0.0
  %3585 = vmatpush1.msra.mxu0 0.0
  %3586 = vmatprep.subr.mxu0 0.0
  %3587 = vmatpush1.msra.mxu0 0.0
  %3588 = vmatprep.subr.mxu0 0.0
  %3589 = vmatpush1.msra.mxu0 0.0
  %3590 = vmatprep.subr.mxu0 0.0
  %3591 = vmatpush1.msra.mxu0 0.0
  %3592 = vmatprep.subr.mxu0 0.0
  %3593 = vmatpush1.msra.mxu0 0.0
  %3594 = vmatprep.subr.mxu0 0.0
  %3595 = vmatpush1.msra.mxu0 0.0
  %3596 = vmatprep.subr.mxu0 0.0
  %3597 = vmatpush1.msra.mxu0 0.0
  %3598 = vmatprep.subr.mxu0 0.0
  %3599 = vmatpush1.msra.mxu0 0.0
  %3600 = vmatprep.subr.mxu0 0.0
  %3601 = vmatpush1.msra.mxu0 0.0
  %3602 = vmatprep.subr.mxu0 0.0
  %3603 = vmatpush1.msra.mxu0 0.0
  %3604 = vmatprep.subr.mxu0 0.0
  %3605 = vmatpush1.msra.mxu0 0.0
  %3606 = vmatprep.subr.mxu0 0.0
  %3607 = vmatpush1.msra.mxu0 0.0
  %3608 = vmatprep.subr.mxu0 0.0
  %3609 = vmatpush1.msra.mxu0 0.0
  %3610 = vmatprep.subr.mxu0 0.0
  %3611 = vmatpush1.msra.mxu0 0.0
  %3612 = vmatprep.subr.mxu0 0.0
  %3613 = vmatpush1.msra.mxu0 0.0
  %3614 = vmatprep.subr.mxu0 0.0
  %3615 = vmatpush1.msra.mxu0 0.0
  %3616 = vmatprep.subr.mxu0 0.0
  %3617 = vmatpush1.msra.mxu0 0.0
  %3618 = vmatprep.subr.mxu0 0.0
  %3619 = vmatpush1.msra.mxu0 0.0
  %3620 = vmatprep.subr.mxu0 0.0
  %3621 = vmatpush1.msra.mxu0 0.0
  %3622 = vmatprep.mubr.f32.mxu0 0.0
  %3623 = vmatmul.mubr.f32.gmra.mrb[0].mxu0 %v3553
  %v3624 = vpop.f32.mrb[0].mxu0
  %v3625 = vadd.f32 %v3550, %v3624
  %v3626 = vpop.f32.mrb[0].mxu0
  %3627 = vmatprep.mubr.f32.mxu0 0.0
  %3628 = vmatmul.mubr.f32.gmra.mrb[0].mxu0 %v3556
  %v3629 = vpop.f32.mrb[0].mxu0
  %v3630 = vadd.f32 %v3550, %v3629
  %v3631 = vpop.f32.mrb[0].mxu0
  %3632 = vdwg.mxu0
  %v3633 = vadd.f32 %v3443, %v3625
  %v3634 = vadd.f32 %v3444, %v3630
  %v3635 = vsel %vm50, %v3633, 0.0
  %3636 = vadd.xlane.f32.xlu0 %v3635
  %v3637 = vpop.xlane.xlu0 %3636
  %v3638 = vsel %vm50, %v3634, 0.0
  %3639 = vadd.xlane.f32.xlu0 %v3638
  %v3640 = vpop.xlane.xlu0 %3639
  %v3641 = vmul.f32 %v3637, %v1634
  %v3642 = vmul.f32 %v3640, %v1634
  %v3643 = vsub.f32 %v3633, %v3641
  %v3644 = vsub.f32 %v3634, %v3642
  %v3645 = vmul.f32 %v3643, %v3643
  %v3646 = vmul.f32 %v3644, %v3644
  %v3647 = vsel %vm50, %v3645, 0.0
  %3648 = vadd.xlane.f32.xlu0 %v3647
  %v3649 = vpop.xlane.xlu0 %3648
  %v3650 = vsel %vm50, %v3646, 0.0
  %3651 = vadd.xlane.f32.xlu0 %v3650
  %v3652 = vpop.xlane.xlu0 %3651
  %v3653 = vmul.f32 %v3649, %v1634
  %v3654 = vmul.f32 %v3652, %v1634
  %v3655 = vadd.f32 %v3653, 1e-05
  %v3656 = vadd.f32 %v3654, 1e-05
  %v3657 = vrsqrt.pop %v3655
  %v3658 = vrsqrt.pop %v3656
  %v3659 = vmul.f32 %v3643, %v3657
  %v3660 = vmul.f32 %v3644, %v3658
  %v3661 = vlaneseq
  %v3662 = vshrl.u32 %v3661, 7
  %v3663 = vsub.s32 5, %v3662
  %v3664 = vrot.slane %v39, %v3663
  %v3665 = vmul.f32 %v3659, %v3664
  %v3666 = vmul.f32 %v3660, %v3664
  %v3667 = vlaneseq
  %v3668 = vshrl.u32 %v3667, 7
  %v3669 = vsub.s32 6, %v3668
  %v3670 = vrot.slane %v39, %v3669
  %v3671 = vadd.f32 %v3665, %v3670
  %v3672 = vadd.f32 %v3666, %v3670
  %3673 = vst.msk [vmem:[%s11] sm:$0xff] %vm50, %v3671
  %3674 = vst.msk [vmem:[%s11 + $0x8] sm:$0xff] %vm50, %v3672
  // Predicated region
  $region46: #{aiayn_decoder_layer_pallas.1} parent=0 // pred_check
    _
  $region47: #{aiayn_decoder_layer_pallas.1} parent=0 // pred_check_branch
    %3676 = sbr.rel (0) target = $region49
  $region48: #{aiayn_decoder_layer_pallas.1} parent=0 // pred_region
    _
  $region49: #{aiayn_decoder_layer_pallas.1} parent=0 // pred_fallthru
    _
  // Predicated region
  $region50: #{aiayn_decoder_layer_pallas.1} parent=0 // pred_check
    _
  $region51: #{aiayn_decoder_layer_pallas.1} parent=0 // pred_check_branch
    %3678 = sbr.rel (0) target = $region53
  $region52: #{aiayn_decoder_layer_pallas.1} parent=0 // pred_region
    _
  $region53: #{aiayn_decoder_layer_pallas.1} parent=0 // pred_fallthru
    _

</llo_original>
